<compile_context>
chip_gen: v5e
topology: v5e:2x2
jax: 0.10.0
libtpu: 0.0.40
codegen_flags: <defaults>
</compile_context>

<pallas_src>
import jax
import jax.numpy as jnp
from jax import lax
from jax.experimental import pallas as pl
from jax.experimental.pallas import tpu as pltpu

# Make the XLA reference's f32 matmuls exact so the f32 correctness check is
# meaningful (the in-kernel dots accumulate in f32 regardless).
jax.config.update("jax_default_matmul_precision", "highest")

_VMEM_LIMIT = 32 * 1024 * 1024


def _round_up(x, m):
    return ((x + m - 1) // m) * m


def _pick_channel_tile(hid, cap=512):
    """Largest channel tile <= cap that divides hid (keeps weight blocks legal)."""
    if hid <= cap:
        return hid
    for t in (512, 384, 256, 128):
        if t <= cap and hid % t == 0:
            return t
    return hid


def _pick_row_tile(n, *, align, cap=1024):
    """Row tile (multiple of `align`, <= cap) that divides round_up(n, align)."""
    n_pad = _round_up(n, align)
    tile = align
    t = align
    while t <= min(n_pad, cap):
        if n_pad % t == 0:
            tile = t
        t += align
    return tile, n_pad


# -----------------------------------------------------------------------------
# Kernels
# -----------------------------------------------------------------------------
def fused_conv1_dw_kernel(xph_ref, w1_ref, b1_ref, w2_ref, b2_ref,
                          y2_ref, pool_ref):
    # Fused: conv1 (1x1 + BN + ReLU)  ->  conv2 (3x3 depthwise, stride 2,
    # pad 1, + BN + ReLU)  ->  SE spatial-sum pool.
    #
    # xph_ref : [1, 4, Hp*Wpp, dim]  stride-2 phases of the zero-padded input
    #           (phase p = 2*row_parity + col_parity of the padded image;
    #           Hp = Ho+1, phase columns padded from Wp = Wo+1 to
    #           Wpp = round_up(Wp, 8) so the in-kernel unflatten is tile-aligned).
    # w1_ref  : [dim, TC] (io dtype), b1_ref: [1, TC] (f32)  -- conv1, BN folded
    # w2_ref  : [9,  TC]  (f32),      b2_ref: [1, TC] (f32)  -- conv2, BN folded
    # y2_ref  : [1, Ho, Wo, TC] (io dtype)
    # pool_ref: [1, 1, TC] (f32)  per-channel spatial sum for the SE pool.
    _, ho, wo, tc = y2_ref.shape
    hp = ho + 1
    wpp = xph_ref.shape[2] // hp

    w1 = w1_ref[...]
    b1 = b1_ref[...].astype(jnp.float32)          # (1, TC)
    w2 = w2_ref[...].astype(jnp.float32)          # (9, TC)
    b2 = b2_ref[...].astype(jnp.float32)          # (1, TC)

    # conv2's zero padding: padded row 0 lives in phases 0/1 at phase-row 0 and
    # padded col 0 lives in phases 0/2 at phase-col 0.  The in-kernel 1x1 conv
    # turns those zeros into relu(b1) != 0, so mask them back to zero before
    # the 9-tap MAC.  (Bottom/right pad positions are never read by any tap.)
    row0 = lax.broadcasted_iota(jnp.int32, (hp, wpp, 1), 0) == 0
    col0 = lax.broadcasted_iota(jnp.int32, (hp, wpp, 1), 1) == 0
    masks = (row0 | col0, row0, col0, None)

    def y1_phase(p):
        # Stage 1 on one stride-2 phase: (Hp*Wpp, dim) @ (dim, TC) on the MXU
        # with f32 accumulation, bias + ReLU, then unflatten to (Hp, Wpp, TC).
        y = jnp.dot(xph_ref[0, p], w1, preferred_element_type=jnp.float32)
        y = jnp.maximum(y + b1, 0.0).reshape(hp, wpp, tc)
        m = masks[p]
        return y if m is None else jnp.where(m, 0.0, y)

    # 9 depthwise taps (tap (ki,kj) of output (i,j) = padded y1[2i+ki, 2j+kj]
    # = phase(ki%2, kj%2)[i + ki//2, j + kj//2]), grouped by phase so only one
    # y1 phase is live at a time (keeps VMEM/vreg pressure low).
    acc = jnp.zeros((ho, wo, tc), jnp.float32)
    tap_groups = ((0, ((0, 0), (0, 2), (2, 0), (2, 2))),
                  (1, ((0, 1), (2, 1))),
                  (2, ((1, 0), (1, 2))),
                  (3, ((1, 1),)))
    for p, taps in tap_groups:
        yp = y1_phase(p)
        for ki, kj in taps:
            r0, c0 = ki // 2, kj // 2
            acc = acc + yp[r0:r0 + ho, c0:c0 + wo, :] * w2[ki * 3 + kj][None, None, :]

    y2 = jnp.maximum(acc + b2, 0.0)
    y2_ref[0] = y2.astype(y2_ref.dtype)
    pool_ref[...] = jnp.sum(y2, axis=(0, 1), keepdims=True)


def se_excite_conv3_kernel(x_ref, g_ref, w3_ref, b3_ref, o_ref):
    # (x * SE gate) @ w3 + b3 over a tile of output pixels (conv3 + folded BN).
    # x_ref: [1, TN, hid], g_ref: [1, 1, hid] per-batch gate (both io dtype),
    # w3_ref: [hid, out_dim] (io dtype), b3_ref: [1, out_dim] (f32).
    xg = x_ref[0] * g_ref[0]      # excite in the I/O dtype (bf16 VPU on v6e/v7x)
    y = jnp.dot(xg, w3_ref[...], preferred_element_type=jnp.float32)
    o_ref[0] = (y + b3_ref[...]).astype(o_ref.dtype)


# -----------------------------------------------------------------------------
# pallas_call wrappers
# -----------------------------------------------------------------------------
def fused_conv1_dwconv(xph, w1, b1, w2, b2, *, ho, wo, tile_c, out_dtype):
    b, nph, nrows, dim = xph.shape
    hid = w1.shape[1]
    assert nph == 4 and hid % tile_c == 0
    n_ct = hid // tile_c
    return pl.pallas_call(
        fused_conv1_dw_kernel,
        out_shape=(jax.ShapeDtypeStruct((b, ho, wo, hid), out_dtype),
                   jax.ShapeDtypeStruct((b, 1, hid), jnp.float32)),
        grid=(b, n_ct),
        in_specs=[
            # Same block index across the channel-tile axis -> the x-phase
            # block is DMA'd once per batch element and reused.
            pl.BlockSpec((1, 4, nrows, dim), lambda bi, ci: (bi, 0, 0, 0)),
            pl.BlockSpec((dim, tile_c), lambda bi, ci: (0, ci)),
            pl.BlockSpec((1, tile_c), lambda bi, ci: (0, ci)),
            pl.BlockSpec((9, tile_c), lambda bi, ci: (0, ci)),
            pl.BlockSpec((1, tile_c), lambda bi, ci: (0, ci)),
        ],
        out_specs=(
            pl.BlockSpec((1, ho, wo, tile_c), lambda bi, ci: (bi, 0, 0, ci)),
            pl.BlockSpec((1, 1, tile_c), lambda bi, ci: (bi, 0, ci)),
        ),
        compiler_params=pltpu.CompilerParams(
            dimension_semantics=("parallel", "parallel"),
            vmem_limit_bytes=_VMEM_LIMIT),
    )(xph, w1, b1, w2, b2)


def se_excite_conv3(y2_flat, gate, w3, b3, *, tile_n2, out_dtype):
    b, n2p, hid = y2_flat.shape
    cout = w3.shape[1]
    assert n2p % tile_n2 == 0
    return pl.pallas_call(
        se_excite_conv3_kernel,
        out_shape=jax.ShapeDtypeStruct((b, n2p, cout), out_dtype),
        grid=(b, n2p // tile_n2),
        in_specs=[
            pl.BlockSpec((1, tile_n2, hid), lambda bi, ti: (bi, ti, 0)),
            pl.BlockSpec((1, 1, hid), lambda bi, ti: (bi, 0, 0)),
            pl.BlockSpec((hid, cout), lambda bi, ti: (0, 0)),
            pl.BlockSpec((1, cout), lambda bi, ti: (0, 0)),
        ],
        out_specs=pl.BlockSpec((1, tile_n2, cout), lambda bi, ti: (bi, ti, 0)),
        compiler_params=pltpu.CompilerParams(
            dimension_semantics=("parallel", "parallel"),
            vmem_limit_bytes=_VMEM_LIMIT),
    )(y2_flat, gate, w3, b3)


# -----------------------------------------------------------------------------
# Parameter construction (deterministic, BN folded, eval semantics)
# -----------------------------------------------------------------------------
def make_divisible(v, divisor=8, min_value=None, round_limit=0.9):
    min_value = min_value or divisor
    new_v = max(min_value, int(v + divisor / 2) // divisor * divisor)
    if new_v < round_limit * v:
        new_v += divisor
    return new_v


def fold_bn(key, cout, eps=1e-5):
    k1, k2, k3, k4 = jax.random.split(key, 4)
    gamma = jax.random.uniform(k1, (cout,), minval=0.5, maxval=1.5)
    beta = 0.1 * jax.random.normal(k2, (cout,))
    mean = 0.1 * jax.random.normal(k3, (cout,))
    var = jax.random.uniform(k4, (cout,), minval=0.5, maxval=1.5)
    scale = gamma / jnp.sqrt(var + eps)
    bias = beta - mean * scale
    return scale, bias


def init_params(key, dim, out_dim):
    hid = int(dim * 4)
    rd = make_divisible(hid * 0.25)
    ks = jax.random.split(key, 8)

    # conv1: 1x1, dim -> hid (+ BN folded)
    w1 = 0.3 * jax.random.normal(ks[0], (dim, hid))
    s1, b1 = fold_bn(ks[1], hid)
    w1 = w1 * s1[None, :]

    # conv2: 3x3 depthwise stride 2 pad 1 (+ BN folded), tap index = ki*3 + kj
    w2 = 0.3 * jax.random.normal(ks[2], (3, 3, hid))
    s2, b2 = fold_bn(ks[3], hid)
    w2 = (w2 * s2[None, None, :]).reshape(9, hid)

    # SqueezeExcite: conv_reduce (hid->rd, bias), ReLU, conv_expand, sigmoid
    sw1 = 0.3 * jax.random.normal(ks[4], (hid, rd))
    sb1 = 0.1 * jax.random.normal(ks[5], (rd,))
    sw2 = 0.3 * jax.random.normal(ks[6], (rd, hid))
    sb2 = 0.1 * jax.random.normal(ks[7], (hid,))

    # conv3: 1x1, hid -> out_dim (+ BN folded)
    k9, k10 = jax.random.split(jax.random.fold_in(key, 99), 2)
    w3 = 0.3 * jax.random.normal(k9, (hid, out_dim))
    s3, b3 = fold_bn(k10, out_dim)
    w3 = w3 * s3[None, :]

    f32 = lambda a: a.astype(jnp.float32)
    return dict(
        w1=f32(w1), b1=f32(b1.reshape(1, hid)),
        w2=f32(w2), b2=f32(b2.reshape(1, hid)),
        sw1=f32(sw1), sb1=f32(sb1), sw2=f32(sw2), sb2=f32(sb2),
        w3=f32(w3), b3=f32(b3.reshape(1, out_dim)),
        hid=hid, rd=rd,
    )


# -----------------------------------------------------------------------------
# Forward pass: NCHW in -> NCHW out (matches PyTorch)
# -----------------------------------------------------------------------------
def patch_merging_forward(x_nchw, params, *, io_dtype=jnp.float32,
                          tile_c=512, tile_n2=1024):
    b, dim, h, w = x_nchw.shape
    assert h % 2 == 0 and w % 2 == 0
    hid = params["hid"]
    out_dim = params["w3"].shape[1]
    ho, wo = h // 2, w // 2
    hp, wp = ho + 1, wo + 1
    n2 = ho * wo

    # NCHW -> NHWC (channels on lanes), zero pad for conv2, split into the four
    # 2x2 stride phases of the padded image.  This single XLA copy pass runs
    # over x (dim channels) only; y1 (hid = 4*dim channels) never exists in
    # HBM because stage 1 is fused into the depthwise kernel below.
    x = jnp.transpose(x_nchw, (0, 2, 3, 1)).astype(io_dtype)
    xp = jnp.pad(x, ((0, 0), (1, 1), (1, 1), (0, 0)))
    xph = (xp.reshape(b, hp, 2, wp, 2, dim)
             .transpose(0, 2, 4, 1, 3, 5)
             .reshape(b, 4, hp, wp, dim))
    wpp = _round_up(wp, 8)          # sublane-align phase rows so the in-kernel
    if wpp != wp:                   # unflatten stays on an (8,128) tile boundary
        xph = jnp.pad(xph, ((0, 0), (0, 0), (0, 0), (0, wpp - wp), (0, 0)))
    xph = xph.reshape(b, 4, hp * wpp, dim)

    # ---- stages 1 + 2 fused: 1x1 conv+BN+ReLU -> 3x3 dw s2 p1 +BN+ReLU -----
    tc = _pick_channel_tile(hid, cap=tile_c)
    y2, pool_sums = fused_conv1_dwconv(
        xph, params["w1"].astype(io_dtype), params["b1"], params["w2"],
        params["b2"], ho=ho, wo=wo, tile_c=tc, out_dtype=io_dtype)

    # ---- SE gate (tiny [B, hid] MLP, plain JAX -- negligible) --------------
    pooled = pool_sums[:, 0, :] * (1.0 / float(n2))                   # [B, hid]
    r = jax.nn.relu(pooled @ params["sw1"] + params["sb1"])
    gate = jax.nn.sigmoid(r @ params["sw2"] + params["sb2"])[:, None, :]

    # ---- stage 3: excite + conv3 (1x1) + BN (row-tiled MXU matmul) ---------
    align = 16 if jnp.dtype(io_dtype).itemsize < 4 else 8
    tn, n2p = _pick_row_tile(n2, align=align, cap=tile_n2)
    y2f = y2.reshape(b, n2, hid)
    if n2p != n2:          # ragged tail fallback; tiles normally divide exactly
        y2f = jnp.pad(y2f, ((0, 0), (0, n2p - n2), (0, 0)))
    y3 = se_excite_conv3(y2f, gate.astype(io_dtype),
                         params["w3"].astype(io_dtype), params["b3"],
                         tile_n2=tn, out_dtype=io_dtype)
    y3 = y3[:, :n2, :].reshape(b, ho, wo, out_dim)
    return jnp.transpose(y3, (0, 3, 1, 2)).astype(jnp.float32)        # NCHW


# -----------------------------------------------------------------------------
# Pure-JAX reference (same folded params) for correctness checking
# -----------------------------------------------------------------------------
def reference_forward(x_nchw, params):
    b, dim, h, w = x_nchw.shape
    hid = params["hid"]
    x = jnp.transpose(x_nchw, (0, 2, 3, 1)).astype(jnp.float32)

    y1 = jax.nn.relu(jnp.einsum("bhwc,cd->bhwd", x, params["w1"]) + params["b1"][0])

    w2_hwio = params["w2"].reshape(3, 3, 1, hid)
    y2 = lax.conv_general_dilated(
        y1, w2_hwio, window_strides=(2, 2), padding=[(1, 1), (1, 1)],
        dimension_numbers=("NHWC", "HWIO", "NHWC"), feature_group_count=hid)
    y2 = jax.nn.relu(y2 + params["b2"][0])

    pooled = jnp.mean(y2, axis=(1, 2))                                # [B, hid]
    r = jax.nn.relu(pooled @ params["sw1"] + params["sb1"])
    g = jax.nn.sigmoid(r @ params["sw2"] + params["sb2"])
    y3 = jnp.einsum("bhwc,cd->bhwd", y2 * g[:, None, None, :], params["w3"]) \
        + params["b3"][0]
    return jnp.transpose(y3, (0, 3, 1, 2))


# -----------------------------------------------------------------------------
if __name__ == "__main__":
    B, DIM, H, W = 2, 4, 16, 16
    OUT_DIM = 8

    key = jax.random.PRNGKey(0)
    kx, kp = jax.random.split(key)
    x = jax.random.normal(kx, (B, DIM, H, W), dtype=jnp.float32)      # NCHW
    params = init_params(kp, DIM, OUT_DIM)

    ref = jax.block_until_ready(reference_forward(x, params))

    # f32 I/O path: tight check against the reference.
    out = jax.block_until_ready(patch_merging_forward(x, params))
    assert out.shape == (B, OUT_DIM, H // 2, W // 2), out.shape
    assert jnp.allclose(out, ref, atol=5e-4, rtol=5e-4), \
        float(jnp.max(jnp.abs(out - ref)))

    # bf16 I/O path (halves HBM traffic / VMEM; f32 accumulation) -- loose check.
    out_bf16 = jax.block_until_ready(
        patch_merging_forward(x, params, io_dtype=jnp.bfloat16))
    assert out_bf16.shape == out.shape
    assert float(jnp.max(jnp.abs(out_bf16 - ref))) < 0.2

    print("KERNEL_OK")
</pallas_src>

<mosaic_0001>
module attributes {stable_mosaic.version = 11 : i64} {
  func.func @fused_conv1_dw_kernel(%arg0: i32, %arg1: i32, %arg2: memref<1x4x144x4xf32, #tpu.memory_space<vmem>>, %arg3: memref<4x16xf32, #tpu.memory_space<vmem>>, %arg4: memref<1x16xf32, #tpu.memory_space<vmem>>, %arg5: memref<9x16xf32, #tpu.memory_space<vmem>>, %arg6: memref<1x16xf32, #tpu.memory_space<vmem>>, %arg7: memref<1x8x8x16xf32, #tpu.memory_space<vmem>>, %arg8: memref<1x1x16xf32, #tpu.memory_space<vmem>>) attributes {dimension_semantics = [#tpu.dimension_semantics<parallel>, #tpu.dimension_semantics<parallel>], iteration_bounds = array<i64: 2, 1>, scalar_prefetch = 0 : i64, scratch_operands = 0 : i64, tpu.core_type = #tpu.core_type<tc>, window_params = [{transform_indices = @transform_0, window_bounds = array<i64: 1, 4, 144, 4>}, {transform_indices = @transform_1, window_bounds = array<i64: 4, 16>}, {transform_indices = @transform_2, window_bounds = array<i64: 1, 16>}, {transform_indices = @transform_3, window_bounds = array<i64: 9, 16>}, {transform_indices = @transform_4, window_bounds = array<i64: 1, 16>}, {transform_indices = @transform_5, window_bounds = array<i64: 1, 8, 8, 16>}, {transform_indices = @transform_6, window_bounds = array<i64: 1, 1, 16>}]} {
    %c0 = arith.constant 0 : index
    %c0_0 = arith.constant 0 : index
    %0 = vector.load %arg3[%c0, %c0_0] : memref<4x16xf32, #tpu.memory_space<vmem>>, vector<4x16xf32>
    %c0_1 = arith.constant 0 : index
    %c0_2 = arith.constant 0 : index
    %1 = vector.load %arg4[%c0_1, %c0_2] : memref<1x16xf32, #tpu.memory_space<vmem>>, vector<1x16xf32>
    %c0_3 = arith.constant 0 : index
    %c0_4 = arith.constant 0 : index
    %2 = vector.load %arg5[%c0_3, %c0_4] : memref<9x16xf32, #tpu.memory_space<vmem>>, vector<9x16xf32>
    %c0_5 = arith.constant 0 : index
    %c0_6 = arith.constant 0 : index
    %3 = vector.load %arg6[%c0_5, %c0_6] : memref<1x16xf32, #tpu.memory_space<vmem>>, vector<1x16xf32>
    %4 = tpu.iota {dimensions = array<i32: 0>} : vector<9x16x1xi32>
    %c0_i32 = arith.constant 0 : i32
    %5 = vector.broadcast %c0_i32 : i32 to vector<9x16x1xi32>
    %6 = arith.cmpi eq, %4, %5 : vector<9x16x1xi32>
    %7 = tpu.iota {dimensions = array<i32: 1>} : vector<9x16x1xi32>
    %c0_i32_7 = arith.constant 0 : i32
    %8 = vector.broadcast %c0_i32_7 : i32 to vector<9x16x1xi32>
    %9 = arith.cmpi eq, %7, %8 : vector<9x16x1xi32>
    %10 = arith.ori %6, %9 : vector<9x16x1xi1>
    %cst = arith.constant 0.000000e+00 : f32
    %11 = vector.broadcast %cst : f32 to vector<8x8x16xf32>
    %c0_8 = arith.constant 0 : index
    %c0_9 = arith.constant 0 : index
    %c0_10 = arith.constant 0 : index
    %c0_11 = arith.constant 0 : index
    %12 = vector.load %arg2[%c0_8, %c0_9, %c0_10, %c0_11] : memref<1x4x144x4xf32, #tpu.memory_space<vmem>>, vector<1x1x144x4xf32>
    %13 = vector.shape_cast %12 : vector<1x1x144x4xf32> to vector<144x4xf32>
    %cst_12 = arith.constant dense<0.000000e+00> : vector<144x16xf32>
    %14 = tpu.matmul %13, %0, %cst_12 {dimension_numbers = #tpu.dot_dimension_numbers<[1], [0], [0], [1], [0, 0, 1, 1], [], []>, precision = #tpu.contract_precision<fp32>} : vector<144x4xf32>, vector<4x16xf32>, vector<144x16xf32> -> vector<144x16xf32>
    %15 = vector.broadcast %1 : vector<1x16xf32> to vector<144x16xf32>
    %16 = arith.addf %14, %15 : vector<144x16xf32>
    %cst_13 = arith.constant 0.000000e+00 : f32
    %17 = vector.broadcast %cst_13 : f32 to vector<144x16xf32>
    %18 = arith.maximumf %16, %17 : vector<144x16xf32>
    %19 = vector.shape_cast %18 : vector<144x16xf32> to vector<9x16x16xf32>
    %cst_14 = arith.constant 0.000000e+00 : f32
    %20 = vector.shape_cast %10 : vector<9x16x1xi1> to vector<9x16x1xi1>
    %21 = vector.broadcast %20 : vector<9x16x1xi1> to vector<9x16x16xi1>
    %22 = vector.broadcast %cst_14 : f32 to vector<9x16x16xf32>
    %23 = arith.select %21, %22, %19 : vector<9x16x16xi1>, vector<9x16x16xf32>
    %24 = vector.extract_strided_slice %23 {offsets = [0, 0, 0], sizes = [8, 8, 16], strides = [1, 1, 1]} : vector<9x16x16xf32> to vector<8x8x16xf32>
    %25 = vector.extract_strided_slice %2 {offsets = [0, 0], sizes = [1, 16], strides = [1, 1]} : vector<9x16xf32> to vector<1x16xf32>
    %26 = vector.shape_cast %25 : vector<1x16xf32> to vector<16xf32>
    %27 = vector.shape_cast %26 : vector<16xf32> to vector<1x1x16xf32>
    %28 = vector.broadcast %27 : vector<1x1x16xf32> to vector<8x8x16xf32>
    %29 = arith.mulf %24, %28 : vector<8x8x16xf32>
    %30 = arith.addf %11, %29 : vector<8x8x16xf32>
    %31 = vector.extract_strided_slice %23 {offsets = [0, 1, 0], sizes = [8, 8, 16], strides = [1, 1, 1]} : vector<9x16x16xf32> to vector<8x8x16xf32>
    %32 = vector.extract_strided_slice %2 {offsets = [2, 0], sizes = [1, 16], strides = [1, 1]} : vector<9x16xf32> to vector<1x16xf32>
    %33 = vector.shape_cast %32 : vector<1x16xf32> to vector<16xf32>
    %34 = vector.shape_cast %33 : vector<16xf32> to vector<1x1x16xf32>
    %35 = vector.broadcast %34 : vector<1x1x16xf32> to vector<8x8x16xf32>
    %36 = arith.mulf %31, %35 : vector<8x8x16xf32>
    %37 = arith.addf %30, %36 : vector<8x8x16xf32>
    %38 = vector.extract_strided_slice %23 {offsets = [1, 0, 0], sizes = [8, 8, 16], strides = [1, 1, 1]} : vector<9x16x16xf32> to vector<8x8x16xf32>
    %39 = vector.extract_strided_slice %2 {offsets = [6, 0], sizes = [1, 16], strides = [1, 1]} : vector<9x16xf32> to vector<1x16xf32>
    %40 = vector.shape_cast %39 : vector<1x16xf32> to vector<16xf32>
    %41 = vector.shape_cast %40 : vector<16xf32> to vector<1x1x16xf32>
    %42 = vector.broadcast %41 : vector<1x1x16xf32> to vector<8x8x16xf32>
    %43 = arith.mulf %38, %42 : vector<8x8x16xf32>
    %44 = arith.addf %37, %43 : vector<8x8x16xf32>
    %45 = vector.extract_strided_slice %23 {offsets = [1, 1, 0], sizes = [8, 8, 16], strides = [1, 1, 1]} : vector<9x16x16xf32> to vector<8x8x16xf32>
    %46 = vector.extract_strided_slice %2 {offsets = [8, 0], sizes = [1, 16], strides = [1, 1]} : vector<9x16xf32> to vector<1x16xf32>
    %47 = vector.shape_cast %46 : vector<1x16xf32> to vector<16xf32>
    %48 = vector.shape_cast %47 : vector<16xf32> to vector<1x1x16xf32>
    %49 = vector.broadcast %48 : vector<1x1x16xf32> to vector<8x8x16xf32>
    %50 = arith.mulf %45, %49 : vector<8x8x16xf32>
    %51 = arith.addf %44, %50 : vector<8x8x16xf32>
    %c0_15 = arith.constant 0 : index
    %c1 = arith.constant 1 : index
    %c0_16 = arith.constant 0 : index
    %c0_17 = arith.constant 0 : index
    %52 = vector.load %arg2[%c0_15, %c1, %c0_16, %c0_17] : memref<1x4x144x4xf32, #tpu.memory_space<vmem>>, vector<1x1x144x4xf32>
    %53 = vector.shape_cast %52 : vector<1x1x144x4xf32> to vector<144x4xf32>
    %cst_18 = arith.constant dense<0.000000e+00> : vector<144x16xf32>
    %54 = tpu.matmul %53, %0, %cst_18 {dimension_numbers = #tpu.dot_dimension_numbers<[1], [0], [0], [1], [0, 0, 1, 1], [], []>, precision = #tpu.contract_precision<fp32>} : vector<144x4xf32>, vector<4x16xf32>, vector<144x16xf32> -> vector<144x16xf32>
    %55 = vector.broadcast %1 : vector<1x16xf32> to vector<144x16xf32>
    %56 = arith.addf %54, %55 : vector<144x16xf32>
    %cst_19 = arith.constant 0.000000e+00 : f32
    %57 = vector.broadcast %cst_19 : f32 to vector<144x16xf32>
    %58 = arith.maximumf %56, %57 : vector<144x16xf32>
    %59 = vector.shape_cast %58 : vector<144x16xf32> to vector<9x16x16xf32>
    %cst_20 = arith.constant 0.000000e+00 : f32
    %60 = vector.shape_cast %6 : vector<9x16x1xi1> to vector<9x16x1xi1>
    %61 = vector.broadcast %60 : vector<9x16x1xi1> to vector<9x16x16xi1>
    %62 = vector.broadcast %cst_20 : f32 to vector<9x16x16xf32>
    %63 = arith.select %61, %62, %59 : vector<9x16x16xi1>, vector<9x16x16xf32>
    %64 = vector.extract_strided_slice %63 {offsets = [0, 0, 0], sizes = [8, 8, 16], strides = [1, 1, 1]} : vector<9x16x16xf32> to vector<8x8x16xf32>
    %65 = vector.extract_strided_slice %2 {offsets = [1, 0], sizes = [1, 16], strides = [1, 1]} : vector<9x16xf32> to vector<1x16xf32>
    %66 = vector.shape_cast %65 : vector<1x16xf32> to vector<16xf32>
    %67 = vector.shape_cast %66 : vector<16xf32> to vector<1x1x16xf32>
    %68 = vector.broadcast %67 : vector<1x1x16xf32> to vector<8x8x16xf32>
    %69 = arith.mulf %64, %68 : vector<8x8x16xf32>
    %70 = arith.addf %51, %69 : vector<8x8x16xf32>
    %71 = vector.extract_strided_slice %63 {offsets = [1, 0, 0], sizes = [8, 8, 16], strides = [1, 1, 1]} : vector<9x16x16xf32> to vector<8x8x16xf32>
    %72 = vector.extract_strided_slice %2 {offsets = [7, 0], sizes = [1, 16], strides = [1, 1]} : vector<9x16xf32> to vector<1x16xf32>
    %73 = vector.shape_cast %72 : vector<1x16xf32> to vector<16xf32>
    %74 = vector.shape_cast %73 : vector<16xf32> to vector<1x1x16xf32>
    %75 = vector.broadcast %74 : vector<1x1x16xf32> to vector<8x8x16xf32>
    %76 = arith.mulf %71, %75 : vector<8x8x16xf32>
    %77 = arith.addf %70, %76 : vector<8x8x16xf32>
    %c0_21 = arith.constant 0 : index
    %c2 = arith.constant 2 : index
    %c0_22 = arith.constant 0 : index
    %c0_23 = arith.constant 0 : index
    %78 = vector.load %arg2[%c0_21, %c2, %c0_22, %c0_23] : memref<1x4x144x4xf32, #tpu.memory_space<vmem>>, vector<1x1x144x4xf32>
    %79 = vector.shape_cast %78 : vector<1x1x144x4xf32> to vector<144x4xf32>
    %cst_24 = arith.constant dense<0.000000e+00> : vector<144x16xf32>
    %80 = tpu.matmul %79, %0, %cst_24 {dimension_numbers = #tpu.dot_dimension_numbers<[1], [0], [0], [1], [0, 0, 1, 1], [], []>, precision = #tpu.contract_precision<fp32>} : vector<144x4xf32>, vector<4x16xf32>, vector<144x16xf32> -> vector<144x16xf32>
    %81 = vector.broadcast %1 : vector<1x16xf32> to vector<144x16xf32>
    %82 = arith.addf %80, %81 : vector<144x16xf32>
    %cst_25 = arith.constant 0.000000e+00 : f32
    %83 = vector.broadcast %cst_25 : f32 to vector<144x16xf32>
    %84 = arith.maximumf %82, %83 : vector<144x16xf32>
    %85 = vector.shape_cast %84 : vector<144x16xf32> to vector<9x16x16xf32>
    %cst_26 = arith.constant 0.000000e+00 : f32
    %86 = vector.shape_cast %9 : vector<9x16x1xi1> to vector<9x16x1xi1>
    %87 = vector.broadcast %86 : vector<9x16x1xi1> to vector<9x16x16xi1>
    %88 = vector.broadcast %cst_26 : f32 to vector<9x16x16xf32>
    %89 = arith.select %87, %88, %85 : vector<9x16x16xi1>, vector<9x16x16xf32>
    %90 = vector.extract_strided_slice %89 {offsets = [0, 0, 0], sizes = [8, 8, 16], strides = [1, 1, 1]} : vector<9x16x16xf32> to vector<8x8x16xf32>
    %91 = vector.extract_strided_slice %2 {offsets = [3, 0], sizes = [1, 16], strides = [1, 1]} : vector<9x16xf32> to vector<1x16xf32>
    %92 = vector.shape_cast %91 : vector<1x16xf32> to vector<16xf32>
    %93 = vector.shape_cast %92 : vector<16xf32> to vector<1x1x16xf32>
    %94 = vector.broadcast %93 : vector<1x1x16xf32> to vector<8x8x16xf32>
    %95 = arith.mulf %90, %94 : vector<8x8x16xf32>
    %96 = arith.addf %77, %95 : vector<8x8x16xf32>
    %97 = vector.extract_strided_slice %89 {offsets = [0, 1, 0], sizes = [8, 8, 16], strides = [1, 1, 1]} : vector<9x16x16xf32> to vector<8x8x16xf32>
    %98 = vector.extract_strided_slice %2 {offsets = [5, 0], sizes = [1, 16], strides = [1, 1]} : vector<9x16xf32> to vector<1x16xf32>
    %99 = vector.shape_cast %98 : vector<1x16xf32> to vector<16xf32>
    %100 = vector.shape_cast %99 : vector<16xf32> to vector<1x1x16xf32>
    %101 = vector.broadcast %100 : vector<1x1x16xf32> to vector<8x8x16xf32>
    %102 = arith.mulf %97, %101 : vector<8x8x16xf32>
    %103 = arith.addf %96, %102 : vector<8x8x16xf32>
    %c0_27 = arith.constant 0 : index
    %c3 = arith.constant 3 : index
    %c0_28 = arith.constant 0 : index
    %c0_29 = arith.constant 0 : index
    %104 = vector.load %arg2[%c0_27, %c3, %c0_28, %c0_29] : memref<1x4x144x4xf32, #tpu.memory_space<vmem>>, vector<1x1x144x4xf32>
    %105 = vector.shape_cast %104 : vector<1x1x144x4xf32> to vector<144x4xf32>
    %cst_30 = arith.constant dense<0.000000e+00> : vector<144x16xf32>
    %106 = tpu.matmul %105, %0, %cst_30 {dimension_numbers = #tpu.dot_dimension_numbers<[1], [0], [0], [1], [0, 0, 1, 1], [], []>, precision = #tpu.contract_precision<fp32>} : vector<144x4xf32>, vector<4x16xf32>, vector<144x16xf32> -> vector<144x16xf32>
    %107 = vector.broadcast %1 : vector<1x16xf32> to vector<144x16xf32>
    %108 = arith.addf %106, %107 : vector<144x16xf32>
    %cst_31 = arith.constant 0.000000e+00 : f32
    %109 = vector.broadcast %cst_31 : f32 to vector<144x16xf32>
    %110 = arith.maximumf %108, %109 : vector<144x16xf32>
    %111 = vector.shape_cast %110 : vector<144x16xf32> to vector<9x16x16xf32>
    %112 = vector.extract_strided_slice %111 {offsets = [0, 0, 0], sizes = [8, 8, 16], strides = [1, 1, 1]} : vector<9x16x16xf32> to vector<8x8x16xf32>
    %113 = vector.extract_strided_slice %2 {offsets = [4, 0], sizes = [1, 16], strides = [1, 1]} : vector<9x16xf32> to vector<1x16xf32>
    %114 = vector.shape_cast %113 : vector<1x16xf32> to vector<16xf32>
    %115 = vector.shape_cast %114 : vector<16xf32> to vector<1x1x16xf32>
    %116 = vector.broadcast %115 : vector<1x1x16xf32> to vector<8x8x16xf32>
    %117 = arith.mulf %112, %116 : vector<8x8x16xf32>
    %118 = arith.addf %103, %117 : vector<8x8x16xf32>
    %119 = vector.shape_cast %3 : vector<1x16xf32> to vector<1x1x16xf32>
    %120 = vector.broadcast %119 : vector<1x1x16xf32> to vector<8x8x16xf32>
    %121 = arith.addf %118, %120 : vector<8x8x16xf32>
    %cst_32 = arith.constant 0.000000e+00 : f32
    %122 = vector.broadcast %cst_32 : f32 to vector<8x8x16xf32>
    %123 = arith.maximumf %121, %122 : vector<8x8x16xf32>
    %c0_33 = arith.constant 0 : index
    %c0_34 = arith.constant 0 : index
    %c0_35 = arith.constant 0 : index
    %c0_36 = arith.constant 0 : index
    %124 = vector.load %arg7[%c0_33, %c0_34, %c0_35, %c0_36] : memref<1x8x8x16xf32, #tpu.memory_space<vmem>>, vector<1x8x8x16xf32>
    %125 = vector.shape_cast %124 : vector<1x8x8x16xf32> to vector<8x8x16xf32>
    %126 = vector.shape_cast %123 : vector<8x8x16xf32> to vector<1x8x8x16xf32>
    tpu.vector_store %arg7[%c0_33, %c0_34, %c0_35, %c0_36], %126 {strides = array<i32>} : memref<1x8x8x16xf32, #tpu.memory_space<vmem>>, vector<1x8x8x16xf32>,
    %cst_37 = arith.constant dense<0.000000e+00> : vector<16xf32>
    %127 = vector.multi_reduction <add>, %123, %cst_37 [0, 1] : vector<8x8x16xf32> to vector<16xf32>
    %128 = vector.shape_cast %127 : vector<16xf32> to vector<1x1x16xf32>
    %c0_38 = arith.constant 0 : index
    %c0_39 = arith.constant 0 : index
    %c0_40 = arith.constant 0 : index
    %129 = vector.load %arg8[%c0_38, %c0_39, %c0_40] : memref<1x1x16xf32, #tpu.memory_space<vmem>>, vector<1x1x16xf32>
    tpu.vector_store %arg8[%c0_38, %c0_39, %c0_40], %128 {strides = array<i32>} : memref<1x1x16xf32, #tpu.memory_space<vmem>>, vector<1x1x16xf32>,
    return
  }
  func.func @transform_0(%arg0: i32, %arg1: i32) -> (i32, i32, i32, i32) {
    %c0_i32 = arith.constant 0 : i32
    %c0_i32_0 = arith.constant 0 : i32
    %c0_i32_1 = arith.constant 0 : i32
    %c0_i32_2 = arith.constant 0 : i32
    return %arg0, %c0_i32, %c0_i32_0, %c0_i32_1 : i32, i32, i32, i32
  }
  func.func @transform_1(%arg0: i32, %arg1: i32) -> (i32, i32) {
    %c0_i32 = arith.constant 0 : i32
    %c0_i32_0 = arith.constant 0 : i32
    return %c0_i32, %arg1 : i32, i32
  }
  func.func @transform_2(%arg0: i32, %arg1: i32) -> (i32, i32) {
    %c0_i32 = arith.constant 0 : i32
    %c0_i32_0 = arith.constant 0 : i32
    return %c0_i32, %arg1 : i32, i32
  }
  func.func @transform_3(%arg0: i32, %arg1: i32) -> (i32, i32) {
    %c0_i32 = arith.constant 0 : i32
    %c0_i32_0 = arith.constant 0 : i32
    return %c0_i32, %arg1 : i32, i32
  }
  func.func @transform_4(%arg0: i32, %arg1: i32) -> (i32, i32) {
    %c0_i32 = arith.constant 0 : i32
    %c0_i32_0 = arith.constant 0 : i32
    return %c0_i32, %arg1 : i32, i32
  }
  func.func @transform_5(%arg0: i32, %arg1: i32) -> (i32, i32, i32, i32) {
    %c0_i32 = arith.constant 0 : i32
    %c0_i32_0 = arith.constant 0 : i32
    %c0_i32_1 = arith.constant 0 : i32
    return %arg0, %c0_i32, %c0_i32_0, %arg1 : i32, i32, i32, i32
  }
  func.func @transform_6(%arg0: i32, %arg1: i32) -> (i32, i32, i32) {
    %c0_i32 = arith.constant 0 : i32
    %c0_i32_0 = arith.constant 0 : i32
    return %arg0, %c0_i32, %arg1 : i32, i32, i32
  }
}

</mosaic_0001>

<llo_original>
// kernel: tpu_custom_call.1
$region0: #{tpu_custom_call.1}
  #allocation0 [shape = 'u32[]', space=smem, size = 0x4, offset = 0x4, fixed_abs, tag = 'smem constant byte address 0x4 - core index']
  #allocation1 [shape = 'u32[72,128]{1,0:T(1,128)}', space=vmem, size = 0x9000, scoped, tag = 'internal scratch']
  %s0 = inlined_call_operand.vmem [shape: f32[2,4,144,4], index: 0, kind: input, shape index: {}]
  %s1 = inlined_call_operand.vmem [shape: f32[4,16], index: 1, kind: input, shape index: {}]
  %s2 = inlined_call_operand.vmem [shape: f32[1,16], index: 2, kind: input, shape index: {}]
  %s3 = inlined_call_operand.vmem [shape: f32[9,16], index: 3, kind: input, shape index: {}]
  %s4 = inlined_call_operand.vmem [shape: f32[1,16], index: 4, kind: input, shape index: {}]
  %s5 = inlined_call_operand.hbm [shape: f32[2,8,8,16], index: 5, kind: output, shape index: {0}]
  %s6 = inlined_call_operand.hbm [shape: f32[2,1,16], index: 6, kind: output, shape index: {1}]
  %7 = xla_tuple %s5, %s6
  %s8 = sld [smem:[#allocation0]]
  $region61: #{tpu_custom_call.1} parent=0
    _
  %s10 = ssub.s32 1, %s8
  %s11 = scalar_select 0, %s10, %s8
  $region1: #{tpu_custom_call.1} parent=0
    #allocation2 [shape = 'u8[65536]{0}', space=vmem, size = 0x10000, scoped, tag = 'output window, operand 0']
    #allocation3 [shape = 's32[2]{0}', space=sflag, size = 0x8, scoped, tag = 'scoped memory for tpu_custom_call.1']
    #allocation4 [shape = 'u8[1024]{0}', space=vmem, size = 0x400, scoped, tag = 'output window, operand 1']
    #allocation5 [shape = 's32[2]{0}', space=sflag, size = 0x8, scoped, tag = 'scoped memory for tpu_custom_call.1']
    %12 = vsyncpa [#allocation3], 0
    %s13 = scalar_lea.sflag [#allocation3], 1
    %14 = vsyncpa %s13, 0
    %15 = vsyncpa [#allocation5], 0
    %s16 = scalar_lea.sflag [#allocation5], 1
    %17 = vsyncpa %s16, 0
    loop: start=0, step=1, limit=4
    $region2: #{tpu_custom_call.1} parent=1 // loop_pre_header
      _
    $region3: #{tpu_custom_call.1} parent=1 // loop_header
      %s19 = sphi 0, %s23
      %p20 = scmp.ge.s32.totalorder %s19, 4
      %s26 = sphi 0, %s38
      %s27 = sphi 0, %s34
      %s28 = sphi 0, %s26
      %s29 = sphi 0, %s27
      %s30 = sphi 0, %s28
      %s31 = sphi 0, %s29
      %s41 = sphi 0, %s43
      %s44 = sphi 0, %s41
      %s45 = sphi 0, %s44
      %s61 = sphi 0, %s45
      %s67 = sphi 0, %s69
      %s70 = sphi 0, %s67
      %s71 = sphi 0, %s70
      %s87 = sphi 0, %s71
      %s93 = sphi 0, %s95
      %s96 = sphi 0, %s93
      %s97 = sphi 0, %s96
      %s113 = sphi 0, %s97
      %s119 = sphi 0, %s121
      %s122 = sphi 0, %s119
      %s123 = sphi 0, %s122
      %s139 = sphi 0, %s123
      %s145 = sphi 0, %s147
      %s148 = sphi 0, %s145
      %s149 = sphi 0, %s148
      %s165 = sphi 0, %s149
      %s173 = sphi 0, %s175
      %s176 = sphi 0, %s173
      %s177 = sphi 0, %s176
      %s193 = sphi 0, %s177
      %s201 = sphi 0, %s203
      %s204 = sphi 0, %s201
      %s205 = sphi 0, %s204
      %s221 = sphi 0, %s205
    $region4: #{tpu_custom_call.1} parent=1 // loop_header_branch
      %22 = sbr.rel (%p20) target = $region8
    $region5: #{tpu_custom_call.1} parent=1 // loop_body
      %s24 = ssub.s32 %s19, 1
      %s25 = ssub.s32 %s19, 2
      %s32 = sadd.s32 1, %s27
      %p33 = scmp.ge.s32.totalorder %s32, 1
      %s34 = scalar_select %p33, 0, %s32
      %s35 = sadd.s32 1, %s26
      %s36 = scalar_select %p33, %s35, %s26
      %p37 = scmp.ge.s32.totalorder %s36, 2
      %s38 = scalar_select %p37, 0, %s36
      %s39 = ssub.s32 %s26, %s38
      %p40 = scmp.eq.s32.totalorder %s39, 0
      %s42 = sadd.s32 %s41, 1
      %s43 = scalar_select %p40, %s41, %s42
      %p46 = pneg %p40
      %p47 = scmp.eq.s32.totalorder %s19, 1
      %p48 = por %p46, %p47
      %p49 = scmp.ne.s32.totalorder %s41, %s44
      %p50 = scmp.eq.s32.totalorder %s19, 0
      %p51 = por %p49, %p50
      %p52 = scmp.ne.s32.totalorder %s41, %s44
      %p53 = scmp.eq.s32.totalorder %s24, 1
      %p54 = por %p52, %p53
      %p55 = scmp.ne.s32.totalorder %s44, %s45
      %p56 = scmp.eq.s32.totalorder %s24, 0
      %p57 = por %p55, %p56
      %p58 = scmp.ne.s32.totalorder %s44, %s45
      %p59 = scmp.eq.s32.totalorder %s25, 1
      %p60 = por %p58, %p59
      %p62 = scmp.ne.s32.totalorder %s45, %s61
      %p63 = scmp.eq.s32.totalorder %s25, 0
      %p64 = por %p62, %p63
      %s65 = ssub.s32 %s27, %s34
      %p66 = scmp.eq.s32.totalorder %s65, 0
      %s68 = sadd.s32 %s67, 1
      %s69 = scalar_select %p66, %s67, %s68
      %p72 = pneg %p66
      %p73 = scmp.eq.s32.totalorder %s19, 1
      %p74 = por %p72, %p73
      %p75 = scmp.ne.s32.totalorder %s67, %s70
      %p76 = scmp.eq.s32.totalorder %s19, 0
      %p77 = por %p75, %p76
      %p78 = scmp.ne.s32.totalorder %s67, %s70
      %p79 = scmp.eq.s32.totalorder %s24, 1
      %p80 = por %p78, %p79
      %p81 = scmp.ne.s32.totalorder %s70, %s71
      %p82 = scmp.eq.s32.totalorder %s24, 0
      %p83 = por %p81, %p82
      %p84 = scmp.ne.s32.totalorder %s70, %s71
      %p85 = scmp.eq.s32.totalorder %s25, 1
      %p86 = por %p84, %p85
      %p88 = scmp.ne.s32.totalorder %s71, %s87
      %p89 = scmp.eq.s32.totalorder %s25, 0
      %p90 = por %p88, %p89
      %s91 = ssub.s32 %s27, %s34
      %p92 = scmp.eq.s32.totalorder %s91, 0
      %s94 = sadd.s32 %s93, 1
      %s95 = scalar_select %p92, %s93, %s94
      %p98 = pneg %p92
      %p99 = scmp.eq.s32.totalorder %s19, 1
      %p100 = por %p98, %p99
      %p101 = scmp.ne.s32.totalorder %s93, %s96
      %p102 = scmp.eq.s32.totalorder %s19, 0
      %p103 = por %p101, %p102
      %p104 = scmp.ne.s32.totalorder %s93, %s96
      %p105 = scmp.eq.s32.totalorder %s24, 1
      %p106 = por %p104, %p105
      %p107 = scmp.ne.s32.totalorder %s96, %s97
      %p108 = scmp.eq.s32.totalorder %s24, 0
      %p109 = por %p107, %p108
      %p110 = scmp.ne.s32.totalorder %s96, %s97
      %p111 = scmp.eq.s32.totalorder %s25, 1
      %p112 = por %p110, %p111
      %p114 = scmp.ne.s32.totalorder %s97, %s113
      %p115 = scmp.eq.s32.totalorder %s25, 0
      %p116 = por %p114, %p115
      %s117 = ssub.s32 %s27, %s34
      %p118 = scmp.eq.s32.totalorder %s117, 0
      %s120 = sadd.s32 %s119, 1
      %s121 = scalar_select %p118, %s119, %s120
      %p124 = pneg %p118
      %p125 = scmp.eq.s32.totalorder %s19, 1
      %p126 = por %p124, %p125
      %p127 = scmp.ne.s32.totalorder %s119, %s122
      %p128 = scmp.eq.s32.totalorder %s19, 0
      %p129 = por %p127, %p128
      %p130 = scmp.ne.s32.totalorder %s119, %s122
      %p131 = scmp.eq.s32.totalorder %s24, 1
      %p132 = por %p130, %p131
      %p133 = scmp.ne.s32.totalorder %s122, %s123
      %p134 = scmp.eq.s32.totalorder %s24, 0
      %p135 = por %p133, %p134
      %p136 = scmp.ne.s32.totalorder %s122, %s123
      %p137 = scmp.eq.s32.totalorder %s25, 1
      %p138 = por %p136, %p137
      %p140 = scmp.ne.s32.totalorder %s123, %s139
      %p141 = scmp.eq.s32.totalorder %s25, 0
      %p142 = por %p140, %p141
      %s143 = ssub.s32 %s27, %s34
      %p144 = scmp.eq.s32.totalorder %s143, 0
      %s146 = sadd.s32 %s145, 1
      %s147 = scalar_select %p144, %s145, %s146
      %p150 = pneg %p144
      %p151 = scmp.eq.s32.totalorder %s19, 1
      %p152 = por %p150, %p151
      %p153 = scmp.ne.s32.totalorder %s145, %s148
      %p154 = scmp.eq.s32.totalorder %s19, 0
      %p155 = por %p153, %p154
      %p156 = scmp.ne.s32.totalorder %s145, %s148
      %p157 = scmp.eq.s32.totalorder %s24, 1
      %p158 = por %p156, %p157
      %p159 = scmp.ne.s32.totalorder %s148, %s149
      %p160 = scmp.eq.s32.totalorder %s24, 0
      %p161 = por %p159, %p160
      %p162 = scmp.ne.s32.totalorder %s148, %s149
      %p163 = scmp.eq.s32.totalorder %s25, 1
      %p164 = por %p162, %p163
      %p166 = scmp.ne.s32.totalorder %s149, %s165
      %p167 = scmp.eq.s32.totalorder %s25, 0
      %p168 = por %p166, %p167
      %s169 = ssub.s32 %s26, %s38
      %s170 = ssub.s32 %s27, %s34
      %s171 = sor.u32 %s169, %s170
      %p172 = scmp.eq.s32.totalorder %s171, 0
      %s174 = sadd.s32 %s173, 1
      %s175 = scalar_select %p172, %s173, %s174
      %p178 = pneg %p172
      %p179 = scmp.eq.s32.totalorder %s19, 1
      %p180 = por %p178, %p179
      %p181 = scmp.ne.s32.totalorder %s173, %s176
      %p182 = scmp.eq.s32.totalorder %s19, 0
      %p183 = por %p181, %p182
      %p184 = scmp.ne.s32.totalorder %s173, %s176
      %p185 = scmp.eq.s32.totalorder %s24, 1
      %p186 = por %p184, %p185
      %p187 = scmp.ne.s32.totalorder %s176, %s177
      %p188 = scmp.eq.s32.totalorder %s24, 0
      %p189 = por %p187, %p188
      %p190 = scmp.ne.s32.totalorder %s176, %s177
      %p191 = scmp.eq.s32.totalorder %s25, 1
      %p192 = por %p190, %p191
      %p194 = scmp.ne.s32.totalorder %s177, %s193
      %p195 = scmp.eq.s32.totalorder %s25, 0
      %p196 = por %p194, %p195
      %s197 = ssub.s32 %s26, %s38
      %s198 = ssub.s32 %s27, %s34
      %s199 = sor.u32 %s197, %s198
      %p200 = scmp.eq.s32.totalorder %s199, 0
      %s202 = sadd.s32 %s201, 1
      %s203 = scalar_select %p200, %s201, %s202
      %p206 = pneg %p200
      %p207 = scmp.eq.s32.totalorder %s19, 1
      %p208 = por %p206, %p207
      %p209 = scmp.ne.s32.totalorder %s201, %s204
      %p210 = scmp.eq.s32.totalorder %s19, 0
      %p211 = por %p209, %p210
      %p212 = scmp.ne.s32.totalorder %s201, %s204
      %p213 = scmp.eq.s32.totalorder %s24, 1
      %p214 = por %p212, %p213
      %p215 = scmp.ne.s32.totalorder %s204, %s205
      %p216 = scmp.eq.s32.totalorder %s24, 0
      %p217 = por %p215, %p216
      %p218 = scmp.ne.s32.totalorder %s204, %s205
      %p219 = scmp.eq.s32.totalorder %s25, 1
      %p220 = por %p218, %p219
      %p222 = scmp.ne.s32.totalorder %s205, %s221
      %p223 = scmp.eq.s32.totalorder %s25, 0
      %p224 = por %p222, %p223
      %p225 = scmp.le.s32.totalorder 1, %s19
      %p226 = scmp.lt.s32.totalorder %s19, 3
      %p227 = pnand %p225, %p226
      %p228 = pneg %p227
      // Predicated region
      $region9: #{tpu_custom_call.1} parent=5 // pred_check
        _
      $region10: #{tpu_custom_call.1} parent=5 // pred_check_branch
        %230 = sbr.rel (%p227) target = $region12
      $region11: #{tpu_custom_call.1} parent=5 // pred_region
        %s231 = ssub.s32 %s19, 1
        // Predicated region
        $region13: #{tpu_custom_call.1} parent=11 // pred_check
          %p232 = pneg %p83
        $region14: #{tpu_custom_call.1} parent=11 // pred_check_branch
          %234 = sbr.rel (%p232) target = $region16
        $region15: #{tpu_custom_call.1} parent=11 // pred_region
          %p235 = scmp.lt.s32.totalorder %s29, 0
          %s236 = scalar_select %p235, %s29, 0
          %s237 = smul.addr %s236, 4
          %s238 = scalar_lea.vmem %s1, %s237
        $region16: #{tpu_custom_call.1} parent=11 // pred_fallthru
          _
        // Predicated region
        $region17: #{tpu_custom_call.1} parent=11 // pred_check
          %p239 = pneg %p109
        $region18: #{tpu_custom_call.1} parent=11 // pred_check_branch
          %241 = sbr.rel (%p239) target = $region20
        $region19: #{tpu_custom_call.1} parent=11 // pred_region
          %p242 = scmp.lt.s32.totalorder %s29, 0
          %s243 = scalar_select %p242, %s29, 0
          %s244 = scalar_lea.vmem %s2, %s243
        $region20: #{tpu_custom_call.1} parent=11 // pred_fallthru
          _
        // Predicated region
        $region21: #{tpu_custom_call.1} parent=11 // pred_check
          %p245 = pneg %p135
        $region22: #{tpu_custom_call.1} parent=11 // pred_check_branch
          %247 = sbr.rel (%p245) target = $region24
        $region23: #{tpu_custom_call.1} parent=11 // pred_region
          %p248 = scmp.lt.s32.totalorder %s29, 0
          %s249 = scalar_select %p248, %s29, 0
          %s250 = smul.addr %s249, 8
          %s251 = scalar_lea.vmem %s3, %s250
        $region24: #{tpu_custom_call.1} parent=11 // pred_fallthru
          _
        // Predicated region
        $region25: #{tpu_custom_call.1} parent=11 // pred_check
          %p252 = pneg %p161
        $region26: #{tpu_custom_call.1} parent=11 // pred_check_branch
          %254 = sbr.rel (%p252) target = $region28
        $region27: #{tpu_custom_call.1} parent=11 // pred_region
          %p255 = scmp.lt.s32.totalorder %s29, 0
          %s256 = scalar_select %p255, %s29, 0
          %s257 = scalar_lea.vmem %s4, %s256
        $region28: #{tpu_custom_call.1} parent=11 // pred_fallthru
          _
      $region12: #{tpu_custom_call.1} parent=5 // pred_fallthru
        _
      %p258 = scmp.lt.s32.totalorder %s19, 2
      // Predicated region
      $region29: #{tpu_custom_call.1} parent=5 // pred_check
        %p259 = pneg %p258
      $region30: #{tpu_custom_call.1} parent=5 // pred_check_branch
        %261 = sbr.rel (%p259) target = $region32
      $region31: #{tpu_custom_call.1} parent=5 // pred_region
        // Predicated region
        $region33: #{tpu_custom_call.1} parent=31 // pred_check
          %p262 = pneg %p51
        $region34: #{tpu_custom_call.1} parent=31 // pred_check_branch
          %264 = sbr.rel (%p262) target = $region36
        $region35: #{tpu_custom_call.1} parent=31 // pred_region
          %p265 = scmp.lt.s32.totalorder %s26, 1
          %s266 = scalar_select %p265, %s26, 1
          %s267 = smul.addr %s266, 72
          %s268 = smul.addr %s267, 8
          %s269 = scalar_lea.vmem %s0, %s268
        $region36: #{tpu_custom_call.1} parent=31 // pred_fallthru
          _
      $region32: #{tpu_custom_call.1} parent=5 // pred_fallthru
        _
      %p270 = scmp.le.s32.totalorder 1, %s19
      %p271 = scmp.lt.s32.totalorder %s19, 3
      %p272 = pnand %p270, %p271
      %p273 = pneg %p272
      // Predicated region
      $region37: #{tpu_custom_call.1} parent=5 // pred_check
        _
      $region38: #{tpu_custom_call.1} parent=5 // pred_check_branch
        %275 = sbr.rel (%p272) target = $region40
      $region39: #{tpu_custom_call.1} parent=5 // pred_region
        %s276 = ssub.s32 %s19, 1
        %p277 = scmp.lt.s32.totalorder %s28, 1
        %s278 = scalar_select %p277, %s28, 1
        %s279 = smul.addr %s278, 72
        %s280 = smul.addr %s279, 8
        %s281 = scalar_lea.vmem %s0, %s280
        %p282 = pneg %p57
        %p283 = pneg %p54
        %p284 = scmp.lt.s32.totalorder %s29, 0
        %s285 = scalar_select %p284, %s29, 0
        %s286 = smul.addr %s285, 4
        %s287 = scalar_lea.vmem %s1, %s286
        %p288 = pneg %p83
        %p289 = pneg %p80
        %p290 = scmp.lt.s32.totalorder %s29, 0
        %s291 = scalar_select %p290, %s29, 0
        %s292 = scalar_lea.vmem %s2, %s291
        %p293 = pneg %p109
        %p294 = pneg %p106
        %p295 = scmp.lt.s32.totalorder %s29, 0
        %s296 = scalar_select %p295, %s29, 0
        %s297 = smul.addr %s296, 8
        %s298 = scalar_lea.vmem %s3, %s297
        %p299 = pneg %p135
        %p300 = pneg %p132
        %p301 = scmp.lt.s32.totalorder %s29, 0
        %s302 = scalar_select %p301, %s29, 0
        %s303 = scalar_lea.vmem %s4, %s302
        %p304 = pneg %p161
        %p305 = pneg %p158
        %p306 = pneg %p189
        %p307 = pneg %p186
        %s308 = sand.u32 %s176, 1
        %s309 = scalar_lea.sflag [#allocation3], %s308
        %s310 = sand.u32 %s176, 1
        %s311 = smul.addr %s310, 64
        %s312 = scalar_lea.vmem [#allocation2], %s311
        %p313 = pneg %p217
        %p314 = pneg %p214
        %s315 = sand.u32 %s204, 1
        %s316 = scalar_lea.sflag [#allocation5], %s315
        %s317 = sand.u32 %s204, 1
        %s318 = scalar_lea.vmem [#allocation4], %s317
        %p319 = scmp.lt.s32.totalorder %s28, 1
        %s320 = scalar_select %p319, %s28, 1
        %s321 = smul.addr %s320, 72
        %s322 = smul.addr %s321, 8
        %s323 = scalar_lea.vmem %s0, %s322
        %p324 = scmp.lt.s32.totalorder %s29, 0
        %s325 = scalar_select %p324, %s29, 0
        %s326 = smul.addr %s325, 4
        %s327 = scalar_lea.vmem %s1, %s326
        %p328 = scmp.lt.s32.totalorder %s29, 0
        %s329 = scalar_select %p328, %s29, 0
        %s330 = scalar_lea.vmem %s2, %s329
        %p331 = scmp.lt.s32.totalorder %s29, 0
        %s332 = scalar_select %p331, %s29, 0
        %s333 = smul.addr %s332, 8
        %s334 = scalar_lea.vmem %s3, %s333
        %p335 = scmp.lt.s32.totalorder %s29, 0
        %s336 = scalar_select %p335, %s29, 0
        %s337 = scalar_lea.vmem %s4, %s336
        %v338 = vld [vmem:[%s327] sm:$0xf]
        %v339 = vld [vmem:[%s330] sm:$0x1]
        %v340 = vld [vmem:[%s334] sm:$0xff]
        %v341 = vld [vmem:[%s334 + $0x8] sm:$0x1]
        %v342 = vld [vmem:[%s337] sm:$0x1]
        %v343 = vlaneseq
        %v344 = vshrl.u32 %v343, 7
        %v345 = vadd.s32 %v344, 8
        %vm346 = vcmp.eq.s32.totalorder %v344, 0
        %vm347 = vcmp.eq.s32.totalorder %v345, 0
        %vm348 = vmor 1, %vm346
        %vm349 = vmor 1, %vm347
        %vm350 = vmor 0, %vm346
        %vm351 = vmor 0, %vm347
        %v352 = vld [vmem:[%s323] sm:$0xff]
        %v353 = vld [vmem:[%s323 + $0x8] sm:$0xff]
        %v354 = vld [vmem:[%s323 + $0x10] sm:$0xff]
        %v355 = vld [vmem:[%s323 + $0x18] sm:$0xff]
        %v356 = vld [vmem:[%s323 + $0x20] sm:$0xff]
        %v357 = vld [vmem:[%s323 + $0x28] sm:$0xff]
        %v358 = vld [vmem:[%s323 + $0x30] sm:$0xff]
        %v359 = vld [vmem:[%s323 + $0x38] sm:$0xff]
        %v360 = vld [vmem:[%s323 + $0x40] sm:$0xff]
        %v361 = vld [vmem:[%s323 + $0x48] sm:$0xff]
        %v362 = vld [vmem:[%s323 + $0x50] sm:$0xff]
        %v363 = vld [vmem:[%s323 + $0x58] sm:$0xff]
        %v364 = vld [vmem:[%s323 + $0x60] sm:$0xff]
        %v365 = vld [vmem:[%s323 + $0x68] sm:$0xff]
        %v366 = vld [vmem:[%s323 + $0x70] sm:$0xff]
        %v367 = vld [vmem:[%s323 + $0x78] sm:$0xff]
        %v368 = vld [vmem:[%s323 + $0x80] sm:$0xff]
        %v369 = vld [vmem:[%s323 + $0x88] sm:$0xff]
        %v371 = vperm.slane %v339, 0
        %vm373 = vcmask 31744
        %v375 = vsel %vm373, %v352, 0
        %v378 = vsel %vm373, %v353, 0
        %v381 = vsel %vm373, %v354, 0
        %v384 = vsel %vm373, %v355, 0
        %v387 = vsel %vm373, %v356, 0
        %v390 = vsel %vm373, %v357, 0
        %v393 = vsel %vm373, %v358, 0
        %v396 = vsel %vm373, %v359, 0
        %v399 = vsel %vm373, %v360, 0
        %v402 = vsel %vm373, %v361, 0
        %v405 = vsel %vm373, %v362, 0
        %v408 = vsel %vm373, %v363, 0
        %v411 = vsel %vm373, %v364, 0
        %v414 = vsel %vm373, %v365, 0
        %v417 = vsel %vm373, %v366, 0
        %v420 = vsel %vm373, %v367, 0
        %v423 = vsel %vm373, %v368, 0
        %v426 = vsel %vm373, %v369, 0
        %vm428 = vcmask 1043456
        %v430 = vsel %vm428, %v338, 0
        %432 = vmatpush.msra.mxu0 0.0
        %433 = vmatpush.msra.mxu0 0.0
        %434 = vmatpush.msra.mxu0 0.0
        %435 = vmatpush.msra.mxu0 0.0
        %436 = vmatpush.msra.mxu0 0.0
        %437 = vmatpush.msra.mxu0 0.0
        %438 = vmatpush.msra.mxu0 0.0
        %439 = vmatpush.msra.mxu0 0.0
        %440 = vmatpush.msra.mxu0 0.0
        %441 = vmatpush.msra.mxu0 0.0
        %442 = vmatpush.msra.mxu0 0.0
        %443 = vmatpush.msra.mxu0 0.0
        %444 = vmatpush.msra.mxu0 0.0
        %445 = vmatpush.msra.mxu0 0.0
        %446 = vmatpush.msra.mxu0 0.0
        %v447 = vand.u32 %v430, 4294901760
        %448 = vmatpush.msra.mxu0 %v447
        %v449 = vand.u32 %v375, 4294901760
        %v450 = vsub.f32 %v375, %v449
        %v451 = vand.u32 %v450, 4294901760
        %v452 = vsub.f32 %v450, %v451
        %v453 = vand.u32 %v452, 4294901760
        %454 = vmatmul.f32.gmra.mxu0 %v453
        %v455 = vpop.f32.mrf.mxu0
        %v456 = vadd.f32 %v371, %v455
        %v457 = vand.u32 %v378, 4294901760
        %v458 = vsub.f32 %v378, %v457
        %v459 = vand.u32 %v458, 4294901760
        %v460 = vsub.f32 %v458, %v459
        %v461 = vand.u32 %v460, 4294901760
        %462 = vmatmul.f32.gmra.mxu0 %v461
        %v463 = vpop.f32.mrf.mxu0
        %v464 = vadd.f32 %v371, %v463
        %v465 = vand.u32 %v381, 4294901760
        %v466 = vsub.f32 %v381, %v465
        %v467 = vand.u32 %v466, 4294901760
        %v468 = vsub.f32 %v466, %v467
        %v469 = vand.u32 %v468, 4294901760
        %470 = vmatmul.f32.gmra.mxu0 %v469
        %v471 = vpop.f32.mrf.mxu0
        %v472 = vadd.f32 %v371, %v471
        %v473 = vand.u32 %v384, 4294901760
        %v474 = vsub.f32 %v384, %v473
        %v475 = vand.u32 %v474, 4294901760
        %v476 = vsub.f32 %v474, %v475
        %v477 = vand.u32 %v476, 4294901760
        %478 = vmatmul.f32.gmra.mxu0 %v477
        %v479 = vpop.f32.mrf.mxu0
        %v480 = vadd.f32 %v371, %v479
        %v481 = vand.u32 %v387, 4294901760
        %v482 = vsub.f32 %v387, %v481
        %v483 = vand.u32 %v482, 4294901760
        %v484 = vsub.f32 %v482, %v483
        %v485 = vand.u32 %v484, 4294901760
        %486 = vmatmul.f32.gmra.mxu0 %v485
        %v487 = vpop.f32.mrf.mxu0
        %v488 = vadd.f32 %v371, %v487
        %v489 = vand.u32 %v390, 4294901760
        %v490 = vsub.f32 %v390, %v489
        %v491 = vand.u32 %v490, 4294901760
        %v492 = vsub.f32 %v490, %v491
        %v493 = vand.u32 %v492, 4294901760
        %494 = vmatmul.f32.gmra.mxu0 %v493
        %v495 = vpop.f32.mrf.mxu0
        %v496 = vadd.f32 %v371, %v495
        %v497 = vand.u32 %v393, 4294901760
        %v498 = vsub.f32 %v393, %v497
        %v499 = vand.u32 %v498, 4294901760
        %v500 = vsub.f32 %v498, %v499
        %v501 = vand.u32 %v500, 4294901760
        %502 = vmatmul.f32.gmra.mxu0 %v501
        %v503 = vpop.f32.mrf.mxu0
        %v504 = vadd.f32 %v371, %v503
        %v505 = vand.u32 %v396, 4294901760
        %v506 = vsub.f32 %v396, %v505
        %v507 = vand.u32 %v506, 4294901760
        %v508 = vsub.f32 %v506, %v507
        %v509 = vand.u32 %v508, 4294901760
        %510 = vmatmul.f32.gmra.mxu0 %v509
        %v511 = vpop.f32.mrf.mxu0
        %v512 = vadd.f32 %v371, %v511
        %v513 = vand.u32 %v399, 4294901760
        %v514 = vsub.f32 %v399, %v513
        %v515 = vand.u32 %v514, 4294901760
        %v516 = vsub.f32 %v514, %v515
        %v517 = vand.u32 %v516, 4294901760
        %518 = vmatmul.f32.gmra.mxu0 %v517
        %v519 = vpop.f32.mrf.mxu0
        %v520 = vadd.f32 %v371, %v519
        %v521 = vand.u32 %v402, 4294901760
        %v522 = vsub.f32 %v402, %v521
        %v523 = vand.u32 %v522, 4294901760
        %v524 = vsub.f32 %v522, %v523
        %v525 = vand.u32 %v524, 4294901760
        %526 = vmatmul.f32.gmra.mxu0 %v525
        %v527 = vpop.f32.mrf.mxu0
        %v528 = vadd.f32 %v371, %v527
        %v529 = vand.u32 %v405, 4294901760
        %v530 = vsub.f32 %v405, %v529
        %v531 = vand.u32 %v530, 4294901760
        %v532 = vsub.f32 %v530, %v531
        %v533 = vand.u32 %v532, 4294901760
        %534 = vmatmul.f32.gmra.mxu0 %v533
        %v535 = vpop.f32.mrf.mxu0
        %v536 = vadd.f32 %v371, %v535
        %v537 = vand.u32 %v408, 4294901760
        %v538 = vsub.f32 %v408, %v537
        %v539 = vand.u32 %v538, 4294901760
        %v540 = vsub.f32 %v538, %v539
        %v541 = vand.u32 %v540, 4294901760
        %542 = vmatmul.f32.gmra.mxu0 %v541
        %v543 = vpop.f32.mrf.mxu0
        %v544 = vadd.f32 %v371, %v543
        %v545 = vand.u32 %v411, 4294901760
        %v546 = vsub.f32 %v411, %v545
        %v547 = vand.u32 %v546, 4294901760
        %v548 = vsub.f32 %v546, %v547
        %v549 = vand.u32 %v548, 4294901760
        %550 = vmatmul.f32.gmra.mxu0 %v549
        %v551 = vpop.f32.mrf.mxu0
        %v552 = vadd.f32 %v371, %v551
        %v553 = vand.u32 %v414, 4294901760
        %v554 = vsub.f32 %v414, %v553
        %v555 = vand.u32 %v554, 4294901760
        %v556 = vsub.f32 %v554, %v555
        %v557 = vand.u32 %v556, 4294901760
        %558 = vmatmul.f32.gmra.mxu0 %v557
        %v559 = vpop.f32.mrf.mxu0
        %v560 = vadd.f32 %v371, %v559
        %v561 = vand.u32 %v417, 4294901760
        %v562 = vsub.f32 %v417, %v561
        %v563 = vand.u32 %v562, 4294901760
        %v564 = vsub.f32 %v562, %v563
        %v565 = vand.u32 %v564, 4294901760
        %566 = vmatmul.f32.gmra.mxu0 %v565
        %v567 = vpop.f32.mrf.mxu0
        %v568 = vadd.f32 %v371, %v567
        %v569 = vand.u32 %v420, 4294901760
        %v570 = vsub.f32 %v420, %v569
        %v571 = vand.u32 %v570, 4294901760
        %v572 = vsub.f32 %v570, %v571
        %v573 = vand.u32 %v572, 4294901760
        %574 = vmatmul.f32.gmra.mxu0 %v573
        %v575 = vpop.f32.mrf.mxu0
        %v576 = vadd.f32 %v371, %v575
        %v577 = vand.u32 %v423, 4294901760
        %v578 = vsub.f32 %v423, %v577
        %v579 = vand.u32 %v578, 4294901760
        %v580 = vsub.f32 %v578, %v579
        %v581 = vand.u32 %v580, 4294901760
        %582 = vmatmul.f32.gmra.mxu0 %v581
        %v583 = vpop.f32.mrf.mxu0
        %v584 = vadd.f32 %v371, %v583
        %v585 = vand.u32 %v426, 4294901760
        %v586 = vsub.f32 %v426, %v585
        %v587 = vand.u32 %v586, 4294901760
        %v588 = vsub.f32 %v586, %v587
        %v589 = vand.u32 %v588, 4294901760
        %590 = vmatmul.f32.gmra.mxu0 %v589
        %v591 = vpop.f32.mrf.mxu0
        %v592 = vadd.f32 %v371, %v591
        %593 = vdwg.mxu0
        %594 = vmatpush.msra.mxu0 0.0
        %595 = vmatpush.msra.mxu0 0.0
        %596 = vmatpush.msra.mxu0 0.0
        %597 = vmatpush.msra.mxu0 0.0
        %598 = vmatpush.msra.mxu0 0.0
        %599 = vmatpush.msra.mxu0 0.0
        %600 = vmatpush.msra.mxu0 0.0
        %601 = vmatpush.msra.mxu0 0.0
        %602 = vmatpush.msra.mxu0 0.0
        %603 = vmatpush.msra.mxu0 0.0
        %604 = vmatpush.msra.mxu0 0.0
        %605 = vmatpush.msra.mxu0 0.0
        %606 = vmatpush.msra.mxu0 0.0
        %607 = vmatpush.msra.mxu0 0.0
        %608 = vmatpush.msra.mxu0 0.0
        %v609 = vand.u32 %v430, 4294901760
        %v610 = vsub.f32 %v430, %v609
        %v611 = vand.u32 %v610, 4294901760
        %v612 = vsub.f32 %v610, %v611
        %v613 = vand.u32 %v612, 4294901760
        %614 = vmatpush.msra.mxu0 %v613
        %v615 = vand.u32 %v375, 4294901760
        %616 = vmatmul.f32.gmra.mxu0 %v615
        %v617 = vpop.f32.mrf.mxu0
        %v618 = vadd.f32 %v456, %v617
        %v619 = vand.u32 %v378, 4294901760
        %620 = vmatmul.f32.gmra.mxu0 %v619
        %v621 = vpop.f32.mrf.mxu0
        %v622 = vadd.f32 %v464, %v621
        %v623 = vand.u32 %v381, 4294901760
        %624 = vmatmul.f32.gmra.mxu0 %v623
        %v625 = vpop.f32.mrf.mxu0
        %v626 = vadd.f32 %v472, %v625
        %v627 = vand.u32 %v384, 4294901760
        %628 = vmatmul.f32.gmra.mxu0 %v627
        %v629 = vpop.f32.mrf.mxu0
        %v630 = vadd.f32 %v480, %v629
        %v631 = vand.u32 %v387, 4294901760
        %632 = vmatmul.f32.gmra.mxu0 %v631
        %v633 = vpop.f32.mrf.mxu0
        %v634 = vadd.f32 %v488, %v633
        %v635 = vand.u32 %v390, 4294901760
        %636 = vmatmul.f32.gmra.mxu0 %v635
        %v637 = vpop.f32.mrf.mxu0
        %v638 = vadd.f32 %v496, %v637
        %v639 = vand.u32 %v393, 4294901760
        %640 = vmatmul.f32.gmra.mxu0 %v639
        %v641 = vpop.f32.mrf.mxu0
        %v642 = vadd.f32 %v504, %v641
        %v643 = vand.u32 %v396, 4294901760
        %644 = vmatmul.f32.gmra.mxu0 %v643
        %v645 = vpop.f32.mrf.mxu0
        %v646 = vadd.f32 %v512, %v645
        %v647 = vand.u32 %v399, 4294901760
        %648 = vmatmul.f32.gmra.mxu0 %v647
        %v649 = vpop.f32.mrf.mxu0
        %v650 = vadd.f32 %v520, %v649
        %v651 = vand.u32 %v402, 4294901760
        %652 = vmatmul.f32.gmra.mxu0 %v651
        %v653 = vpop.f32.mrf.mxu0
        %v654 = vadd.f32 %v528, %v653
        %v655 = vand.u32 %v405, 4294901760
        %656 = vmatmul.f32.gmra.mxu0 %v655
        %v657 = vpop.f32.mrf.mxu0
        %v658 = vadd.f32 %v536, %v657
        %v659 = vand.u32 %v408, 4294901760
        %660 = vmatmul.f32.gmra.mxu0 %v659
        %v661 = vpop.f32.mrf.mxu0
        %v662 = vadd.f32 %v544, %v661
        %v663 = vand.u32 %v411, 4294901760
        %664 = vmatmul.f32.gmra.mxu0 %v663
        %v665 = vpop.f32.mrf.mxu0
        %v666 = vadd.f32 %v552, %v665
        %v667 = vand.u32 %v414, 4294901760
        %668 = vmatmul.f32.gmra.mxu0 %v667
        %v669 = vpop.f32.mrf.mxu0
        %v670 = vadd.f32 %v560, %v669
        %v671 = vand.u32 %v417, 4294901760
        %672 = vmatmul.f32.gmra.mxu0 %v671
        %v673 = vpop.f32.mrf.mxu0
        %v674 = vadd.f32 %v568, %v673
        %v675 = vand.u32 %v420, 4294901760
        %676 = vmatmul.f32.gmra.mxu0 %v675
        %v677 = vpop.f32.mrf.mxu0
        %v678 = vadd.f32 %v576, %v677
        %v679 = vand.u32 %v423, 4294901760
        %680 = vmatmul.f32.gmra.mxu0 %v679
        %v681 = vpop.f32.mrf.mxu0
        %v682 = vadd.f32 %v584, %v681
        %v683 = vand.u32 %v426, 4294901760
        %684 = vmatmul.f32.gmra.mxu0 %v683
        %v685 = vpop.f32.mrf.mxu0
        %v686 = vadd.f32 %v592, %v685
        %687 = vdwg.mxu0
        %688 = vmatpush.msra.mxu0 0.0
        %689 = vmatpush.msra.mxu0 0.0
        %690 = vmatpush.msra.mxu0 0.0
        %691 = vmatpush.msra.mxu0 0.0
        %692 = vmatpush.msra.mxu0 0.0
        %693 = vmatpush.msra.mxu0 0.0
        %694 = vmatpush.msra.mxu0 0.0
        %695 = vmatpush.msra.mxu0 0.0
        %696 = vmatpush.msra.mxu0 0.0
        %697 = vmatpush.msra.mxu0 0.0
        %698 = vmatpush.msra.mxu0 0.0
        %699 = vmatpush.msra.mxu0 0.0
        %700 = vmatpush.msra.mxu0 0.0
        %701 = vmatpush.msra.mxu0 0.0
        %702 = vmatpush.msra.mxu0 0.0
        %v703 = vand.u32 %v430, 4294901760
        %v704 = vsub.f32 %v430, %v703
        %705 = vmatpush.msra.mxu0 %v704
        %v706 = vand.u32 %v375, 4294901760
        %v707 = vsub.f32 %v375, %v706
        %708 = vmatmul.f32.gmra.mxu0 %v707
        %v709 = vpop.f32.mrf.mxu0
        %v710 = vadd.f32 %v618, %v709
        %v711 = vand.u32 %v378, 4294901760
        %v712 = vsub.f32 %v378, %v711
        %713 = vmatmul.f32.gmra.mxu0 %v712
        %v714 = vpop.f32.mrf.mxu0
        %v715 = vadd.f32 %v622, %v714
        %v716 = vand.u32 %v381, 4294901760
        %v717 = vsub.f32 %v381, %v716
        %718 = vmatmul.f32.gmra.mxu0 %v717
        %v719 = vpop.f32.mrf.mxu0
        %v720 = vadd.f32 %v626, %v719
        %v721 = vand.u32 %v384, 4294901760
        %v722 = vsub.f32 %v384, %v721
        %723 = vmatmul.f32.gmra.mxu0 %v722
        %v724 = vpop.f32.mrf.mxu0
        %v725 = vadd.f32 %v630, %v724
        %v726 = vand.u32 %v387, 4294901760
        %v727 = vsub.f32 %v387, %v726
        %728 = vmatmul.f32.gmra.mxu0 %v727
        %v729 = vpop.f32.mrf.mxu0
        %v730 = vadd.f32 %v634, %v729
        %v731 = vand.u32 %v390, 4294901760
        %v732 = vsub.f32 %v390, %v731
        %733 = vmatmul.f32.gmra.mxu0 %v732
        %v734 = vpop.f32.mrf.mxu0
        %v735 = vadd.f32 %v638, %v734
        %v736 = vand.u32 %v393, 4294901760
        %v737 = vsub.f32 %v393, %v736
        %738 = vmatmul.f32.gmra.mxu0 %v737
        %v739 = vpop.f32.mrf.mxu0
        %v740 = vadd.f32 %v642, %v739
        %v741 = vand.u32 %v396, 4294901760
        %v742 = vsub.f32 %v396, %v741
        %743 = vmatmul.f32.gmra.mxu0 %v742
        %v744 = vpop.f32.mrf.mxu0
        %v745 = vadd.f32 %v646, %v744
        %v746 = vand.u32 %v399, 4294901760
        %v747 = vsub.f32 %v399, %v746
        %748 = vmatmul.f32.gmra.mxu0 %v747
        %v749 = vpop.f32.mrf.mxu0
        %v750 = vadd.f32 %v650, %v749
        %v751 = vand.u32 %v402, 4294901760
        %v752 = vsub.f32 %v402, %v751
        %753 = vmatmul.f32.gmra.mxu0 %v752
        %v754 = vpop.f32.mrf.mxu0
        %v755 = vadd.f32 %v654, %v754
        %v756 = vand.u32 %v405, 4294901760
        %v757 = vsub.f32 %v405, %v756
        %758 = vmatmul.f32.gmra.mxu0 %v757
        %v759 = vpop.f32.mrf.mxu0
        %v760 = vadd.f32 %v658, %v759
        %v761 = vand.u32 %v408, 4294901760
        %v762 = vsub.f32 %v408, %v761
        %763 = vmatmul.f32.gmra.mxu0 %v762
        %v764 = vpop.f32.mrf.mxu0
        %v765 = vadd.f32 %v662, %v764
        %v766 = vand.u32 %v411, 4294901760
        %v767 = vsub.f32 %v411, %v766
        %768 = vmatmul.f32.gmra.mxu0 %v767
        %v769 = vpop.f32.mrf.mxu0
        %v770 = vadd.f32 %v666, %v769
        %v771 = vand.u32 %v414, 4294901760
        %v772 = vsub.f32 %v414, %v771
        %773 = vmatmul.f32.gmra.mxu0 %v772
        %v774 = vpop.f32.mrf.mxu0
        %v775 = vadd.f32 %v670, %v774
        %v776 = vand.u32 %v417, 4294901760
        %v777 = vsub.f32 %v417, %v776
        %778 = vmatmul.f32.gmra.mxu0 %v777
        %v779 = vpop.f32.mrf.mxu0
        %v780 = vadd.f32 %v674, %v779
        %v781 = vand.u32 %v420, 4294901760
        %v782 = vsub.f32 %v420, %v781
        %783 = vmatmul.f32.gmra.mxu0 %v782
        %v784 = vpop.f32.mrf.mxu0
        %v785 = vadd.f32 %v678, %v784
        %v786 = vand.u32 %v423, 4294901760
        %v787 = vsub.f32 %v423, %v786
        %788 = vmatmul.f32.gmra.mxu0 %v787
        %v789 = vpop.f32.mrf.mxu0
        %v790 = vadd.f32 %v682, %v789
        %v791 = vand.u32 %v426, 4294901760
        %v792 = vsub.f32 %v426, %v791
        %793 = vmatmul.f32.gmra.mxu0 %v792
        %v794 = vpop.f32.mrf.mxu0
        %v795 = vadd.f32 %v686, %v794
        %796 = vdwg.mxu0
        %797 = vmatpush.msra.mxu0 0.0
        %798 = vmatpush.msra.mxu0 0.0
        %799 = vmatpush.msra.mxu0 0.0
        %800 = vmatpush.msra.mxu0 0.0
        %801 = vmatpush.msra.mxu0 0.0
        %802 = vmatpush.msra.mxu0 0.0
        %803 = vmatpush.msra.mxu0 0.0
        %804 = vmatpush.msra.mxu0 0.0
        %805 = vmatpush.msra.mxu0 0.0
        %806 = vmatpush.msra.mxu0 0.0
        %807 = vmatpush.msra.mxu0 0.0
        %808 = vmatpush.msra.mxu0 0.0
        %809 = vmatpush.msra.mxu0 0.0
        %810 = vmatpush.msra.mxu0 0.0
        %811 = vmatpush.msra.mxu0 0.0
        %v812 = vand.u32 %v430, 4294901760
        %813 = vmatpush.msra.mxu0 %v812
        %v814 = vand.u32 %v375, 4294901760
        %v815 = vsub.f32 %v375, %v814
        %v816 = vand.u32 %v815, 4294901760
        %817 = vmatmul.f32.gmra.mxu0 %v816
        %v818 = vpop.f32.mrf.mxu0
        %v819 = vadd.f32 %v710, %v818
        %v820 = vand.u32 %v378, 4294901760
        %v821 = vsub.f32 %v378, %v820
        %v822 = vand.u32 %v821, 4294901760
        %823 = vmatmul.f32.gmra.mxu0 %v822
        %v824 = vpop.f32.mrf.mxu0
        %v825 = vadd.f32 %v715, %v824
        %v826 = vand.u32 %v381, 4294901760
        %v827 = vsub.f32 %v381, %v826
        %v828 = vand.u32 %v827, 4294901760
        %829 = vmatmul.f32.gmra.mxu0 %v828
        %v830 = vpop.f32.mrf.mxu0
        %v831 = vadd.f32 %v720, %v830
        %v832 = vand.u32 %v384, 4294901760
        %v833 = vsub.f32 %v384, %v832
        %v834 = vand.u32 %v833, 4294901760
        %835 = vmatmul.f32.gmra.mxu0 %v834
        %v836 = vpop.f32.mrf.mxu0
        %v837 = vadd.f32 %v725, %v836
        %v838 = vand.u32 %v387, 4294901760
        %v839 = vsub.f32 %v387, %v838
        %v840 = vand.u32 %v839, 4294901760
        %841 = vmatmul.f32.gmra.mxu0 %v840
        %v842 = vpop.f32.mrf.mxu0
        %v843 = vadd.f32 %v730, %v842
        %v844 = vand.u32 %v390, 4294901760
        %v845 = vsub.f32 %v390, %v844
        %v846 = vand.u32 %v845, 4294901760
        %847 = vmatmul.f32.gmra.mxu0 %v846
        %v848 = vpop.f32.mrf.mxu0
        %v849 = vadd.f32 %v735, %v848
        %v850 = vand.u32 %v393, 4294901760
        %v851 = vsub.f32 %v393, %v850
        %v852 = vand.u32 %v851, 4294901760
        %853 = vmatmul.f32.gmra.mxu0 %v852
        %v854 = vpop.f32.mrf.mxu0
        %v855 = vadd.f32 %v740, %v854
        %v856 = vand.u32 %v396, 4294901760
        %v857 = vsub.f32 %v396, %v856
        %v858 = vand.u32 %v857, 4294901760
        %859 = vmatmul.f32.gmra.mxu0 %v858
        %v860 = vpop.f32.mrf.mxu0
        %v861 = vadd.f32 %v745, %v860
        %v862 = vand.u32 %v399, 4294901760
        %v863 = vsub.f32 %v399, %v862
        %v864 = vand.u32 %v863, 4294901760
        %865 = vmatmul.f32.gmra.mxu0 %v864
        %v866 = vpop.f32.mrf.mxu0
        %v867 = vadd.f32 %v750, %v866
        %v868 = vand.u32 %v402, 4294901760
        %v869 = vsub.f32 %v402, %v868
        %v870 = vand.u32 %v869, 4294901760
        %871 = vmatmul.f32.gmra.mxu0 %v870
        %v872 = vpop.f32.mrf.mxu0
        %v873 = vadd.f32 %v755, %v872
        %v874 = vand.u32 %v405, 4294901760
        %v875 = vsub.f32 %v405, %v874
        %v876 = vand.u32 %v875, 4294901760
        %877 = vmatmul.f32.gmra.mxu0 %v876
        %v878 = vpop.f32.mrf.mxu0
        %v879 = vadd.f32 %v760, %v878
        %v880 = vand.u32 %v408, 4294901760
        %v881 = vsub.f32 %v408, %v880
        %v882 = vand.u32 %v881, 4294901760
        %883 = vmatmul.f32.gmra.mxu0 %v882
        %v884 = vpop.f32.mrf.mxu0
        %v885 = vadd.f32 %v765, %v884
        %v886 = vand.u32 %v411, 4294901760
        %v887 = vsub.f32 %v411, %v886
        %v888 = vand.u32 %v887, 4294901760
        %889 = vmatmul.f32.gmra.mxu0 %v888
        %v890 = vpop.f32.mrf.mxu0
        %v891 = vadd.f32 %v770, %v890
        %v892 = vand.u32 %v414, 4294901760
        %v893 = vsub.f32 %v414, %v892
        %v894 = vand.u32 %v893, 4294901760
        %895 = vmatmul.f32.gmra.mxu0 %v894
        %v896 = vpop.f32.mrf.mxu0
        %v897 = vadd.f32 %v775, %v896
        %v898 = vand.u32 %v417, 4294901760
        %v899 = vsub.f32 %v417, %v898
        %v900 = vand.u32 %v899, 4294901760
        %901 = vmatmul.f32.gmra.mxu0 %v900
        %v902 = vpop.f32.mrf.mxu0
        %v903 = vadd.f32 %v780, %v902
        %v904 = vand.u32 %v420, 4294901760
        %v905 = vsub.f32 %v420, %v904
        %v906 = vand.u32 %v905, 4294901760
        %907 = vmatmul.f32.gmra.mxu0 %v906
        %v908 = vpop.f32.mrf.mxu0
        %v909 = vadd.f32 %v785, %v908
        %v910 = vand.u32 %v423, 4294901760
        %v911 = vsub.f32 %v423, %v910
        %v912 = vand.u32 %v911, 4294901760
        %913 = vmatmul.f32.gmra.mxu0 %v912
        %v914 = vpop.f32.mrf.mxu0
        %v915 = vadd.f32 %v790, %v914
        %v916 = vand.u32 %v426, 4294901760
        %v917 = vsub.f32 %v426, %v916
        %v918 = vand.u32 %v917, 4294901760
        %919 = vmatmul.f32.gmra.mxu0 %v918
        %v920 = vpop.f32.mrf.mxu0
        %v921 = vadd.f32 %v795, %v920
        %922 = vdwg.mxu0
        %923 = vmatpush.msra.mxu0 0.0
        %924 = vmatpush.msra.mxu0 0.0
        %925 = vmatpush.msra.mxu0 0.0
        %926 = vmatpush.msra.mxu0 0.0
        %927 = vmatpush.msra.mxu0 0.0
        %928 = vmatpush.msra.mxu0 0.0
        %929 = vmatpush.msra.mxu0 0.0
        %930 = vmatpush.msra.mxu0 0.0
        %931 = vmatpush.msra.mxu0 0.0
        %932 = vmatpush.msra.mxu0 0.0
        %933 = vmatpush.msra.mxu0 0.0
        %934 = vmatpush.msra.mxu0 0.0
        %935 = vmatpush.msra.mxu0 0.0
        %936 = vmatpush.msra.mxu0 0.0
        %937 = vmatpush.msra.mxu0 0.0
        %v938 = vand.u32 %v430, 4294901760
        %v939 = vsub.f32 %v430, %v938
        %v940 = vand.u32 %v939, 4294901760
        %941 = vmatpush.msra.mxu0 %v940
        %v942 = vand.u32 %v375, 4294901760
        %943 = vmatmul.f32.gmra.mxu0 %v942
        %v944 = vpop.f32.mrf.mxu0
        %v945 = vadd.f32 %v819, %v944
        %v946 = vand.u32 %v378, 4294901760
        %947 = vmatmul.f32.gmra.mxu0 %v946
        %v948 = vpop.f32.mrf.mxu0
        %v949 = vadd.f32 %v825, %v948
        %v950 = vand.u32 %v381, 4294901760
        %951 = vmatmul.f32.gmra.mxu0 %v950
        %v952 = vpop.f32.mrf.mxu0
        %v953 = vadd.f32 %v831, %v952
        %v954 = vand.u32 %v384, 4294901760
        %955 = vmatmul.f32.gmra.mxu0 %v954
        %v956 = vpop.f32.mrf.mxu0
        %v957 = vadd.f32 %v837, %v956
        %v958 = vand.u32 %v387, 4294901760
        %959 = vmatmul.f32.gmra.mxu0 %v958
        %v960 = vpop.f32.mrf.mxu0
        %v961 = vadd.f32 %v843, %v960
        %v962 = vand.u32 %v390, 4294901760
        %963 = vmatmul.f32.gmra.mxu0 %v962
        %v964 = vpop.f32.mrf.mxu0
        %v965 = vadd.f32 %v849, %v964
        %v966 = vand.u32 %v393, 4294901760
        %967 = vmatmul.f32.gmra.mxu0 %v966
        %v968 = vpop.f32.mrf.mxu0
        %v969 = vadd.f32 %v855, %v968
        %v970 = vand.u32 %v396, 4294901760
        %971 = vmatmul.f32.gmra.mxu0 %v970
        %v972 = vpop.f32.mrf.mxu0
        %v973 = vadd.f32 %v861, %v972
        %v974 = vand.u32 %v399, 4294901760
        %975 = vmatmul.f32.gmra.mxu0 %v974
        %v976 = vpop.f32.mrf.mxu0
        %v977 = vadd.f32 %v867, %v976
        %v978 = vand.u32 %v402, 4294901760
        %979 = vmatmul.f32.gmra.mxu0 %v978
        %v980 = vpop.f32.mrf.mxu0
        %v981 = vadd.f32 %v873, %v980
        %v982 = vand.u32 %v405, 4294901760
        %983 = vmatmul.f32.gmra.mxu0 %v982
        %v984 = vpop.f32.mrf.mxu0
        %v985 = vadd.f32 %v879, %v984
        %v986 = vand.u32 %v408, 4294901760
        %987 = vmatmul.f32.gmra.mxu0 %v986
        %v988 = vpop.f32.mrf.mxu0
        %v989 = vadd.f32 %v885, %v988
        %v990 = vand.u32 %v411, 4294901760
        %991 = vmatmul.f32.gmra.mxu0 %v990
        %v992 = vpop.f32.mrf.mxu0
        %v993 = vadd.f32 %v891, %v992
        %v994 = vand.u32 %v414, 4294901760
        %995 = vmatmul.f32.gmra.mxu0 %v994
        %v996 = vpop.f32.mrf.mxu0
        %v997 = vadd.f32 %v897, %v996
        %v998 = vand.u32 %v417, 4294901760
        %999 = vmatmul.f32.gmra.mxu0 %v998
        %v1000 = vpop.f32.mrf.mxu0
        %v1001 = vadd.f32 %v903, %v1000
        %v1002 = vand.u32 %v420, 4294901760
        %1003 = vmatmul.f32.gmra.mxu0 %v1002
        %v1004 = vpop.f32.mrf.mxu0
        %v1005 = vadd.f32 %v909, %v1004
        %v1006 = vand.u32 %v423, 4294901760
        %1007 = vmatmul.f32.gmra.mxu0 %v1006
        %v1008 = vpop.f32.mrf.mxu0
        %v1009 = vadd.f32 %v915, %v1008
        %v1010 = vand.u32 %v426, 4294901760
        %1011 = vmatmul.f32.gmra.mxu0 %v1010
        %v1012 = vpop.f32.mrf.mxu0
        %v1013 = vadd.f32 %v921, %v1012
        %1014 = vdwg.mxu0
        %1015 = vmatpush.msra.mxu0 0.0
        %1016 = vmatpush.msra.mxu0 0.0
        %1017 = vmatpush.msra.mxu0 0.0
        %1018 = vmatpush.msra.mxu0 0.0
        %1019 = vmatpush.msra.mxu0 0.0
        %1020 = vmatpush.msra.mxu0 0.0
        %1021 = vmatpush.msra.mxu0 0.0
        %1022 = vmatpush.msra.mxu0 0.0
        %1023 = vmatpush.msra.mxu0 0.0
        %1024 = vmatpush.msra.mxu0 0.0
        %1025 = vmatpush.msra.mxu0 0.0
        %1026 = vmatpush.msra.mxu0 0.0
        %1027 = vmatpush.msra.mxu0 0.0
        %1028 = vmatpush.msra.mxu0 0.0
        %1029 = vmatpush.msra.mxu0 0.0
        %v1030 = vand.u32 %v430, 4294901760
        %1031 = vmatpush.msra.mxu0 %v1030
        %v1032 = vand.u32 %v375, 4294901760
        %1033 = vmatmul.f32.gmra.mxu0 %v1032
        %v1034 = vpop.f32.mrf.mxu0
        %v1035 = vadd.f32 %v945, %v1034
        %v1036 = vand.u32 %v378, 4294901760
        %1037 = vmatmul.f32.gmra.mxu0 %v1036
        %v1038 = vpop.f32.mrf.mxu0
        %v1039 = vadd.f32 %v949, %v1038
        %v1040 = vand.u32 %v381, 4294901760
        %1041 = vmatmul.f32.gmra.mxu0 %v1040
        %v1042 = vpop.f32.mrf.mxu0
        %v1043 = vadd.f32 %v953, %v1042
        %v1044 = vand.u32 %v384, 4294901760
        %1045 = vmatmul.f32.gmra.mxu0 %v1044
        %v1046 = vpop.f32.mrf.mxu0
        %v1047 = vadd.f32 %v957, %v1046
        %v1048 = vand.u32 %v387, 4294901760
        %1049 = vmatmul.f32.gmra.mxu0 %v1048
        %v1050 = vpop.f32.mrf.mxu0
        %v1051 = vadd.f32 %v961, %v1050
        %v1052 = vand.u32 %v390, 4294901760
        %1053 = vmatmul.f32.gmra.mxu0 %v1052
        %v1054 = vpop.f32.mrf.mxu0
        %v1055 = vadd.f32 %v965, %v1054
        %v1056 = vand.u32 %v393, 4294901760
        %1057 = vmatmul.f32.gmra.mxu0 %v1056
        %v1058 = vpop.f32.mrf.mxu0
        %v1059 = vadd.f32 %v969, %v1058
        %v1060 = vand.u32 %v396, 4294901760
        %1061 = vmatmul.f32.gmra.mxu0 %v1060
        %v1062 = vpop.f32.mrf.mxu0
        %v1063 = vadd.f32 %v973, %v1062
        %v1064 = vand.u32 %v399, 4294901760
        %1065 = vmatmul.f32.gmra.mxu0 %v1064
        %v1066 = vpop.f32.mrf.mxu0
        %v1067 = vadd.f32 %v977, %v1066
        %v1068 = vand.u32 %v402, 4294901760
        %1069 = vmatmul.f32.gmra.mxu0 %v1068
        %v1070 = vpop.f32.mrf.mxu0
        %v1071 = vadd.f32 %v981, %v1070
        %v1072 = vand.u32 %v405, 4294901760
        %1073 = vmatmul.f32.gmra.mxu0 %v1072
        %v1074 = vpop.f32.mrf.mxu0
        %v1075 = vadd.f32 %v985, %v1074
        %v1076 = vand.u32 %v408, 4294901760
        %1077 = vmatmul.f32.gmra.mxu0 %v1076
        %v1078 = vpop.f32.mrf.mxu0
        %v1079 = vadd.f32 %v989, %v1078
        %v1080 = vand.u32 %v411, 4294901760
        %1081 = vmatmul.f32.gmra.mxu0 %v1080
        %v1082 = vpop.f32.mrf.mxu0
        %v1083 = vadd.f32 %v993, %v1082
        %v1084 = vand.u32 %v414, 4294901760
        %1085 = vmatmul.f32.gmra.mxu0 %v1084
        %v1086 = vpop.f32.mrf.mxu0
        %v1087 = vadd.f32 %v997, %v1086
        %v1088 = vand.u32 %v417, 4294901760
        %1089 = vmatmul.f32.gmra.mxu0 %v1088
        %v1090 = vpop.f32.mrf.mxu0
        %v1091 = vadd.f32 %v1001, %v1090
        %v1092 = vand.u32 %v420, 4294901760
        %1093 = vmatmul.f32.gmra.mxu0 %v1092
        %v1094 = vpop.f32.mrf.mxu0
        %v1095 = vadd.f32 %v1005, %v1094
        %v1096 = vand.u32 %v423, 4294901760
        %1097 = vmatmul.f32.gmra.mxu0 %v1096
        %v1098 = vpop.f32.mrf.mxu0
        %v1099 = vadd.f32 %v1009, %v1098
        %v1100 = vand.u32 %v426, 4294901760
        %1101 = vmatmul.f32.gmra.mxu0 %v1100
        %v1102 = vpop.f32.mrf.mxu0
        %v1103 = vadd.f32 %v1013, %v1102
        %1104 = vdwg.mxu0
        %v1105 = vmax.f32 %v1035, 0.0
        %v1106 = vmax.f32 %v1039, 0.0
        %v1107 = vmax.f32 %v1043, 0.0
        %v1108 = vmax.f32 %v1047, 0.0
        %v1109 = vmax.f32 %v1051, 0.0
        %v1110 = vmax.f32 %v1055, 0.0
        %v1111 = vmax.f32 %v1059, 0.0
        %v1112 = vmax.f32 %v1063, 0.0
        %v1113 = vmax.f32 %v1067, 0.0
        %v1114 = vmax.f32 %v1071, 0.0
        %v1115 = vmax.f32 %v1075, 0.0
        %v1116 = vmax.f32 %v1079, 0.0
        %v1117 = vmax.f32 %v1083, 0.0
        %v1118 = vmax.f32 %v1087, 0.0
        %v1119 = vmax.f32 %v1091, 0.0
        %v1120 = vmax.f32 %v1095, 0.0
        %v1121 = vmax.f32 %v1099, 0.0
        %v1122 = vmax.f32 %v1103, 0.0
        %v1123 = vsel %vm348, 1, 0
        %v1124 = vsel %vm349, 1, 0
        %v1125 = vsel %vm350, 1, 0
        %v1126 = vsel %vm351, 1, 0
        %vm1127 = vcmp.eq.s32.totalorder %v1123, 1
        %vm1128 = vcmp.eq.s32.totalorder %v1124, 1
        %vm1129 = vcmp.eq.s32.totalorder %v1125, 1
        %vm1130 = vcmp.eq.s32.totalorder %v1126, 1
        %v1131 = vsel %vm1127, 0.0, %v1105
        %v1132 = vsel %vm1128, 0.0, %v1106
        %v1133 = vsel %vm1129, 0.0, %v1107
        %v1134 = vsel %vm1130, 0.0, %v1108
        %v1135 = vsel %vm1129, 0.0, %v1109
        %v1136 = vsel %vm1130, 0.0, %v1110
        %v1137 = vsel %vm1129, 0.0, %v1111
        %v1138 = vsel %vm1130, 0.0, %v1112
        %v1139 = vsel %vm1129, 0.0, %v1113
        %v1140 = vsel %vm1130, 0.0, %v1114
        %v1141 = vsel %vm1129, 0.0, %v1115
        %v1142 = vsel %vm1130, 0.0, %v1116
        %v1143 = vsel %vm1129, 0.0, %v1117
        %v1144 = vsel %vm1130, 0.0, %v1118
        %v1145 = vsel %vm1129, 0.0, %v1119
        %v1146 = vsel %vm1130, 0.0, %v1120
        %v1147 = vsel %vm1129, 0.0, %v1121
        %v1148 = vsel %vm1130, 0.0, %v1122
        %v1149 = vperm.slane %v340, 0
        %v1150 = vmul.f32 %v1131, %v1149
        %v1151 = vmul.f32 %v1133, %v1149
        %v1152 = vmul.f32 %v1135, %v1149
        %v1153 = vmul.f32 %v1137, %v1149
        %v1154 = vmul.f32 %v1139, %v1149
        %v1155 = vmul.f32 %v1141, %v1149
        %v1156 = vmul.f32 %v1143, %v1149
        %v1157 = vmul.f32 %v1145, %v1149
        %v1158 = vadd.f32 %v1150, 0.0
        %v1159 = vadd.f32 %v1151, 0.0
        %v1160 = vadd.f32 %v1152, 0.0
        %v1161 = vadd.f32 %v1153, 0.0
        %v1162 = vadd.f32 %v1154, 0.0
        %v1163 = vadd.f32 %v1155, 0.0
        %v1164 = vadd.f32 %v1156, 0.0
        %v1165 = vadd.f32 %v1157, 0.0
        %v1166 = vperm.slane %v340, 2
        %v1167 = vmul.f32 %v1131, %v1166
        %v1168 = vmul.f32 %v1132, %v1166
        %v1169 = vmul.f32 %v1133, %v1166
        %v1170 = vmul.f32 %v1134, %v1166
        %v1171 = vmul.f32 %v1135, %v1166
        %v1172 = vmul.f32 %v1136, %v1166
        %v1173 = vmul.f32 %v1137, %v1166
        %v1174 = vmul.f32 %v1138, %v1166
        %v1175 = vmul.f32 %v1139, %v1166
        %v1176 = vmul.f32 %v1140, %v1166
        %v1177 = vmul.f32 %v1141, %v1166
        %v1178 = vmul.f32 %v1142, %v1166
        %v1179 = vmul.f32 %v1143, %v1166
        %v1180 = vmul.f32 %v1144, %v1166
        %v1181 = vmul.f32 %v1145, %v1166
        %v1182 = vmul.f32 %v1146, %v1166
        %vm1199 = vcmask 1046528
        %v1200 = vrot.slane %v1167, 1
        %v1201 = vrot.slane %v1168, 1
        %v1202 = vsel %vm1199, %v1200, %v1201
        %v1203 = vrot.slane %v1169, 1
        %v1204 = vrot.slane %v1170, 1
        %v1205 = vsel %vm1199, %v1203, %v1204
        %v1206 = vrot.slane %v1171, 1
        %v1207 = vrot.slane %v1172, 1
        %v1208 = vsel %vm1199, %v1206, %v1207
        %v1209 = vrot.slane %v1173, 1
        %v1210 = vrot.slane %v1174, 1
        %v1211 = vsel %vm1199, %v1209, %v1210
        %v1212 = vrot.slane %v1175, 1
        %v1213 = vrot.slane %v1176, 1
        %v1214 = vsel %vm1199, %v1212, %v1213
        %v1215 = vrot.slane %v1177, 1
        %v1216 = vrot.slane %v1178, 1
        %v1217 = vsel %vm1199, %v1215, %v1216
        %v1218 = vrot.slane %v1179, 1
        %v1219 = vrot.slane %v1180, 1
        %v1220 = vsel %vm1199, %v1218, %v1219
        %v1221 = vrot.slane %v1181, 1
        %v1222 = vrot.slane %v1182, 1
        %v1223 = vsel %vm1199, %v1221, %v1222
        %v1232 = vadd.f32 %v1158, %v1202
        %v1233 = vadd.f32 %v1159, %v1205
        %v1234 = vadd.f32 %v1160, %v1208
        %v1235 = vadd.f32 %v1161, %v1211
        %v1236 = vadd.f32 %v1162, %v1214
        %v1237 = vadd.f32 %v1163, %v1217
        %v1238 = vadd.f32 %v1164, %v1220
        %v1239 = vadd.f32 %v1165, %v1223
        %v1240 = vperm.slane %v340, 6
        %v1241 = vmul.f32 %v1133, %v1240
        %v1242 = vmul.f32 %v1135, %v1240
        %v1243 = vmul.f32 %v1137, %v1240
        %v1244 = vmul.f32 %v1139, %v1240
        %v1245 = vmul.f32 %v1141, %v1240
        %v1246 = vmul.f32 %v1143, %v1240
        %v1247 = vmul.f32 %v1145, %v1240
        %v1248 = vmul.f32 %v1147, %v1240
        %v1249 = vadd.f32 %v1232, %v1241
        %v1250 = vadd.f32 %v1233, %v1242
        %v1251 = vadd.f32 %v1234, %v1243
        %v1252 = vadd.f32 %v1235, %v1244
        %v1253 = vadd.f32 %v1236, %v1245
        %v1254 = vadd.f32 %v1237, %v1246
        %v1255 = vadd.f32 %v1238, %v1247
        %v1256 = vadd.f32 %v1239, %v1248
        %v1257 = vperm.slane %v341, 0
        %v1258 = vmul.f32 %v1133, %v1257
        %v1259 = vmul.f32 %v1134, %v1257
        %v1260 = vmul.f32 %v1135, %v1257
        %v1261 = vmul.f32 %v1136, %v1257
        %v1262 = vmul.f32 %v1137, %v1257
        %v1263 = vmul.f32 %v1138, %v1257
        %v1264 = vmul.f32 %v1139, %v1257
        %v1265 = vmul.f32 %v1140, %v1257
        %v1266 = vmul.f32 %v1141, %v1257
        %v1267 = vmul.f32 %v1142, %v1257
        %v1268 = vmul.f32 %v1143, %v1257
        %v1269 = vmul.f32 %v1144, %v1257
        %v1270 = vmul.f32 %v1145, %v1257
        %v1271 = vmul.f32 %v1146, %v1257
        %v1272 = vmul.f32 %v1147, %v1257
        %v1273 = vmul.f32 %v1148, %v1257
        %v1290 = vrot.slane %v1258, 1
        %v1291 = vrot.slane %v1259, 1
        %v1292 = vsel %vm1199, %v1290, %v1291
        %v1293 = vrot.slane %v1260, 1
        %v1294 = vrot.slane %v1261, 1
        %v1295 = vsel %vm1199, %v1293, %v1294
        %v1296 = vrot.slane %v1262, 1
        %v1297 = vrot.slane %v1263, 1
        %v1298 = vsel %vm1199, %v1296, %v1297
        %v1299 = vrot.slane %v1264, 1
        %v1300 = vrot.slane %v1265, 1
        %v1301 = vsel %vm1199, %v1299, %v1300
        %v1302 = vrot.slane %v1266, 1
        %v1303 = vrot.slane %v1267, 1
        %v1304 = vsel %vm1199, %v1302, %v1303
        %v1305 = vrot.slane %v1268, 1
        %v1306 = vrot.slane %v1269, 1
        %v1307 = vsel %vm1199, %v1305, %v1306
        %v1308 = vrot.slane %v1270, 1
        %v1309 = vrot.slane %v1271, 1
        %v1310 = vsel %vm1199, %v1308, %v1309
        %v1311 = vrot.slane %v1272, 1
        %v1312 = vrot.slane %v1273, 1
        %v1313 = vsel %vm1199, %v1311, %v1312
        %v1322 = vadd.f32 %v1249, %v1292
        %v1323 = vadd.f32 %v1250, %v1295
        %v1324 = vadd.f32 %v1251, %v1298
        %v1325 = vadd.f32 %v1252, %v1301
        %v1326 = vadd.f32 %v1253, %v1304
        %v1327 = vadd.f32 %v1254, %v1307
        %v1328 = vadd.f32 %v1255, %v1310
        %v1329 = vadd.f32 %v1256, %v1313
        %s1330 = scalar_lea.vmem %s323, 144
        %v1331 = vld [vmem:[%s1330] sm:$0xff]
        %v1332 = vld [vmem:[%s1330 + $0x8] sm:$0xff]
        %v1333 = vld [vmem:[%s1330 + $0x10] sm:$0xff]
        %v1334 = vld [vmem:[%s1330 + $0x18] sm:$0xff]
        %v1335 = vld [vmem:[%s1330 + $0x20] sm:$0xff]
        %v1336 = vld [vmem:[%s1330 + $0x28] sm:$0xff]
        %v1337 = vld [vmem:[%s1330 + $0x30] sm:$0xff]
        %v1338 = vld [vmem:[%s1330 + $0x38] sm:$0xff]
        %v1339 = vld [vmem:[%s1330 + $0x40] sm:$0xff]
        %v1340 = vld [vmem:[%s1330 + $0x48] sm:$0xff]
        %v1341 = vld [vmem:[%s1330 + $0x50] sm:$0xff]
        %v1342 = vld [vmem:[%s1330 + $0x58] sm:$0xff]
        %v1343 = vld [vmem:[%s1330 + $0x60] sm:$0xff]
        %v1344 = vld [vmem:[%s1330 + $0x68] sm:$0xff]
        %v1345 = vld [vmem:[%s1330 + $0x70] sm:$0xff]
        %v1346 = vld [vmem:[%s1330 + $0x78] sm:$0xff]
        %v1347 = vld [vmem:[%s1330 + $0x80] sm:$0xff]
        %v1348 = vld [vmem:[%s1330 + $0x88] sm:$0xff]
        %v1350 = vsel %vm373, %v1331, 0
        %v1353 = vsel %vm373, %v1332, 0
        %v1356 = vsel %vm373, %v1333, 0
        %v1359 = vsel %vm373, %v1334, 0
        %v1362 = vsel %vm373, %v1335, 0
        %v1365 = vsel %vm373, %v1336, 0
        %v1368 = vsel %vm373, %v1337, 0
        %v1371 = vsel %vm373, %v1338, 0
        %v1374 = vsel %vm373, %v1339, 0
        %v1377 = vsel %vm373, %v1340, 0
        %v1380 = vsel %vm373, %v1341, 0
        %v1383 = vsel %vm373, %v1342, 0
        %v1386 = vsel %vm373, %v1343, 0
        %v1389 = vsel %vm373, %v1344, 0
        %v1392 = vsel %vm373, %v1345, 0
        %v1395 = vsel %vm373, %v1346, 0
        %v1398 = vsel %vm373, %v1347, 0
        %v1401 = vsel %vm373, %v1348, 0
        %1403 = vmatpush.msra.mxu0 0.0
        %1404 = vmatpush.msra.mxu0 0.0
        %1405 = vmatpush.msra.mxu0 0.0
        %1406 = vmatpush.msra.mxu0 0.0
        %1407 = vmatpush.msra.mxu0 0.0
        %1408 = vmatpush.msra.mxu0 0.0
        %1409 = vmatpush.msra.mxu0 0.0
        %1410 = vmatpush.msra.mxu0 0.0
        %1411 = vmatpush.msra.mxu0 0.0
        %1412 = vmatpush.msra.mxu0 0.0
        %1413 = vmatpush.msra.mxu0 0.0
        %1414 = vmatpush.msra.mxu0 0.0
        %1415 = vmatpush.msra.mxu0 0.0
        %1416 = vmatpush.msra.mxu0 0.0
        %1417 = vmatpush.msra.mxu0 0.0
        %v1418 = vand.u32 %v430, 4294901760
        %1419 = vmatpush.msra.mxu0 %v1418
        %v1420 = vand.u32 %v1350, 4294901760
        %v1421 = vsub.f32 %v1350, %v1420
        %v1422 = vand.u32 %v1421, 4294901760
        %v1423 = vsub.f32 %v1421, %v1422
        %v1424 = vand.u32 %v1423, 4294901760
        %1425 = vmatmul.f32.gmra.mxu0 %v1424
        %v1426 = vpop.f32.mrf.mxu0
        %v1427 = vadd.f32 %v371, %v1426
        %v1428 = vand.u32 %v1353, 4294901760
        %v1429 = vsub.f32 %v1353, %v1428
        %v1430 = vand.u32 %v1429, 4294901760
        %v1431 = vsub.f32 %v1429, %v1430
        %v1432 = vand.u32 %v1431, 4294901760
        %1433 = vmatmul.f32.gmra.mxu0 %v1432
        %v1434 = vpop.f32.mrf.mxu0
        %v1435 = vand.u32 %v1356, 4294901760
        %v1436 = vsub.f32 %v1356, %v1435
        %v1437 = vand.u32 %v1436, 4294901760
        %v1438 = vsub.f32 %v1436, %v1437
        %v1439 = vand.u32 %v1438, 4294901760
        %1440 = vmatmul.f32.gmra.mxu0 %v1439
        %v1441 = vpop.f32.mrf.mxu0
        %v1442 = vadd.f32 %v371, %v1441
        %v1443 = vand.u32 %v1359, 4294901760
        %v1444 = vsub.f32 %v1359, %v1443
        %v1445 = vand.u32 %v1444, 4294901760
        %v1446 = vsub.f32 %v1444, %v1445
        %v1447 = vand.u32 %v1446, 4294901760
        %1448 = vmatmul.f32.gmra.mxu0 %v1447
        %v1449 = vpop.f32.mrf.mxu0
        %v1450 = vand.u32 %v1362, 4294901760
        %v1451 = vsub.f32 %v1362, %v1450
        %v1452 = vand.u32 %v1451, 4294901760
        %v1453 = vsub.f32 %v1451, %v1452
        %v1454 = vand.u32 %v1453, 4294901760
        %1455 = vmatmul.f32.gmra.mxu0 %v1454
        %v1456 = vpop.f32.mrf.mxu0
        %v1457 = vadd.f32 %v371, %v1456
        %v1458 = vand.u32 %v1365, 4294901760
        %v1459 = vsub.f32 %v1365, %v1458
        %v1460 = vand.u32 %v1459, 4294901760
        %v1461 = vsub.f32 %v1459, %v1460
        %v1462 = vand.u32 %v1461, 4294901760
        %1463 = vmatmul.f32.gmra.mxu0 %v1462
        %v1464 = vpop.f32.mrf.mxu0
        %v1465 = vand.u32 %v1368, 4294901760
        %v1466 = vsub.f32 %v1368, %v1465
        %v1467 = vand.u32 %v1466, 4294901760
        %v1468 = vsub.f32 %v1466, %v1467
        %v1469 = vand.u32 %v1468, 4294901760
        %1470 = vmatmul.f32.gmra.mxu0 %v1469
        %v1471 = vpop.f32.mrf.mxu0
        %v1472 = vadd.f32 %v371, %v1471
        %v1473 = vand.u32 %v1371, 4294901760
        %v1474 = vsub.f32 %v1371, %v1473
        %v1475 = vand.u32 %v1474, 4294901760
        %v1476 = vsub.f32 %v1474, %v1475
        %v1477 = vand.u32 %v1476, 4294901760
        %1478 = vmatmul.f32.gmra.mxu0 %v1477
        %v1479 = vpop.f32.mrf.mxu0
        %v1480 = vand.u32 %v1374, 4294901760
        %v1481 = vsub.f32 %v1374, %v1480
        %v1482 = vand.u32 %v1481, 4294901760
        %v1483 = vsub.f32 %v1481, %v1482
        %v1484 = vand.u32 %v1483, 4294901760
        %1485 = vmatmul.f32.gmra.mxu0 %v1484
        %v1486 = vpop.f32.mrf.mxu0
        %v1487 = vadd.f32 %v371, %v1486
        %v1488 = vand.u32 %v1377, 4294901760
        %v1489 = vsub.f32 %v1377, %v1488
        %v1490 = vand.u32 %v1489, 4294901760
        %v1491 = vsub.f32 %v1489, %v1490
        %v1492 = vand.u32 %v1491, 4294901760
        %1493 = vmatmul.f32.gmra.mxu0 %v1492
        %v1494 = vpop.f32.mrf.mxu0
        %v1495 = vand.u32 %v1380, 4294901760
        %v1496 = vsub.f32 %v1380, %v1495
        %v1497 = vand.u32 %v1496, 4294901760
        %v1498 = vsub.f32 %v1496, %v1497
        %v1499 = vand.u32 %v1498, 4294901760
        %1500 = vmatmul.f32.gmra.mxu0 %v1499
        %v1501 = vpop.f32.mrf.mxu0
        %v1502 = vadd.f32 %v371, %v1501
        %v1503 = vand.u32 %v1383, 4294901760
        %v1504 = vsub.f32 %v1383, %v1503
        %v1505 = vand.u32 %v1504, 4294901760
        %v1506 = vsub.f32 %v1504, %v1505
        %v1507 = vand.u32 %v1506, 4294901760
        %1508 = vmatmul.f32.gmra.mxu0 %v1507
        %v1509 = vpop.f32.mrf.mxu0
        %v1510 = vand.u32 %v1386, 4294901760
        %v1511 = vsub.f32 %v1386, %v1510
        %v1512 = vand.u32 %v1511, 4294901760
        %v1513 = vsub.f32 %v1511, %v1512
        %v1514 = vand.u32 %v1513, 4294901760
        %1515 = vmatmul.f32.gmra.mxu0 %v1514
        %v1516 = vpop.f32.mrf.mxu0
        %v1517 = vadd.f32 %v371, %v1516
        %v1518 = vand.u32 %v1389, 4294901760
        %v1519 = vsub.f32 %v1389, %v1518
        %v1520 = vand.u32 %v1519, 4294901760
        %v1521 = vsub.f32 %v1519, %v1520
        %v1522 = vand.u32 %v1521, 4294901760
        %1523 = vmatmul.f32.gmra.mxu0 %v1522
        %v1524 = vpop.f32.mrf.mxu0
        %v1525 = vand.u32 %v1392, 4294901760
        %v1526 = vsub.f32 %v1392, %v1525
        %v1527 = vand.u32 %v1526, 4294901760
        %v1528 = vsub.f32 %v1526, %v1527
        %v1529 = vand.u32 %v1528, 4294901760
        %1530 = vmatmul.f32.gmra.mxu0 %v1529
        %v1531 = vpop.f32.mrf.mxu0
        %v1532 = vadd.f32 %v371, %v1531
        %v1533 = vand.u32 %v1395, 4294901760
        %v1534 = vsub.f32 %v1395, %v1533
        %v1535 = vand.u32 %v1534, 4294901760
        %v1536 = vsub.f32 %v1534, %v1535
        %v1537 = vand.u32 %v1536, 4294901760
        %1538 = vmatmul.f32.gmra.mxu0 %v1537
        %v1539 = vpop.f32.mrf.mxu0
        %v1540 = vand.u32 %v1398, 4294901760
        %v1541 = vsub.f32 %v1398, %v1540
        %v1542 = vand.u32 %v1541, 4294901760
        %v1543 = vsub.f32 %v1541, %v1542
        %v1544 = vand.u32 %v1543, 4294901760
        %1545 = vmatmul.f32.gmra.mxu0 %v1544
        %v1546 = vpop.f32.mrf.mxu0
        %v1547 = vadd.f32 %v371, %v1546
        %v1548 = vand.u32 %v1401, 4294901760
        %v1549 = vsub.f32 %v1401, %v1548
        %v1550 = vand.u32 %v1549, 4294901760
        %v1551 = vsub.f32 %v1549, %v1550
        %v1552 = vand.u32 %v1551, 4294901760
        %1553 = vmatmul.f32.gmra.mxu0 %v1552
        %v1554 = vpop.f32.mrf.mxu0
        %1555 = vdwg.mxu0
        %1556 = vmatpush.msra.mxu0 0.0
        %1557 = vmatpush.msra.mxu0 0.0
        %1558 = vmatpush.msra.mxu0 0.0
        %1559 = vmatpush.msra.mxu0 0.0
        %1560 = vmatpush.msra.mxu0 0.0
        %1561 = vmatpush.msra.mxu0 0.0
        %1562 = vmatpush.msra.mxu0 0.0
        %1563 = vmatpush.msra.mxu0 0.0
        %1564 = vmatpush.msra.mxu0 0.0
        %1565 = vmatpush.msra.mxu0 0.0
        %1566 = vmatpush.msra.mxu0 0.0
        %1567 = vmatpush.msra.mxu0 0.0
        %1568 = vmatpush.msra.mxu0 0.0
        %1569 = vmatpush.msra.mxu0 0.0
        %1570 = vmatpush.msra.mxu0 0.0
        %v1571 = vand.u32 %v430, 4294901760
        %v1572 = vsub.f32 %v430, %v1571
        %v1573 = vand.u32 %v1572, 4294901760
        %v1574 = vsub.f32 %v1572, %v1573
        %v1575 = vand.u32 %v1574, 4294901760
        %1576 = vmatpush.msra.mxu0 %v1575
        %v1577 = vand.u32 %v1350, 4294901760
        %1578 = vmatmul.f32.gmra.mxu0 %v1577
        %v1579 = vpop.f32.mrf.mxu0
        %v1580 = vadd.f32 %v1427, %v1579
        %v1581 = vand.u32 %v1353, 4294901760
        %1582 = vmatmul.f32.gmra.mxu0 %v1581
        %v1583 = vpop.f32.mrf.mxu0
        %v1584 = vand.u32 %v1356, 4294901760
        %1585 = vmatmul.f32.gmra.mxu0 %v1584
        %v1586 = vpop.f32.mrf.mxu0
        %v1587 = vadd.f32 %v1442, %v1586
        %v1588 = vand.u32 %v1359, 4294901760
        %1589 = vmatmul.f32.gmra.mxu0 %v1588
        %v1590 = vpop.f32.mrf.mxu0
        %v1591 = vand.u32 %v1362, 4294901760
        %1592 = vmatmul.f32.gmra.mxu0 %v1591
        %v1593 = vpop.f32.mrf.mxu0
        %v1594 = vadd.f32 %v1457, %v1593
        %v1595 = vand.u32 %v1365, 4294901760
        %1596 = vmatmul.f32.gmra.mxu0 %v1595
        %v1597 = vpop.f32.mrf.mxu0
        %v1598 = vand.u32 %v1368, 4294901760
        %1599 = vmatmul.f32.gmra.mxu0 %v1598
        %v1600 = vpop.f32.mrf.mxu0
        %v1601 = vadd.f32 %v1472, %v1600
        %v1602 = vand.u32 %v1371, 4294901760
        %1603 = vmatmul.f32.gmra.mxu0 %v1602
        %v1604 = vpop.f32.mrf.mxu0
        %v1605 = vand.u32 %v1374, 4294901760
        %1606 = vmatmul.f32.gmra.mxu0 %v1605
        %v1607 = vpop.f32.mrf.mxu0
        %v1608 = vadd.f32 %v1487, %v1607
        %v1609 = vand.u32 %v1377, 4294901760
        %1610 = vmatmul.f32.gmra.mxu0 %v1609
        %v1611 = vpop.f32.mrf.mxu0
        %v1612 = vand.u32 %v1380, 4294901760
        %1613 = vmatmul.f32.gmra.mxu0 %v1612
        %v1614 = vpop.f32.mrf.mxu0
        %v1615 = vadd.f32 %v1502, %v1614
        %v1616 = vand.u32 %v1383, 4294901760
        %1617 = vmatmul.f32.gmra.mxu0 %v1616
        %v1618 = vpop.f32.mrf.mxu0
        %v1619 = vand.u32 %v1386, 4294901760
        %1620 = vmatmul.f32.gmra.mxu0 %v1619
        %v1621 = vpop.f32.mrf.mxu0
        %v1622 = vadd.f32 %v1517, %v1621
        %v1623 = vand.u32 %v1389, 4294901760
        %1624 = vmatmul.f32.gmra.mxu0 %v1623
        %v1625 = vpop.f32.mrf.mxu0
        %v1626 = vand.u32 %v1392, 4294901760
        %1627 = vmatmul.f32.gmra.mxu0 %v1626
        %v1628 = vpop.f32.mrf.mxu0
        %v1629 = vadd.f32 %v1532, %v1628
        %v1630 = vand.u32 %v1395, 4294901760
        %1631 = vmatmul.f32.gmra.mxu0 %v1630
        %v1632 = vpop.f32.mrf.mxu0
        %v1633 = vand.u32 %v1398, 4294901760
        %1634 = vmatmul.f32.gmra.mxu0 %v1633
        %v1635 = vpop.f32.mrf.mxu0
        %v1636 = vadd.f32 %v1547, %v1635
        %v1637 = vand.u32 %v1401, 4294901760
        %1638 = vmatmul.f32.gmra.mxu0 %v1637
        %v1639 = vpop.f32.mrf.mxu0
        %1640 = vdwg.mxu0
        %1641 = vmatpush.msra.mxu0 0.0
        %1642 = vmatpush.msra.mxu0 0.0
        %1643 = vmatpush.msra.mxu0 0.0
        %1644 = vmatpush.msra.mxu0 0.0
        %1645 = vmatpush.msra.mxu0 0.0
        %1646 = vmatpush.msra.mxu0 0.0
        %1647 = vmatpush.msra.mxu0 0.0
        %1648 = vmatpush.msra.mxu0 0.0
        %1649 = vmatpush.msra.mxu0 0.0
        %1650 = vmatpush.msra.mxu0 0.0
        %1651 = vmatpush.msra.mxu0 0.0
        %1652 = vmatpush.msra.mxu0 0.0
        %1653 = vmatpush.msra.mxu0 0.0
        %1654 = vmatpush.msra.mxu0 0.0
        %1655 = vmatpush.msra.mxu0 0.0
        %v1656 = vand.u32 %v430, 4294901760
        %v1657 = vsub.f32 %v430, %v1656
        %1658 = vmatpush.msra.mxu0 %v1657
        %v1659 = vand.u32 %v1350, 4294901760
        %v1660 = vsub.f32 %v1350, %v1659
        %1661 = vmatmul.f32.gmra.mxu0 %v1660
        %v1662 = vpop.f32.mrf.mxu0
        %v1663 = vadd.f32 %v1580, %v1662
        %v1664 = vand.u32 %v1353, 4294901760
        %v1665 = vsub.f32 %v1353, %v1664
        %1666 = vmatmul.f32.gmra.mxu0 %v1665
        %v1667 = vpop.f32.mrf.mxu0
        %v1668 = vand.u32 %v1356, 4294901760
        %v1669 = vsub.f32 %v1356, %v1668
        %1670 = vmatmul.f32.gmra.mxu0 %v1669
        %v1671 = vpop.f32.mrf.mxu0
        %v1672 = vadd.f32 %v1587, %v1671
        %v1673 = vand.u32 %v1359, 4294901760
        %v1674 = vsub.f32 %v1359, %v1673
        %1675 = vmatmul.f32.gmra.mxu0 %v1674
        %v1676 = vpop.f32.mrf.mxu0
        %v1677 = vand.u32 %v1362, 4294901760
        %v1678 = vsub.f32 %v1362, %v1677
        %1679 = vmatmul.f32.gmra.mxu0 %v1678
        %v1680 = vpop.f32.mrf.mxu0
        %v1681 = vadd.f32 %v1594, %v1680
        %v1682 = vand.u32 %v1365, 4294901760
        %v1683 = vsub.f32 %v1365, %v1682
        %1684 = vmatmul.f32.gmra.mxu0 %v1683
        %v1685 = vpop.f32.mrf.mxu0
        %v1686 = vand.u32 %v1368, 4294901760
        %v1687 = vsub.f32 %v1368, %v1686
        %1688 = vmatmul.f32.gmra.mxu0 %v1687
        %v1689 = vpop.f32.mrf.mxu0
        %v1690 = vadd.f32 %v1601, %v1689
        %v1691 = vand.u32 %v1371, 4294901760
        %v1692 = vsub.f32 %v1371, %v1691
        %1693 = vmatmul.f32.gmra.mxu0 %v1692
        %v1694 = vpop.f32.mrf.mxu0
        %v1695 = vand.u32 %v1374, 4294901760
        %v1696 = vsub.f32 %v1374, %v1695
        %1697 = vmatmul.f32.gmra.mxu0 %v1696
        %v1698 = vpop.f32.mrf.mxu0
        %v1699 = vadd.f32 %v1608, %v1698
        %v1700 = vand.u32 %v1377, 4294901760
        %v1701 = vsub.f32 %v1377, %v1700
        %1702 = vmatmul.f32.gmra.mxu0 %v1701
        %v1703 = vpop.f32.mrf.mxu0
        %v1704 = vand.u32 %v1380, 4294901760
        %v1705 = vsub.f32 %v1380, %v1704
        %1706 = vmatmul.f32.gmra.mxu0 %v1705
        %v1707 = vpop.f32.mrf.mxu0
        %v1708 = vadd.f32 %v1615, %v1707
        %v1709 = vand.u32 %v1383, 4294901760
        %v1710 = vsub.f32 %v1383, %v1709
        %1711 = vmatmul.f32.gmra.mxu0 %v1710
        %v1712 = vpop.f32.mrf.mxu0
        %v1713 = vand.u32 %v1386, 4294901760
        %v1714 = vsub.f32 %v1386, %v1713
        %1715 = vmatmul.f32.gmra.mxu0 %v1714
        %v1716 = vpop.f32.mrf.mxu0
        %v1717 = vadd.f32 %v1622, %v1716
        %v1718 = vand.u32 %v1389, 4294901760
        %v1719 = vsub.f32 %v1389, %v1718
        %1720 = vmatmul.f32.gmra.mxu0 %v1719
        %v1721 = vpop.f32.mrf.mxu0
        %v1722 = vand.u32 %v1392, 4294901760
        %v1723 = vsub.f32 %v1392, %v1722
        %1724 = vmatmul.f32.gmra.mxu0 %v1723
        %v1725 = vpop.f32.mrf.mxu0
        %v1726 = vadd.f32 %v1629, %v1725
        %v1727 = vand.u32 %v1395, 4294901760
        %v1728 = vsub.f32 %v1395, %v1727
        %1729 = vmatmul.f32.gmra.mxu0 %v1728
        %v1730 = vpop.f32.mrf.mxu0
        %v1731 = vand.u32 %v1398, 4294901760
        %v1732 = vsub.f32 %v1398, %v1731
        %1733 = vmatmul.f32.gmra.mxu0 %v1732
        %v1734 = vpop.f32.mrf.mxu0
        %v1735 = vadd.f32 %v1636, %v1734
        %v1736 = vand.u32 %v1401, 4294901760
        %v1737 = vsub.f32 %v1401, %v1736
        %1738 = vmatmul.f32.gmra.mxu0 %v1737
        %v1739 = vpop.f32.mrf.mxu0
        %1740 = vdwg.mxu0
        %1741 = vmatpush.msra.mxu0 0.0
        %1742 = vmatpush.msra.mxu0 0.0
        %1743 = vmatpush.msra.mxu0 0.0
        %1744 = vmatpush.msra.mxu0 0.0
        %1745 = vmatpush.msra.mxu0 0.0
        %1746 = vmatpush.msra.mxu0 0.0
        %1747 = vmatpush.msra.mxu0 0.0
        %1748 = vmatpush.msra.mxu0 0.0
        %1749 = vmatpush.msra.mxu0 0.0
        %1750 = vmatpush.msra.mxu0 0.0
        %1751 = vmatpush.msra.mxu0 0.0
        %1752 = vmatpush.msra.mxu0 0.0
        %1753 = vmatpush.msra.mxu0 0.0
        %1754 = vmatpush.msra.mxu0 0.0
        %1755 = vmatpush.msra.mxu0 0.0
        %v1756 = vand.u32 %v430, 4294901760
        %1757 = vmatpush.msra.mxu0 %v1756
        %v1758 = vand.u32 %v1350, 4294901760
        %v1759 = vsub.f32 %v1350, %v1758
        %v1760 = vand.u32 %v1759, 4294901760
        %1761 = vmatmul.f32.gmra.mxu0 %v1760
        %v1762 = vpop.f32.mrf.mxu0
        %v1763 = vadd.f32 %v1663, %v1762
        %v1764 = vand.u32 %v1353, 4294901760
        %v1765 = vsub.f32 %v1353, %v1764
        %v1766 = vand.u32 %v1765, 4294901760
        %1767 = vmatmul.f32.gmra.mxu0 %v1766
        %v1768 = vpop.f32.mrf.mxu0
        %v1769 = vand.u32 %v1356, 4294901760
        %v1770 = vsub.f32 %v1356, %v1769
        %v1771 = vand.u32 %v1770, 4294901760
        %1772 = vmatmul.f32.gmra.mxu0 %v1771
        %v1773 = vpop.f32.mrf.mxu0
        %v1774 = vadd.f32 %v1672, %v1773
        %v1775 = vand.u32 %v1359, 4294901760
        %v1776 = vsub.f32 %v1359, %v1775
        %v1777 = vand.u32 %v1776, 4294901760
        %1778 = vmatmul.f32.gmra.mxu0 %v1777
        %v1779 = vpop.f32.mrf.mxu0
        %v1780 = vand.u32 %v1362, 4294901760
        %v1781 = vsub.f32 %v1362, %v1780
        %v1782 = vand.u32 %v1781, 4294901760
        %1783 = vmatmul.f32.gmra.mxu0 %v1782
        %v1784 = vpop.f32.mrf.mxu0
        %v1785 = vadd.f32 %v1681, %v1784
        %v1786 = vand.u32 %v1365, 4294901760
        %v1787 = vsub.f32 %v1365, %v1786
        %v1788 = vand.u32 %v1787, 4294901760
        %1789 = vmatmul.f32.gmra.mxu0 %v1788
        %v1790 = vpop.f32.mrf.mxu0
        %v1791 = vand.u32 %v1368, 4294901760
        %v1792 = vsub.f32 %v1368, %v1791
        %v1793 = vand.u32 %v1792, 4294901760
        %1794 = vmatmul.f32.gmra.mxu0 %v1793
        %v1795 = vpop.f32.mrf.mxu0
        %v1796 = vadd.f32 %v1690, %v1795
        %v1797 = vand.u32 %v1371, 4294901760
        %v1798 = vsub.f32 %v1371, %v1797
        %v1799 = vand.u32 %v1798, 4294901760
        %1800 = vmatmul.f32.gmra.mxu0 %v1799
        %v1801 = vpop.f32.mrf.mxu0
        %v1802 = vand.u32 %v1374, 4294901760
        %v1803 = vsub.f32 %v1374, %v1802
        %v1804 = vand.u32 %v1803, 4294901760
        %1805 = vmatmul.f32.gmra.mxu0 %v1804
        %v1806 = vpop.f32.mrf.mxu0
        %v1807 = vadd.f32 %v1699, %v1806
        %v1808 = vand.u32 %v1377, 4294901760
        %v1809 = vsub.f32 %v1377, %v1808
        %v1810 = vand.u32 %v1809, 4294901760
        %1811 = vmatmul.f32.gmra.mxu0 %v1810
        %v1812 = vpop.f32.mrf.mxu0
        %v1813 = vand.u32 %v1380, 4294901760
        %v1814 = vsub.f32 %v1380, %v1813
        %v1815 = vand.u32 %v1814, 4294901760
        %1816 = vmatmul.f32.gmra.mxu0 %v1815
        %v1817 = vpop.f32.mrf.mxu0
        %v1818 = vadd.f32 %v1708, %v1817
        %v1819 = vand.u32 %v1383, 4294901760
        %v1820 = vsub.f32 %v1383, %v1819
        %v1821 = vand.u32 %v1820, 4294901760
        %1822 = vmatmul.f32.gmra.mxu0 %v1821
        %v1823 = vpop.f32.mrf.mxu0
        %v1824 = vand.u32 %v1386, 4294901760
        %v1825 = vsub.f32 %v1386, %v1824
        %v1826 = vand.u32 %v1825, 4294901760
        %1827 = vmatmul.f32.gmra.mxu0 %v1826
        %v1828 = vpop.f32.mrf.mxu0
        %v1829 = vadd.f32 %v1717, %v1828
        %v1830 = vand.u32 %v1389, 4294901760
        %v1831 = vsub.f32 %v1389, %v1830
        %v1832 = vand.u32 %v1831, 4294901760
        %1833 = vmatmul.f32.gmra.mxu0 %v1832
        %v1834 = vpop.f32.mrf.mxu0
        %v1835 = vand.u32 %v1392, 4294901760
        %v1836 = vsub.f32 %v1392, %v1835
        %v1837 = vand.u32 %v1836, 4294901760
        %1838 = vmatmul.f32.gmra.mxu0 %v1837
        %v1839 = vpop.f32.mrf.mxu0
        %v1840 = vadd.f32 %v1726, %v1839
        %v1841 = vand.u32 %v1395, 4294901760
        %v1842 = vsub.f32 %v1395, %v1841
        %v1843 = vand.u32 %v1842, 4294901760
        %1844 = vmatmul.f32.gmra.mxu0 %v1843
        %v1845 = vpop.f32.mrf.mxu0
        %v1846 = vand.u32 %v1398, 4294901760
        %v1847 = vsub.f32 %v1398, %v1846
        %v1848 = vand.u32 %v1847, 4294901760
        %1849 = vmatmul.f32.gmra.mxu0 %v1848
        %v1850 = vpop.f32.mrf.mxu0
        %v1851 = vadd.f32 %v1735, %v1850
        %v1852 = vand.u32 %v1401, 4294901760
        %v1853 = vsub.f32 %v1401, %v1852
        %v1854 = vand.u32 %v1853, 4294901760
        %1855 = vmatmul.f32.gmra.mxu0 %v1854
        %v1856 = vpop.f32.mrf.mxu0
        %1857 = vdwg.mxu0
        %1858 = vmatpush.msra.mxu0 0.0
        %1859 = vmatpush.msra.mxu0 0.0
        %1860 = vmatpush.msra.mxu0 0.0
        %1861 = vmatpush.msra.mxu0 0.0
        %1862 = vmatpush.msra.mxu0 0.0
        %1863 = vmatpush.msra.mxu0 0.0
        %1864 = vmatpush.msra.mxu0 0.0
        %1865 = vmatpush.msra.mxu0 0.0
        %1866 = vmatpush.msra.mxu0 0.0
        %1867 = vmatpush.msra.mxu0 0.0
        %1868 = vmatpush.msra.mxu0 0.0
        %1869 = vmatpush.msra.mxu0 0.0
        %1870 = vmatpush.msra.mxu0 0.0
        %1871 = vmatpush.msra.mxu0 0.0
        %1872 = vmatpush.msra.mxu0 0.0
        %v1873 = vand.u32 %v430, 4294901760
        %v1874 = vsub.f32 %v430, %v1873
        %v1875 = vand.u32 %v1874, 4294901760
        %1876 = vmatpush.msra.mxu0 %v1875
        %v1877 = vand.u32 %v1350, 4294901760
        %1878 = vmatmul.f32.gmra.mxu0 %v1877
        %v1879 = vpop.f32.mrf.mxu0
        %v1880 = vadd.f32 %v1763, %v1879
        %v1881 = vand.u32 %v1353, 4294901760
        %1882 = vmatmul.f32.gmra.mxu0 %v1881
        %v1883 = vpop.f32.mrf.mxu0
        %v1884 = vand.u32 %v1356, 4294901760
        %1885 = vmatmul.f32.gmra.mxu0 %v1884
        %v1886 = vpop.f32.mrf.mxu0
        %v1887 = vadd.f32 %v1774, %v1886
        %v1888 = vand.u32 %v1359, 4294901760
        %1889 = vmatmul.f32.gmra.mxu0 %v1888
        %v1890 = vpop.f32.mrf.mxu0
        %v1891 = vand.u32 %v1362, 4294901760
        %1892 = vmatmul.f32.gmra.mxu0 %v1891
        %v1893 = vpop.f32.mrf.mxu0
        %v1894 = vadd.f32 %v1785, %v1893
        %v1895 = vand.u32 %v1365, 4294901760
        %1896 = vmatmul.f32.gmra.mxu0 %v1895
        %v1897 = vpop.f32.mrf.mxu0
        %v1898 = vand.u32 %v1368, 4294901760
        %1899 = vmatmul.f32.gmra.mxu0 %v1898
        %v1900 = vpop.f32.mrf.mxu0
        %v1901 = vadd.f32 %v1796, %v1900
        %v1902 = vand.u32 %v1371, 4294901760
        %1903 = vmatmul.f32.gmra.mxu0 %v1902
        %v1904 = vpop.f32.mrf.mxu0
        %v1905 = vand.u32 %v1374, 4294901760
        %1906 = vmatmul.f32.gmra.mxu0 %v1905
        %v1907 = vpop.f32.mrf.mxu0
        %v1908 = vadd.f32 %v1807, %v1907
        %v1909 = vand.u32 %v1377, 4294901760
        %1910 = vmatmul.f32.gmra.mxu0 %v1909
        %v1911 = vpop.f32.mrf.mxu0
        %v1912 = vand.u32 %v1380, 4294901760
        %1913 = vmatmul.f32.gmra.mxu0 %v1912
        %v1914 = vpop.f32.mrf.mxu0
        %v1915 = vadd.f32 %v1818, %v1914
        %v1916 = vand.u32 %v1383, 4294901760
        %1917 = vmatmul.f32.gmra.mxu0 %v1916
        %v1918 = vpop.f32.mrf.mxu0
        %v1919 = vand.u32 %v1386, 4294901760
        %1920 = vmatmul.f32.gmra.mxu0 %v1919
        %v1921 = vpop.f32.mrf.mxu0
        %v1922 = vadd.f32 %v1829, %v1921
        %v1923 = vand.u32 %v1389, 4294901760
        %1924 = vmatmul.f32.gmra.mxu0 %v1923
        %v1925 = vpop.f32.mrf.mxu0
        %v1926 = vand.u32 %v1392, 4294901760
        %1927 = vmatmul.f32.gmra.mxu0 %v1926
        %v1928 = vpop.f32.mrf.mxu0
        %v1929 = vadd.f32 %v1840, %v1928
        %v1930 = vand.u32 %v1395, 4294901760
        %1931 = vmatmul.f32.gmra.mxu0 %v1930
        %v1932 = vpop.f32.mrf.mxu0
        %v1933 = vand.u32 %v1398, 4294901760
        %1934 = vmatmul.f32.gmra.mxu0 %v1933
        %v1935 = vpop.f32.mrf.mxu0
        %v1936 = vadd.f32 %v1851, %v1935
        %v1937 = vand.u32 %v1401, 4294901760
        %1938 = vmatmul.f32.gmra.mxu0 %v1937
        %v1939 = vpop.f32.mrf.mxu0
        %1940 = vdwg.mxu0
        %1941 = vmatpush.msra.mxu0 0.0
        %1942 = vmatpush.msra.mxu0 0.0
        %1943 = vmatpush.msra.mxu0 0.0
        %1944 = vmatpush.msra.mxu0 0.0
        %1945 = vmatpush.msra.mxu0 0.0
        %1946 = vmatpush.msra.mxu0 0.0
        %1947 = vmatpush.msra.mxu0 0.0
        %1948 = vmatpush.msra.mxu0 0.0
        %1949 = vmatpush.msra.mxu0 0.0
        %1950 = vmatpush.msra.mxu0 0.0
        %1951 = vmatpush.msra.mxu0 0.0
        %1952 = vmatpush.msra.mxu0 0.0
        %1953 = vmatpush.msra.mxu0 0.0
        %1954 = vmatpush.msra.mxu0 0.0
        %1955 = vmatpush.msra.mxu0 0.0
        %v1956 = vand.u32 %v430, 4294901760
        %1957 = vmatpush.msra.mxu0 %v1956
        %v1958 = vand.u32 %v1350, 4294901760
        %1959 = vmatmul.f32.gmra.mxu0 %v1958
        %v1960 = vpop.f32.mrf.mxu0
        %v1961 = vadd.f32 %v1880, %v1960
        %v1962 = vand.u32 %v1353, 4294901760
        %1963 = vmatmul.f32.gmra.mxu0 %v1962
        %v1964 = vpop.f32.mrf.mxu0
        %v1965 = vand.u32 %v1356, 4294901760
        %1966 = vmatmul.f32.gmra.mxu0 %v1965
        %v1967 = vpop.f32.mrf.mxu0
        %v1968 = vadd.f32 %v1887, %v1967
        %v1969 = vand.u32 %v1359, 4294901760
        %1970 = vmatmul.f32.gmra.mxu0 %v1969
        %v1971 = vpop.f32.mrf.mxu0
        %v1972 = vand.u32 %v1362, 4294901760
        %1973 = vmatmul.f32.gmra.mxu0 %v1972
        %v1974 = vpop.f32.mrf.mxu0
        %v1975 = vadd.f32 %v1894, %v1974
        %v1976 = vand.u32 %v1365, 4294901760
        %1977 = vmatmul.f32.gmra.mxu0 %v1976
        %v1978 = vpop.f32.mrf.mxu0
        %v1979 = vand.u32 %v1368, 4294901760
        %1980 = vmatmul.f32.gmra.mxu0 %v1979
        %v1981 = vpop.f32.mrf.mxu0
        %v1982 = vadd.f32 %v1901, %v1981
        %v1983 = vand.u32 %v1371, 4294901760
        %1984 = vmatmul.f32.gmra.mxu0 %v1983
        %v1985 = vpop.f32.mrf.mxu0
        %v1986 = vand.u32 %v1374, 4294901760
        %1987 = vmatmul.f32.gmra.mxu0 %v1986
        %v1988 = vpop.f32.mrf.mxu0
        %v1989 = vadd.f32 %v1908, %v1988
        %v1990 = vand.u32 %v1377, 4294901760
        %1991 = vmatmul.f32.gmra.mxu0 %v1990
        %v1992 = vpop.f32.mrf.mxu0
        %v1993 = vand.u32 %v1380, 4294901760
        %1994 = vmatmul.f32.gmra.mxu0 %v1993
        %v1995 = vpop.f32.mrf.mxu0
        %v1996 = vadd.f32 %v1915, %v1995
        %v1997 = vand.u32 %v1383, 4294901760
        %1998 = vmatmul.f32.gmra.mxu0 %v1997
        %v1999 = vpop.f32.mrf.mxu0
        %v2000 = vand.u32 %v1386, 4294901760
        %2001 = vmatmul.f32.gmra.mxu0 %v2000
        %v2002 = vpop.f32.mrf.mxu0
        %v2003 = vadd.f32 %v1922, %v2002
        %v2004 = vand.u32 %v1389, 4294901760
        %2005 = vmatmul.f32.gmra.mxu0 %v2004
        %v2006 = vpop.f32.mrf.mxu0
        %v2007 = vand.u32 %v1392, 4294901760
        %2008 = vmatmul.f32.gmra.mxu0 %v2007
        %v2009 = vpop.f32.mrf.mxu0
        %v2010 = vadd.f32 %v1929, %v2009
        %v2011 = vand.u32 %v1395, 4294901760
        %2012 = vmatmul.f32.gmra.mxu0 %v2011
        %v2013 = vpop.f32.mrf.mxu0
        %v2014 = vand.u32 %v1398, 4294901760
        %2015 = vmatmul.f32.gmra.mxu0 %v2014
        %v2016 = vpop.f32.mrf.mxu0
        %v2017 = vadd.f32 %v1936, %v2016
        %v2018 = vand.u32 %v1401, 4294901760
        %2019 = vmatmul.f32.gmra.mxu0 %v2018
        %v2020 = vpop.f32.mrf.mxu0
        %2021 = vdwg.mxu0
        %v2022 = vmax.f32 %v1961, 0.0
        %v2023 = vmax.f32 %v1968, 0.0
        %v2024 = vmax.f32 %v1975, 0.0
        %v2025 = vmax.f32 %v1982, 0.0
        %v2026 = vmax.f32 %v1989, 0.0
        %v2027 = vmax.f32 %v1996, 0.0
        %v2028 = vmax.f32 %v2003, 0.0
        %v2029 = vmax.f32 %v2010, 0.0
        %v2030 = vmax.f32 %v2017, 0.0
        %v2031 = vsel 1, 0.0, %v2022
        %v2032 = vsel 0, 0.0, %v2023
        %v2033 = vsel 0, 0.0, %v2024
        %v2034 = vsel 0, 0.0, %v2025
        %v2035 = vsel 0, 0.0, %v2026
        %v2036 = vsel 0, 0.0, %v2027
        %v2037 = vsel 0, 0.0, %v2028
        %v2038 = vsel 0, 0.0, %v2029
        %v2039 = vsel 0, 0.0, %v2030
        %v2040 = vperm.slane %v340, 1
        %v2041 = vmul.f32 %v2031, %v2040
        %v2042 = vmul.f32 %v2032, %v2040
        %v2043 = vmul.f32 %v2033, %v2040
        %v2044 = vmul.f32 %v2034, %v2040
        %v2045 = vmul.f32 %v2035, %v2040
        %v2046 = vmul.f32 %v2036, %v2040
        %v2047 = vmul.f32 %v2037, %v2040
        %v2048 = vmul.f32 %v2038, %v2040
        %v2049 = vadd.f32 %v1322, %v2041
        %v2050 = vadd.f32 %v1323, %v2042
        %v2051 = vadd.f32 %v1324, %v2043
        %v2052 = vadd.f32 %v1325, %v2044
        %v2053 = vadd.f32 %v1326, %v2045
        %v2054 = vadd.f32 %v1327, %v2046
        %v2055 = vadd.f32 %v1328, %v2047
        %v2056 = vadd.f32 %v1329, %v2048
        %v2057 = vperm.slane %v340, 7
        %v2058 = vmul.f32 %v2032, %v2057
        %v2059 = vmul.f32 %v2033, %v2057
        %v2060 = vmul.f32 %v2034, %v2057
        %v2061 = vmul.f32 %v2035, %v2057
        %v2062 = vmul.f32 %v2036, %v2057
        %v2063 = vmul.f32 %v2037, %v2057
        %v2064 = vmul.f32 %v2038, %v2057
        %v2065 = vmul.f32 %v2039, %v2057
        %v2066 = vadd.f32 %v2049, %v2058
        %v2067 = vadd.f32 %v2050, %v2059
        %v2068 = vadd.f32 %v2051, %v2060
        %v2069 = vadd.f32 %v2052, %v2061
        %v2070 = vadd.f32 %v2053, %v2062
        %v2071 = vadd.f32 %v2054, %v2063
        %v2072 = vadd.f32 %v2055, %v2064
        %v2073 = vadd.f32 %v2056, %v2065
        %s2074 = scalar_lea.vmem %s323, 288
        %v2075 = vld [vmem:[%s2074] sm:$0xff]
        %v2076 = vld [vmem:[%s2074 + $0x8] sm:$0xff]
        %v2077 = vld [vmem:[%s2074 + $0x10] sm:$0xff]
        %v2078 = vld [vmem:[%s2074 + $0x18] sm:$0xff]
        %v2079 = vld [vmem:[%s2074 + $0x20] sm:$0xff]
        %v2080 = vld [vmem:[%s2074 + $0x28] sm:$0xff]
        %v2081 = vld [vmem:[%s2074 + $0x30] sm:$0xff]
        %v2082 = vld [vmem:[%s2074 + $0x38] sm:$0xff]
        %v2083 = vld [vmem:[%s2074 + $0x40] sm:$0xff]
        %v2084 = vld [vmem:[%s2074 + $0x48] sm:$0xff]
        %v2085 = vld [vmem:[%s2074 + $0x50] sm:$0xff]
        %v2086 = vld [vmem:[%s2074 + $0x58] sm:$0xff]
        %v2087 = vld [vmem:[%s2074 + $0x60] sm:$0xff]
        %v2088 = vld [vmem:[%s2074 + $0x68] sm:$0xff]
        %v2089 = vld [vmem:[%s2074 + $0x70] sm:$0xff]
        %v2090 = vld [vmem:[%s2074 + $0x78] sm:$0xff]
        %v2091 = vld [vmem:[%s2074 + $0x80] sm:$0xff]
        %v2092 = vld [vmem:[%s2074 + $0x88] sm:$0xff]
        %v2094 = vsel %vm373, %v2075, 0
        %v2097 = vsel %vm373, %v2076, 0
        %v2100 = vsel %vm373, %v2077, 0
        %v2103 = vsel %vm373, %v2078, 0
        %v2106 = vsel %vm373, %v2079, 0
        %v2109 = vsel %vm373, %v2080, 0
        %v2112 = vsel %vm373, %v2081, 0
        %v2115 = vsel %vm373, %v2082, 0
        %v2118 = vsel %vm373, %v2083, 0
        %v2121 = vsel %vm373, %v2084, 0
        %v2124 = vsel %vm373, %v2085, 0
        %v2127 = vsel %vm373, %v2086, 0
        %v2130 = vsel %vm373, %v2087, 0
        %v2133 = vsel %vm373, %v2088, 0
        %v2136 = vsel %vm373, %v2089, 0
        %v2139 = vsel %vm373, %v2090, 0
        %v2142 = vsel %vm373, %v2091, 0
        %v2145 = vsel %vm373, %v2092, 0
        %2147 = vmatpush.msra.mxu0 0.0
        %2148 = vmatpush.msra.mxu0 0.0
        %2149 = vmatpush.msra.mxu0 0.0
        %2150 = vmatpush.msra.mxu0 0.0
        %2151 = vmatpush.msra.mxu0 0.0
        %2152 = vmatpush.msra.mxu0 0.0
        %2153 = vmatpush.msra.mxu0 0.0
        %2154 = vmatpush.msra.mxu0 0.0
        %2155 = vmatpush.msra.mxu0 0.0
        %2156 = vmatpush.msra.mxu0 0.0
        %2157 = vmatpush.msra.mxu0 0.0
        %2158 = vmatpush.msra.mxu0 0.0
        %2159 = vmatpush.msra.mxu0 0.0
        %2160 = vmatpush.msra.mxu0 0.0
        %2161 = vmatpush.msra.mxu0 0.0
        %v2162 = vand.u32 %v430, 4294901760
        %2163 = vmatpush.msra.mxu0 %v2162
        %v2164 = vand.u32 %v2094, 4294901760
        %v2165 = vsub.f32 %v2094, %v2164
        %v2166 = vand.u32 %v2165, 4294901760
        %v2167 = vsub.f32 %v2165, %v2166
        %v2168 = vand.u32 %v2167, 4294901760
        %2169 = vmatmul.f32.gmra.mxu0 %v2168
        %v2170 = vpop.f32.mrf.mxu0
        %v2171 = vadd.f32 %v371, %v2170
        %v2172 = vand.u32 %v2097, 4294901760
        %v2173 = vsub.f32 %v2097, %v2172
        %v2174 = vand.u32 %v2173, 4294901760
        %v2175 = vsub.f32 %v2173, %v2174
        %v2176 = vand.u32 %v2175, 4294901760
        %2177 = vmatmul.f32.gmra.mxu0 %v2176
        %v2178 = vpop.f32.mrf.mxu0
        %v2179 = vadd.f32 %v371, %v2178
        %v2180 = vand.u32 %v2100, 4294901760
        %v2181 = vsub.f32 %v2100, %v2180
        %v2182 = vand.u32 %v2181, 4294901760
        %v2183 = vsub.f32 %v2181, %v2182
        %v2184 = vand.u32 %v2183, 4294901760
        %2185 = vmatmul.f32.gmra.mxu0 %v2184
        %v2186 = vpop.f32.mrf.mxu0
        %v2187 = vadd.f32 %v371, %v2186
        %v2188 = vand.u32 %v2103, 4294901760
        %v2189 = vsub.f32 %v2103, %v2188
        %v2190 = vand.u32 %v2189, 4294901760
        %v2191 = vsub.f32 %v2189, %v2190
        %v2192 = vand.u32 %v2191, 4294901760
        %2193 = vmatmul.f32.gmra.mxu0 %v2192
        %v2194 = vpop.f32.mrf.mxu0
        %v2195 = vadd.f32 %v371, %v2194
        %v2196 = vand.u32 %v2106, 4294901760
        %v2197 = vsub.f32 %v2106, %v2196
        %v2198 = vand.u32 %v2197, 4294901760
        %v2199 = vsub.f32 %v2197, %v2198
        %v2200 = vand.u32 %v2199, 4294901760
        %2201 = vmatmul.f32.gmra.mxu0 %v2200
        %v2202 = vpop.f32.mrf.mxu0
        %v2203 = vadd.f32 %v371, %v2202
        %v2204 = vand.u32 %v2109, 4294901760
        %v2205 = vsub.f32 %v2109, %v2204
        %v2206 = vand.u32 %v2205, 4294901760
        %v2207 = vsub.f32 %v2205, %v2206
        %v2208 = vand.u32 %v2207, 4294901760
        %2209 = vmatmul.f32.gmra.mxu0 %v2208
        %v2210 = vpop.f32.mrf.mxu0
        %v2211 = vadd.f32 %v371, %v2210
        %v2212 = vand.u32 %v2112, 4294901760
        %v2213 = vsub.f32 %v2112, %v2212
        %v2214 = vand.u32 %v2213, 4294901760
        %v2215 = vsub.f32 %v2213, %v2214
        %v2216 = vand.u32 %v2215, 4294901760
        %2217 = vmatmul.f32.gmra.mxu0 %v2216
        %v2218 = vpop.f32.mrf.mxu0
        %v2219 = vadd.f32 %v371, %v2218
        %v2220 = vand.u32 %v2115, 4294901760
        %v2221 = vsub.f32 %v2115, %v2220
        %v2222 = vand.u32 %v2221, 4294901760
        %v2223 = vsub.f32 %v2221, %v2222
        %v2224 = vand.u32 %v2223, 4294901760
        %2225 = vmatmul.f32.gmra.mxu0 %v2224
        %v2226 = vpop.f32.mrf.mxu0
        %v2227 = vadd.f32 %v371, %v2226
        %v2228 = vand.u32 %v2118, 4294901760
        %v2229 = vsub.f32 %v2118, %v2228
        %v2230 = vand.u32 %v2229, 4294901760
        %v2231 = vsub.f32 %v2229, %v2230
        %v2232 = vand.u32 %v2231, 4294901760
        %2233 = vmatmul.f32.gmra.mxu0 %v2232
        %v2234 = vpop.f32.mrf.mxu0
        %v2235 = vadd.f32 %v371, %v2234
        %v2236 = vand.u32 %v2121, 4294901760
        %v2237 = vsub.f32 %v2121, %v2236
        %v2238 = vand.u32 %v2237, 4294901760
        %v2239 = vsub.f32 %v2237, %v2238
        %v2240 = vand.u32 %v2239, 4294901760
        %2241 = vmatmul.f32.gmra.mxu0 %v2240
        %v2242 = vpop.f32.mrf.mxu0
        %v2243 = vadd.f32 %v371, %v2242
        %v2244 = vand.u32 %v2124, 4294901760
        %v2245 = vsub.f32 %v2124, %v2244
        %v2246 = vand.u32 %v2245, 4294901760
        %v2247 = vsub.f32 %v2245, %v2246
        %v2248 = vand.u32 %v2247, 4294901760
        %2249 = vmatmul.f32.gmra.mxu0 %v2248
        %v2250 = vpop.f32.mrf.mxu0
        %v2251 = vadd.f32 %v371, %v2250
        %v2252 = vand.u32 %v2127, 4294901760
        %v2253 = vsub.f32 %v2127, %v2252
        %v2254 = vand.u32 %v2253, 4294901760
        %v2255 = vsub.f32 %v2253, %v2254
        %v2256 = vand.u32 %v2255, 4294901760
        %2257 = vmatmul.f32.gmra.mxu0 %v2256
        %v2258 = vpop.f32.mrf.mxu0
        %v2259 = vadd.f32 %v371, %v2258
        %v2260 = vand.u32 %v2130, 4294901760
        %v2261 = vsub.f32 %v2130, %v2260
        %v2262 = vand.u32 %v2261, 4294901760
        %v2263 = vsub.f32 %v2261, %v2262
        %v2264 = vand.u32 %v2263, 4294901760
        %2265 = vmatmul.f32.gmra.mxu0 %v2264
        %v2266 = vpop.f32.mrf.mxu0
        %v2267 = vadd.f32 %v371, %v2266
        %v2268 = vand.u32 %v2133, 4294901760
        %v2269 = vsub.f32 %v2133, %v2268
        %v2270 = vand.u32 %v2269, 4294901760
        %v2271 = vsub.f32 %v2269, %v2270
        %v2272 = vand.u32 %v2271, 4294901760
        %2273 = vmatmul.f32.gmra.mxu0 %v2272
        %v2274 = vpop.f32.mrf.mxu0
        %v2275 = vadd.f32 %v371, %v2274
        %v2276 = vand.u32 %v2136, 4294901760
        %v2277 = vsub.f32 %v2136, %v2276
        %v2278 = vand.u32 %v2277, 4294901760
        %v2279 = vsub.f32 %v2277, %v2278
        %v2280 = vand.u32 %v2279, 4294901760
        %2281 = vmatmul.f32.gmra.mxu0 %v2280
        %v2282 = vpop.f32.mrf.mxu0
        %v2283 = vadd.f32 %v371, %v2282
        %v2284 = vand.u32 %v2139, 4294901760
        %v2285 = vsub.f32 %v2139, %v2284
        %v2286 = vand.u32 %v2285, 4294901760
        %v2287 = vsub.f32 %v2285, %v2286
        %v2288 = vand.u32 %v2287, 4294901760
        %2289 = vmatmul.f32.gmra.mxu0 %v2288
        %v2290 = vpop.f32.mrf.mxu0
        %v2291 = vadd.f32 %v371, %v2290
        %v2292 = vand.u32 %v2142, 4294901760
        %v2293 = vsub.f32 %v2142, %v2292
        %v2294 = vand.u32 %v2293, 4294901760
        %v2295 = vsub.f32 %v2293, %v2294
        %v2296 = vand.u32 %v2295, 4294901760
        %2297 = vmatmul.f32.gmra.mxu0 %v2296
        %v2298 = vpop.f32.mrf.mxu0
        %v2299 = vand.u32 %v2145, 4294901760
        %v2300 = vsub.f32 %v2145, %v2299
        %v2301 = vand.u32 %v2300, 4294901760
        %v2302 = vsub.f32 %v2300, %v2301
        %v2303 = vand.u32 %v2302, 4294901760
        %2304 = vmatmul.f32.gmra.mxu0 %v2303
        %v2305 = vpop.f32.mrf.mxu0
        %2306 = vdwg.mxu0
        %2307 = vmatpush.msra.mxu0 0.0
        %2308 = vmatpush.msra.mxu0 0.0
        %2309 = vmatpush.msra.mxu0 0.0
        %2310 = vmatpush.msra.mxu0 0.0
        %2311 = vmatpush.msra.mxu0 0.0
        %2312 = vmatpush.msra.mxu0 0.0
        %2313 = vmatpush.msra.mxu0 0.0
        %2314 = vmatpush.msra.mxu0 0.0
        %2315 = vmatpush.msra.mxu0 0.0
        %2316 = vmatpush.msra.mxu0 0.0
        %2317 = vmatpush.msra.mxu0 0.0
        %2318 = vmatpush.msra.mxu0 0.0
        %2319 = vmatpush.msra.mxu0 0.0
        %2320 = vmatpush.msra.mxu0 0.0
        %2321 = vmatpush.msra.mxu0 0.0
        %v2322 = vand.u32 %v430, 4294901760
        %v2323 = vsub.f32 %v430, %v2322
        %v2324 = vand.u32 %v2323, 4294901760
        %v2325 = vsub.f32 %v2323, %v2324
        %v2326 = vand.u32 %v2325, 4294901760
        %2327 = vmatpush.msra.mxu0 %v2326
        %v2328 = vand.u32 %v2094, 4294901760
        %2329 = vmatmul.f32.gmra.mxu0 %v2328
        %v2330 = vpop.f32.mrf.mxu0
        %v2331 = vadd.f32 %v2171, %v2330
        %v2332 = vand.u32 %v2097, 4294901760
        %2333 = vmatmul.f32.gmra.mxu0 %v2332
        %v2334 = vpop.f32.mrf.mxu0
        %v2335 = vadd.f32 %v2179, %v2334
        %v2336 = vand.u32 %v2100, 4294901760
        %2337 = vmatmul.f32.gmra.mxu0 %v2336
        %v2338 = vpop.f32.mrf.mxu0
        %v2339 = vadd.f32 %v2187, %v2338
        %v2340 = vand.u32 %v2103, 4294901760
        %2341 = vmatmul.f32.gmra.mxu0 %v2340
        %v2342 = vpop.f32.mrf.mxu0
        %v2343 = vadd.f32 %v2195, %v2342
        %v2344 = vand.u32 %v2106, 4294901760
        %2345 = vmatmul.f32.gmra.mxu0 %v2344
        %v2346 = vpop.f32.mrf.mxu0
        %v2347 = vadd.f32 %v2203, %v2346
        %v2348 = vand.u32 %v2109, 4294901760
        %2349 = vmatmul.f32.gmra.mxu0 %v2348
        %v2350 = vpop.f32.mrf.mxu0
        %v2351 = vadd.f32 %v2211, %v2350
        %v2352 = vand.u32 %v2112, 4294901760
        %2353 = vmatmul.f32.gmra.mxu0 %v2352
        %v2354 = vpop.f32.mrf.mxu0
        %v2355 = vadd.f32 %v2219, %v2354
        %v2356 = vand.u32 %v2115, 4294901760
        %2357 = vmatmul.f32.gmra.mxu0 %v2356
        %v2358 = vpop.f32.mrf.mxu0
        %v2359 = vadd.f32 %v2227, %v2358
        %v2360 = vand.u32 %v2118, 4294901760
        %2361 = vmatmul.f32.gmra.mxu0 %v2360
        %v2362 = vpop.f32.mrf.mxu0
        %v2363 = vadd.f32 %v2235, %v2362
        %v2364 = vand.u32 %v2121, 4294901760
        %2365 = vmatmul.f32.gmra.mxu0 %v2364
        %v2366 = vpop.f32.mrf.mxu0
        %v2367 = vadd.f32 %v2243, %v2366
        %v2368 = vand.u32 %v2124, 4294901760
        %2369 = vmatmul.f32.gmra.mxu0 %v2368
        %v2370 = vpop.f32.mrf.mxu0
        %v2371 = vadd.f32 %v2251, %v2370
        %v2372 = vand.u32 %v2127, 4294901760
        %2373 = vmatmul.f32.gmra.mxu0 %v2372
        %v2374 = vpop.f32.mrf.mxu0
        %v2375 = vadd.f32 %v2259, %v2374
        %v2376 = vand.u32 %v2130, 4294901760
        %2377 = vmatmul.f32.gmra.mxu0 %v2376
        %v2378 = vpop.f32.mrf.mxu0
        %v2379 = vadd.f32 %v2267, %v2378
        %v2380 = vand.u32 %v2133, 4294901760
        %2381 = vmatmul.f32.gmra.mxu0 %v2380
        %v2382 = vpop.f32.mrf.mxu0
        %v2383 = vadd.f32 %v2275, %v2382
        %v2384 = vand.u32 %v2136, 4294901760
        %2385 = vmatmul.f32.gmra.mxu0 %v2384
        %v2386 = vpop.f32.mrf.mxu0
        %v2387 = vadd.f32 %v2283, %v2386
        %v2388 = vand.u32 %v2139, 4294901760
        %2389 = vmatmul.f32.gmra.mxu0 %v2388
        %v2390 = vpop.f32.mrf.mxu0
        %v2391 = vadd.f32 %v2291, %v2390
        %v2392 = vand.u32 %v2142, 4294901760
        %2393 = vmatmul.f32.gmra.mxu0 %v2392
        %v2394 = vpop.f32.mrf.mxu0
        %v2395 = vand.u32 %v2145, 4294901760
        %2396 = vmatmul.f32.gmra.mxu0 %v2395
        %v2397 = vpop.f32.mrf.mxu0
        %2398 = vdwg.mxu0
        %2399 = vmatpush.msra.mxu0 0.0
        %2400 = vmatpush.msra.mxu0 0.0
        %2401 = vmatpush.msra.mxu0 0.0
        %2402 = vmatpush.msra.mxu0 0.0
        %2403 = vmatpush.msra.mxu0 0.0
        %2404 = vmatpush.msra.mxu0 0.0
        %2405 = vmatpush.msra.mxu0 0.0
        %2406 = vmatpush.msra.mxu0 0.0
        %2407 = vmatpush.msra.mxu0 0.0
        %2408 = vmatpush.msra.mxu0 0.0
        %2409 = vmatpush.msra.mxu0 0.0
        %2410 = vmatpush.msra.mxu0 0.0
        %2411 = vmatpush.msra.mxu0 0.0
        %2412 = vmatpush.msra.mxu0 0.0
        %2413 = vmatpush.msra.mxu0 0.0
        %v2414 = vand.u32 %v430, 4294901760
        %v2415 = vsub.f32 %v430, %v2414
        %2416 = vmatpush.msra.mxu0 %v2415
        %v2417 = vand.u32 %v2094, 4294901760
        %v2418 = vsub.f32 %v2094, %v2417
        %2419 = vmatmul.f32.gmra.mxu0 %v2418
        %v2420 = vpop.f32.mrf.mxu0
        %v2421 = vadd.f32 %v2331, %v2420
        %v2422 = vand.u32 %v2097, 4294901760
        %v2423 = vsub.f32 %v2097, %v2422
        %2424 = vmatmul.f32.gmra.mxu0 %v2423
        %v2425 = vpop.f32.mrf.mxu0
        %v2426 = vadd.f32 %v2335, %v2425
        %v2427 = vand.u32 %v2100, 4294901760
        %v2428 = vsub.f32 %v2100, %v2427
        %2429 = vmatmul.f32.gmra.mxu0 %v2428
        %v2430 = vpop.f32.mrf.mxu0
        %v2431 = vadd.f32 %v2339, %v2430
        %v2432 = vand.u32 %v2103, 4294901760
        %v2433 = vsub.f32 %v2103, %v2432
        %2434 = vmatmul.f32.gmra.mxu0 %v2433
        %v2435 = vpop.f32.mrf.mxu0
        %v2436 = vadd.f32 %v2343, %v2435
        %v2437 = vand.u32 %v2106, 4294901760
        %v2438 = vsub.f32 %v2106, %v2437
        %2439 = vmatmul.f32.gmra.mxu0 %v2438
        %v2440 = vpop.f32.mrf.mxu0
        %v2441 = vadd.f32 %v2347, %v2440
        %v2442 = vand.u32 %v2109, 4294901760
        %v2443 = vsub.f32 %v2109, %v2442
        %2444 = vmatmul.f32.gmra.mxu0 %v2443
        %v2445 = vpop.f32.mrf.mxu0
        %v2446 = vadd.f32 %v2351, %v2445
        %v2447 = vand.u32 %v2112, 4294901760
        %v2448 = vsub.f32 %v2112, %v2447
        %2449 = vmatmul.f32.gmra.mxu0 %v2448
        %v2450 = vpop.f32.mrf.mxu0
        %v2451 = vadd.f32 %v2355, %v2450
        %v2452 = vand.u32 %v2115, 4294901760
        %v2453 = vsub.f32 %v2115, %v2452
        %2454 = vmatmul.f32.gmra.mxu0 %v2453
        %v2455 = vpop.f32.mrf.mxu0
        %v2456 = vadd.f32 %v2359, %v2455
        %v2457 = vand.u32 %v2118, 4294901760
        %v2458 = vsub.f32 %v2118, %v2457
        %2459 = vmatmul.f32.gmra.mxu0 %v2458
        %v2460 = vpop.f32.mrf.mxu0
        %v2461 = vadd.f32 %v2363, %v2460
        %v2462 = vand.u32 %v2121, 4294901760
        %v2463 = vsub.f32 %v2121, %v2462
        %2464 = vmatmul.f32.gmra.mxu0 %v2463
        %v2465 = vpop.f32.mrf.mxu0
        %v2466 = vadd.f32 %v2367, %v2465
        %v2467 = vand.u32 %v2124, 4294901760
        %v2468 = vsub.f32 %v2124, %v2467
        %2469 = vmatmul.f32.gmra.mxu0 %v2468
        %v2470 = vpop.f32.mrf.mxu0
        %v2471 = vadd.f32 %v2371, %v2470
        %v2472 = vand.u32 %v2127, 4294901760
        %v2473 = vsub.f32 %v2127, %v2472
        %2474 = vmatmul.f32.gmra.mxu0 %v2473
        %v2475 = vpop.f32.mrf.mxu0
        %v2476 = vadd.f32 %v2375, %v2475
        %v2477 = vand.u32 %v2130, 4294901760
        %v2478 = vsub.f32 %v2130, %v2477
        %2479 = vmatmul.f32.gmra.mxu0 %v2478
        %v2480 = vpop.f32.mrf.mxu0
        %v2481 = vadd.f32 %v2379, %v2480
        %v2482 = vand.u32 %v2133, 4294901760
        %v2483 = vsub.f32 %v2133, %v2482
        %2484 = vmatmul.f32.gmra.mxu0 %v2483
        %v2485 = vpop.f32.mrf.mxu0
        %v2486 = vadd.f32 %v2383, %v2485
        %v2487 = vand.u32 %v2136, 4294901760
        %v2488 = vsub.f32 %v2136, %v2487
        %2489 = vmatmul.f32.gmra.mxu0 %v2488
        %v2490 = vpop.f32.mrf.mxu0
        %v2491 = vadd.f32 %v2387, %v2490
        %v2492 = vand.u32 %v2139, 4294901760
        %v2493 = vsub.f32 %v2139, %v2492
        %2494 = vmatmul.f32.gmra.mxu0 %v2493
        %v2495 = vpop.f32.mrf.mxu0
        %v2496 = vadd.f32 %v2391, %v2495
        %v2497 = vand.u32 %v2142, 4294901760
        %v2498 = vsub.f32 %v2142, %v2497
        %2499 = vmatmul.f32.gmra.mxu0 %v2498
        %v2500 = vpop.f32.mrf.mxu0
        %v2501 = vand.u32 %v2145, 4294901760
        %v2502 = vsub.f32 %v2145, %v2501
        %2503 = vmatmul.f32.gmra.mxu0 %v2502
        %v2504 = vpop.f32.mrf.mxu0
        %2505 = vdwg.mxu0
        %2506 = vmatpush.msra.mxu0 0.0
        %2507 = vmatpush.msra.mxu0 0.0
        %2508 = vmatpush.msra.mxu0 0.0
        %2509 = vmatpush.msra.mxu0 0.0
        %2510 = vmatpush.msra.mxu0 0.0
        %2511 = vmatpush.msra.mxu0 0.0
        %2512 = vmatpush.msra.mxu0 0.0
        %2513 = vmatpush.msra.mxu0 0.0
        %2514 = vmatpush.msra.mxu0 0.0
        %2515 = vmatpush.msra.mxu0 0.0
        %2516 = vmatpush.msra.mxu0 0.0
        %2517 = vmatpush.msra.mxu0 0.0
        %2518 = vmatpush.msra.mxu0 0.0
        %2519 = vmatpush.msra.mxu0 0.0
        %2520 = vmatpush.msra.mxu0 0.0
        %v2521 = vand.u32 %v430, 4294901760
        %2522 = vmatpush.msra.mxu0 %v2521
        %v2523 = vand.u32 %v2094, 4294901760
        %v2524 = vsub.f32 %v2094, %v2523
        %v2525 = vand.u32 %v2524, 4294901760
        %2526 = vmatmul.f32.gmra.mxu0 %v2525
        %v2527 = vpop.f32.mrf.mxu0
        %v2528 = vadd.f32 %v2421, %v2527
        %v2529 = vand.u32 %v2097, 4294901760
        %v2530 = vsub.f32 %v2097, %v2529
        %v2531 = vand.u32 %v2530, 4294901760
        %2532 = vmatmul.f32.gmra.mxu0 %v2531
        %v2533 = vpop.f32.mrf.mxu0
        %v2534 = vadd.f32 %v2426, %v2533
        %v2535 = vand.u32 %v2100, 4294901760
        %v2536 = vsub.f32 %v2100, %v2535
        %v2537 = vand.u32 %v2536, 4294901760
        %2538 = vmatmul.f32.gmra.mxu0 %v2537
        %v2539 = vpop.f32.mrf.mxu0
        %v2540 = vadd.f32 %v2431, %v2539
        %v2541 = vand.u32 %v2103, 4294901760
        %v2542 = vsub.f32 %v2103, %v2541
        %v2543 = vand.u32 %v2542, 4294901760
        %2544 = vmatmul.f32.gmra.mxu0 %v2543
        %v2545 = vpop.f32.mrf.mxu0
        %v2546 = vadd.f32 %v2436, %v2545
        %v2547 = vand.u32 %v2106, 4294901760
        %v2548 = vsub.f32 %v2106, %v2547
        %v2549 = vand.u32 %v2548, 4294901760
        %2550 = vmatmul.f32.gmra.mxu0 %v2549
        %v2551 = vpop.f32.mrf.mxu0
        %v2552 = vadd.f32 %v2441, %v2551
        %v2553 = vand.u32 %v2109, 4294901760
        %v2554 = vsub.f32 %v2109, %v2553
        %v2555 = vand.u32 %v2554, 4294901760
        %2556 = vmatmul.f32.gmra.mxu0 %v2555
        %v2557 = vpop.f32.mrf.mxu0
        %v2558 = vadd.f32 %v2446, %v2557
        %v2559 = vand.u32 %v2112, 4294901760
        %v2560 = vsub.f32 %v2112, %v2559
        %v2561 = vand.u32 %v2560, 4294901760
        %2562 = vmatmul.f32.gmra.mxu0 %v2561
        %v2563 = vpop.f32.mrf.mxu0
        %v2564 = vadd.f32 %v2451, %v2563
        %v2565 = vand.u32 %v2115, 4294901760
        %v2566 = vsub.f32 %v2115, %v2565
        %v2567 = vand.u32 %v2566, 4294901760
        %2568 = vmatmul.f32.gmra.mxu0 %v2567
        %v2569 = vpop.f32.mrf.mxu0
        %v2570 = vadd.f32 %v2456, %v2569
        %v2571 = vand.u32 %v2118, 4294901760
        %v2572 = vsub.f32 %v2118, %v2571
        %v2573 = vand.u32 %v2572, 4294901760
        %2574 = vmatmul.f32.gmra.mxu0 %v2573
        %v2575 = vpop.f32.mrf.mxu0
        %v2576 = vadd.f32 %v2461, %v2575
        %v2577 = vand.u32 %v2121, 4294901760
        %v2578 = vsub.f32 %v2121, %v2577
        %v2579 = vand.u32 %v2578, 4294901760
        %2580 = vmatmul.f32.gmra.mxu0 %v2579
        %v2581 = vpop.f32.mrf.mxu0
        %v2582 = vadd.f32 %v2466, %v2581
        %v2583 = vand.u32 %v2124, 4294901760
        %v2584 = vsub.f32 %v2124, %v2583
        %v2585 = vand.u32 %v2584, 4294901760
        %2586 = vmatmul.f32.gmra.mxu0 %v2585
        %v2587 = vpop.f32.mrf.mxu0
        %v2588 = vadd.f32 %v2471, %v2587
        %v2589 = vand.u32 %v2127, 4294901760
        %v2590 = vsub.f32 %v2127, %v2589
        %v2591 = vand.u32 %v2590, 4294901760
        %2592 = vmatmul.f32.gmra.mxu0 %v2591
        %v2593 = vpop.f32.mrf.mxu0
        %v2594 = vadd.f32 %v2476, %v2593
        %v2595 = vand.u32 %v2130, 4294901760
        %v2596 = vsub.f32 %v2130, %v2595
        %v2597 = vand.u32 %v2596, 4294901760
        %2598 = vmatmul.f32.gmra.mxu0 %v2597
        %v2599 = vpop.f32.mrf.mxu0
        %v2600 = vadd.f32 %v2481, %v2599
        %v2601 = vand.u32 %v2133, 4294901760
        %v2602 = vsub.f32 %v2133, %v2601
        %v2603 = vand.u32 %v2602, 4294901760
        %2604 = vmatmul.f32.gmra.mxu0 %v2603
        %v2605 = vpop.f32.mrf.mxu0
        %v2606 = vadd.f32 %v2486, %v2605
        %v2607 = vand.u32 %v2136, 4294901760
        %v2608 = vsub.f32 %v2136, %v2607
        %v2609 = vand.u32 %v2608, 4294901760
        %2610 = vmatmul.f32.gmra.mxu0 %v2609
        %v2611 = vpop.f32.mrf.mxu0
        %v2612 = vadd.f32 %v2491, %v2611
        %v2613 = vand.u32 %v2139, 4294901760
        %v2614 = vsub.f32 %v2139, %v2613
        %v2615 = vand.u32 %v2614, 4294901760
        %2616 = vmatmul.f32.gmra.mxu0 %v2615
        %v2617 = vpop.f32.mrf.mxu0
        %v2618 = vadd.f32 %v2496, %v2617
        %v2619 = vand.u32 %v2142, 4294901760
        %v2620 = vsub.f32 %v2142, %v2619
        %v2621 = vand.u32 %v2620, 4294901760
        %2622 = vmatmul.f32.gmra.mxu0 %v2621
        %v2623 = vpop.f32.mrf.mxu0
        %v2624 = vand.u32 %v2145, 4294901760
        %v2625 = vsub.f32 %v2145, %v2624
        %v2626 = vand.u32 %v2625, 4294901760
        %2627 = vmatmul.f32.gmra.mxu0 %v2626
        %v2628 = vpop.f32.mrf.mxu0
        %2629 = vdwg.mxu0
        %2630 = vmatpush.msra.mxu0 0.0
        %2631 = vmatpush.msra.mxu0 0.0
        %2632 = vmatpush.msra.mxu0 0.0
        %2633 = vmatpush.msra.mxu0 0.0
        %2634 = vmatpush.msra.mxu0 0.0
        %2635 = vmatpush.msra.mxu0 0.0
        %2636 = vmatpush.msra.mxu0 0.0
        %2637 = vmatpush.msra.mxu0 0.0
        %2638 = vmatpush.msra.mxu0 0.0
        %2639 = vmatpush.msra.mxu0 0.0
        %2640 = vmatpush.msra.mxu0 0.0
        %2641 = vmatpush.msra.mxu0 0.0
        %2642 = vmatpush.msra.mxu0 0.0
        %2643 = vmatpush.msra.mxu0 0.0
        %2644 = vmatpush.msra.mxu0 0.0
        %v2645 = vand.u32 %v430, 4294901760
        %v2646 = vsub.f32 %v430, %v2645
        %v2647 = vand.u32 %v2646, 4294901760
        %2648 = vmatpush.msra.mxu0 %v2647
        %v2649 = vand.u32 %v2094, 4294901760
        %2650 = vmatmul.f32.gmra.mxu0 %v2649
        %v2651 = vpop.f32.mrf.mxu0
        %v2652 = vadd.f32 %v2528, %v2651
        %v2653 = vand.u32 %v2097, 4294901760
        %2654 = vmatmul.f32.gmra.mxu0 %v2653
        %v2655 = vpop.f32.mrf.mxu0
        %v2656 = vadd.f32 %v2534, %v2655
        %v2657 = vand.u32 %v2100, 4294901760
        %2658 = vmatmul.f32.gmra.mxu0 %v2657
        %v2659 = vpop.f32.mrf.mxu0
        %v2660 = vadd.f32 %v2540, %v2659
        %v2661 = vand.u32 %v2103, 4294901760
        %2662 = vmatmul.f32.gmra.mxu0 %v2661
        %v2663 = vpop.f32.mrf.mxu0
        %v2664 = vadd.f32 %v2546, %v2663
        %v2665 = vand.u32 %v2106, 4294901760
        %2666 = vmatmul.f32.gmra.mxu0 %v2665
        %v2667 = vpop.f32.mrf.mxu0
        %v2668 = vadd.f32 %v2552, %v2667
        %v2669 = vand.u32 %v2109, 4294901760
        %2670 = vmatmul.f32.gmra.mxu0 %v2669
        %v2671 = vpop.f32.mrf.mxu0
        %v2672 = vadd.f32 %v2558, %v2671
        %v2673 = vand.u32 %v2112, 4294901760
        %2674 = vmatmul.f32.gmra.mxu0 %v2673
        %v2675 = vpop.f32.mrf.mxu0
        %v2676 = vadd.f32 %v2564, %v2675
        %v2677 = vand.u32 %v2115, 4294901760
        %2678 = vmatmul.f32.gmra.mxu0 %v2677
        %v2679 = vpop.f32.mrf.mxu0
        %v2680 = vadd.f32 %v2570, %v2679
        %v2681 = vand.u32 %v2118, 4294901760
        %2682 = vmatmul.f32.gmra.mxu0 %v2681
        %v2683 = vpop.f32.mrf.mxu0
        %v2684 = vadd.f32 %v2576, %v2683
        %v2685 = vand.u32 %v2121, 4294901760
        %2686 = vmatmul.f32.gmra.mxu0 %v2685
        %v2687 = vpop.f32.mrf.mxu0
        %v2688 = vadd.f32 %v2582, %v2687
        %v2689 = vand.u32 %v2124, 4294901760
        %2690 = vmatmul.f32.gmra.mxu0 %v2689
        %v2691 = vpop.f32.mrf.mxu0
        %v2692 = vadd.f32 %v2588, %v2691
        %v2693 = vand.u32 %v2127, 4294901760
        %2694 = vmatmul.f32.gmra.mxu0 %v2693
        %v2695 = vpop.f32.mrf.mxu0
        %v2696 = vadd.f32 %v2594, %v2695
        %v2697 = vand.u32 %v2130, 4294901760
        %2698 = vmatmul.f32.gmra.mxu0 %v2697
        %v2699 = vpop.f32.mrf.mxu0
        %v2700 = vadd.f32 %v2600, %v2699
        %v2701 = vand.u32 %v2133, 4294901760
        %2702 = vmatmul.f32.gmra.mxu0 %v2701
        %v2703 = vpop.f32.mrf.mxu0
        %v2704 = vadd.f32 %v2606, %v2703
        %v2705 = vand.u32 %v2136, 4294901760
        %2706 = vmatmul.f32.gmra.mxu0 %v2705
        %v2707 = vpop.f32.mrf.mxu0
        %v2708 = vadd.f32 %v2612, %v2707
        %v2709 = vand.u32 %v2139, 4294901760
        %2710 = vmatmul.f32.gmra.mxu0 %v2709
        %v2711 = vpop.f32.mrf.mxu0
        %v2712 = vadd.f32 %v2618, %v2711
        %v2713 = vand.u32 %v2142, 4294901760
        %2714 = vmatmul.f32.gmra.mxu0 %v2713
        %v2715 = vpop.f32.mrf.mxu0
        %v2716 = vand.u32 %v2145, 4294901760
        %2717 = vmatmul.f32.gmra.mxu0 %v2716
        %v2718 = vpop.f32.mrf.mxu0
        %2719 = vdwg.mxu0
        %2720 = vmatpush.msra.mxu0 0.0
        %2721 = vmatpush.msra.mxu0 0.0
        %2722 = vmatpush.msra.mxu0 0.0
        %2723 = vmatpush.msra.mxu0 0.0
        %2724 = vmatpush.msra.mxu0 0.0
        %2725 = vmatpush.msra.mxu0 0.0
        %2726 = vmatpush.msra.mxu0 0.0
        %2727 = vmatpush.msra.mxu0 0.0
        %2728 = vmatpush.msra.mxu0 0.0
        %2729 = vmatpush.msra.mxu0 0.0
        %2730 = vmatpush.msra.mxu0 0.0
        %2731 = vmatpush.msra.mxu0 0.0
        %2732 = vmatpush.msra.mxu0 0.0
        %2733 = vmatpush.msra.mxu0 0.0
        %2734 = vmatpush.msra.mxu0 0.0
        %v2735 = vand.u32 %v430, 4294901760
        %2736 = vmatpush.msra.mxu0 %v2735
        %v2737 = vand.u32 %v2094, 4294901760
        %2738 = vmatmul.f32.gmra.mxu0 %v2737
        %v2739 = vpop.f32.mrf.mxu0
        %v2740 = vadd.f32 %v2652, %v2739
        %v2741 = vand.u32 %v2097, 4294901760
        %2742 = vmatmul.f32.gmra.mxu0 %v2741
        %v2743 = vpop.f32.mrf.mxu0
        %v2744 = vadd.f32 %v2656, %v2743
        %v2745 = vand.u32 %v2100, 4294901760
        %2746 = vmatmul.f32.gmra.mxu0 %v2745
        %v2747 = vpop.f32.mrf.mxu0
        %v2748 = vadd.f32 %v2660, %v2747
        %v2749 = vand.u32 %v2103, 4294901760
        %2750 = vmatmul.f32.gmra.mxu0 %v2749
        %v2751 = vpop.f32.mrf.mxu0
        %v2752 = vadd.f32 %v2664, %v2751
        %v2753 = vand.u32 %v2106, 4294901760
        %2754 = vmatmul.f32.gmra.mxu0 %v2753
        %v2755 = vpop.f32.mrf.mxu0
        %v2756 = vadd.f32 %v2668, %v2755
        %v2757 = vand.u32 %v2109, 4294901760
        %2758 = vmatmul.f32.gmra.mxu0 %v2757
        %v2759 = vpop.f32.mrf.mxu0
        %v2760 = vadd.f32 %v2672, %v2759
        %v2761 = vand.u32 %v2112, 4294901760
        %2762 = vmatmul.f32.gmra.mxu0 %v2761
        %v2763 = vpop.f32.mrf.mxu0
        %v2764 = vadd.f32 %v2676, %v2763
        %v2765 = vand.u32 %v2115, 4294901760
        %2766 = vmatmul.f32.gmra.mxu0 %v2765
        %v2767 = vpop.f32.mrf.mxu0
        %v2768 = vadd.f32 %v2680, %v2767
        %v2769 = vand.u32 %v2118, 4294901760
        %2770 = vmatmul.f32.gmra.mxu0 %v2769
        %v2771 = vpop.f32.mrf.mxu0
        %v2772 = vadd.f32 %v2684, %v2771
        %v2773 = vand.u32 %v2121, 4294901760
        %2774 = vmatmul.f32.gmra.mxu0 %v2773
        %v2775 = vpop.f32.mrf.mxu0
        %v2776 = vadd.f32 %v2688, %v2775
        %v2777 = vand.u32 %v2124, 4294901760
        %2778 = vmatmul.f32.gmra.mxu0 %v2777
        %v2779 = vpop.f32.mrf.mxu0
        %v2780 = vadd.f32 %v2692, %v2779
        %v2781 = vand.u32 %v2127, 4294901760
        %2782 = vmatmul.f32.gmra.mxu0 %v2781
        %v2783 = vpop.f32.mrf.mxu0
        %v2784 = vadd.f32 %v2696, %v2783
        %v2785 = vand.u32 %v2130, 4294901760
        %2786 = vmatmul.f32.gmra.mxu0 %v2785
        %v2787 = vpop.f32.mrf.mxu0
        %v2788 = vadd.f32 %v2700, %v2787
        %v2789 = vand.u32 %v2133, 4294901760
        %2790 = vmatmul.f32.gmra.mxu0 %v2789
        %v2791 = vpop.f32.mrf.mxu0
        %v2792 = vadd.f32 %v2704, %v2791
        %v2793 = vand.u32 %v2136, 4294901760
        %2794 = vmatmul.f32.gmra.mxu0 %v2793
        %v2795 = vpop.f32.mrf.mxu0
        %v2796 = vadd.f32 %v2708, %v2795
        %v2797 = vand.u32 %v2139, 4294901760
        %2798 = vmatmul.f32.gmra.mxu0 %v2797
        %v2799 = vpop.f32.mrf.mxu0
        %v2800 = vadd.f32 %v2712, %v2799
        %v2801 = vand.u32 %v2142, 4294901760
        %2802 = vmatmul.f32.gmra.mxu0 %v2801
        %v2803 = vpop.f32.mrf.mxu0
        %v2804 = vand.u32 %v2145, 4294901760
        %2805 = vmatmul.f32.gmra.mxu0 %v2804
        %v2806 = vpop.f32.mrf.mxu0
        %2807 = vdwg.mxu0
        %v2808 = vmax.f32 %v2740, 0.0
        %v2809 = vmax.f32 %v2744, 0.0
        %v2810 = vmax.f32 %v2748, 0.0
        %v2811 = vmax.f32 %v2752, 0.0
        %v2812 = vmax.f32 %v2756, 0.0
        %v2813 = vmax.f32 %v2760, 0.0
        %v2814 = vmax.f32 %v2764, 0.0
        %v2815 = vmax.f32 %v2768, 0.0
        %v2816 = vmax.f32 %v2772, 0.0
        %v2817 = vmax.f32 %v2776, 0.0
        %v2818 = vmax.f32 %v2780, 0.0
        %v2819 = vmax.f32 %v2784, 0.0
        %v2820 = vmax.f32 %v2788, 0.0
        %v2821 = vmax.f32 %v2792, 0.0
        %v2822 = vmax.f32 %v2796, 0.0
        %v2823 = vmax.f32 %v2800, 0.0
        %v2824 = vsel %vm346, 1, 0
        %v2825 = vsel %vm347, 1, 0
        %vm2826 = vcmp.eq.s32.totalorder %v2824, 1
        %vm2827 = vcmp.eq.s32.totalorder %v2825, 1
        %v2828 = vsel %vm2826, 0.0, %v2808
        %v2829 = vsel %vm2827, 0.0, %v2809
        %v2830 = vsel %vm2826, 0.0, %v2810
        %v2831 = vsel %vm2827, 0.0, %v2811
        %v2832 = vsel %vm2826, 0.0, %v2812
        %v2833 = vsel %vm2827, 0.0, %v2813
        %v2834 = vsel %vm2826, 0.0, %v2814
        %v2835 = vsel %vm2827, 0.0, %v2815
        %v2836 = vsel %vm2826, 0.0, %v2816
        %v2837 = vsel %vm2827, 0.0, %v2817
        %v2838 = vsel %vm2826, 0.0, %v2818
        %v2839 = vsel %vm2827, 0.0, %v2819
        %v2840 = vsel %vm2826, 0.0, %v2820
        %v2841 = vsel %vm2827, 0.0, %v2821
        %v2842 = vsel %vm2826, 0.0, %v2822
        %v2843 = vsel %vm2827, 0.0, %v2823
        %v2844 = vperm.slane %v340, 3
        %v2845 = vmul.f32 %v2828, %v2844
        %v2846 = vmul.f32 %v2830, %v2844
        %v2847 = vmul.f32 %v2832, %v2844
        %v2848 = vmul.f32 %v2834, %v2844
        %v2849 = vmul.f32 %v2836, %v2844
        %v2850 = vmul.f32 %v2838, %v2844
        %v2851 = vmul.f32 %v2840, %v2844
        %v2852 = vmul.f32 %v2842, %v2844
        %v2853 = vadd.f32 %v2066, %v2845
        %v2854 = vadd.f32 %v2067, %v2846
        %v2855 = vadd.f32 %v2068, %v2847
        %v2856 = vadd.f32 %v2069, %v2848
        %v2857 = vadd.f32 %v2070, %v2849
        %v2858 = vadd.f32 %v2071, %v2850
        %v2859 = vadd.f32 %v2072, %v2851
        %v2860 = vadd.f32 %v2073, %v2852
        %v2861 = vperm.slane %v340, 5
        %v2862 = vmul.f32 %v2828, %v2861
        %v2863 = vmul.f32 %v2829, %v2861
        %v2864 = vmul.f32 %v2830, %v2861
        %v2865 = vmul.f32 %v2831, %v2861
        %v2866 = vmul.f32 %v2832, %v2861
        %v2867 = vmul.f32 %v2833, %v2861
        %v2868 = vmul.f32 %v2834, %v2861
        %v2869 = vmul.f32 %v2835, %v2861
        %v2870 = vmul.f32 %v2836, %v2861
        %v2871 = vmul.f32 %v2837, %v2861
        %v2872 = vmul.f32 %v2838, %v2861
        %v2873 = vmul.f32 %v2839, %v2861
        %v2874 = vmul.f32 %v2840, %v2861
        %v2875 = vmul.f32 %v2841, %v2861
        %v2876 = vmul.f32 %v2842, %v2861
        %v2877 = vmul.f32 %v2843, %v2861
        %v2894 = vrot.slane %v2862, 1
        %v2895 = vrot.slane %v2863, 1
        %v2896 = vsel %vm1199, %v2894, %v2895
        %v2897 = vrot.slane %v2864, 1
        %v2898 = vrot.slane %v2865, 1
        %v2899 = vsel %vm1199, %v2897, %v2898
        %v2900 = vrot.slane %v2866, 1
        %v2901 = vrot.slane %v2867, 1
        %v2902 = vsel %vm1199, %v2900, %v2901
        %v2903 = vrot.slane %v2868, 1
        %v2904 = vrot.slane %v2869, 1
        %v2905 = vsel %vm1199, %v2903, %v2904
        %v2906 = vrot.slane %v2870, 1
        %v2907 = vrot.slane %v2871, 1
        %v2908 = vsel %vm1199, %v2906, %v2907
        %v2909 = vrot.slane %v2872, 1
        %v2910 = vrot.slane %v2873, 1
        %v2911 = vsel %vm1199, %v2909, %v2910
        %v2912 = vrot.slane %v2874, 1
        %v2913 = vrot.slane %v2875, 1
        %v2914 = vsel %vm1199, %v2912, %v2913
        %v2915 = vrot.slane %v2876, 1
        %v2916 = vrot.slane %v2877, 1
        %v2917 = vsel %vm1199, %v2915, %v2916
        %v2926 = vadd.f32 %v2853, %v2896
        %v2927 = vadd.f32 %v2854, %v2899
        %v2928 = vadd.f32 %v2855, %v2902
        %v2929 = vadd.f32 %v2856, %v2905
        %v2930 = vadd.f32 %v2857, %v2908
        %v2931 = vadd.f32 %v2858, %v2911
        %v2932 = vadd.f32 %v2859, %v2914
        %v2933 = vadd.f32 %v2860, %v2917
        %s2934 = scalar_lea.vmem %s323, 432
        %v2935 = vld [vmem:[%s2934] sm:$0xff]
        %v2936 = vld [vmem:[%s2934 + $0x8] sm:$0xff]
        %v2937 = vld [vmem:[%s2934 + $0x10] sm:$0xff]
        %v2938 = vld [vmem:[%s2934 + $0x18] sm:$0xff]
        %v2939 = vld [vmem:[%s2934 + $0x20] sm:$0xff]
        %v2940 = vld [vmem:[%s2934 + $0x28] sm:$0xff]
        %v2941 = vld [vmem:[%s2934 + $0x30] sm:$0xff]
        %v2942 = vld [vmem:[%s2934 + $0x38] sm:$0xff]
        %v2943 = vld [vmem:[%s2934 + $0x40] sm:$0xff]
        %v2944 = vld [vmem:[%s2934 + $0x48] sm:$0xff]
        %v2945 = vld [vmem:[%s2934 + $0x50] sm:$0xff]
        %v2946 = vld [vmem:[%s2934 + $0x58] sm:$0xff]
        %v2947 = vld [vmem:[%s2934 + $0x60] sm:$0xff]
        %v2948 = vld [vmem:[%s2934 + $0x68] sm:$0xff]
        %v2949 = vld [vmem:[%s2934 + $0x70] sm:$0xff]
        %v2950 = vld [vmem:[%s2934 + $0x78] sm:$0xff]
        %v2951 = vld [vmem:[%s2934 + $0x80] sm:$0xff]
        %v2952 = vld [vmem:[%s2934 + $0x88] sm:$0xff]
        %v2954 = vsel %vm373, %v2935, 0
        %v2957 = vsel %vm373, %v2936, 0
        %v2960 = vsel %vm373, %v2937, 0
        %v2963 = vsel %vm373, %v2938, 0
        %v2966 = vsel %vm373, %v2939, 0
        %v2969 = vsel %vm373, %v2940, 0
        %v2972 = vsel %vm373, %v2941, 0
        %v2975 = vsel %vm373, %v2942, 0
        %v2978 = vsel %vm373, %v2943, 0
        %v2981 = vsel %vm373, %v2944, 0
        %v2984 = vsel %vm373, %v2945, 0
        %v2987 = vsel %vm373, %v2946, 0
        %v2990 = vsel %vm373, %v2947, 0
        %v2993 = vsel %vm373, %v2948, 0
        %v2996 = vsel %vm373, %v2949, 0
        %v2999 = vsel %vm373, %v2950, 0
        %v3002 = vsel %vm373, %v2951, 0
        %v3005 = vsel %vm373, %v2952, 0
        %3007 = vmatpush.msra.mxu0 0.0
        %3008 = vmatpush.msra.mxu0 0.0
        %3009 = vmatpush.msra.mxu0 0.0
        %3010 = vmatpush.msra.mxu0 0.0
        %3011 = vmatpush.msra.mxu0 0.0
        %3012 = vmatpush.msra.mxu0 0.0
        %3013 = vmatpush.msra.mxu0 0.0
        %3014 = vmatpush.msra.mxu0 0.0
        %3015 = vmatpush.msra.mxu0 0.0
        %3016 = vmatpush.msra.mxu0 0.0
        %3017 = vmatpush.msra.mxu0 0.0
        %3018 = vmatpush.msra.mxu0 0.0
        %3019 = vmatpush.msra.mxu0 0.0
        %3020 = vmatpush.msra.mxu0 0.0
        %3021 = vmatpush.msra.mxu0 0.0
        %v3022 = vand.u32 %v430, 4294901760
        %3023 = vmatpush.msra.mxu0 %v3022
        %v3024 = vand.u32 %v2954, 4294901760
        %v3025 = vsub.f32 %v2954, %v3024
        %v3026 = vand.u32 %v3025, 4294901760
        %v3027 = vsub.f32 %v3025, %v3026
        %v3028 = vand.u32 %v3027, 4294901760
        %3029 = vmatmul.f32.gmra.mxu0 %v3028
        %v3030 = vpop.f32.mrf.mxu0
        %v3031 = vadd.f32 %v371, %v3030
        %v3032 = vand.u32 %v2957, 4294901760
        %v3033 = vsub.f32 %v2957, %v3032
        %v3034 = vand.u32 %v3033, 4294901760
        %v3035 = vsub.f32 %v3033, %v3034
        %v3036 = vand.u32 %v3035, 4294901760
        %3037 = vmatmul.f32.gmra.mxu0 %v3036
        %v3038 = vpop.f32.mrf.mxu0
        %v3039 = vand.u32 %v2960, 4294901760
        %v3040 = vsub.f32 %v2960, %v3039
        %v3041 = vand.u32 %v3040, 4294901760
        %v3042 = vsub.f32 %v3040, %v3041
        %v3043 = vand.u32 %v3042, 4294901760
        %3044 = vmatmul.f32.gmra.mxu0 %v3043
        %v3045 = vpop.f32.mrf.mxu0
        %v3046 = vadd.f32 %v371, %v3045
        %v3047 = vand.u32 %v2963, 4294901760
        %v3048 = vsub.f32 %v2963, %v3047
        %v3049 = vand.u32 %v3048, 4294901760
        %v3050 = vsub.f32 %v3048, %v3049
        %v3051 = vand.u32 %v3050, 4294901760
        %3052 = vmatmul.f32.gmra.mxu0 %v3051
        %v3053 = vpop.f32.mrf.mxu0
        %v3054 = vand.u32 %v2966, 4294901760
        %v3055 = vsub.f32 %v2966, %v3054
        %v3056 = vand.u32 %v3055, 4294901760
        %v3057 = vsub.f32 %v3055, %v3056
        %v3058 = vand.u32 %v3057, 4294901760
        %3059 = vmatmul.f32.gmra.mxu0 %v3058
        %v3060 = vpop.f32.mrf.mxu0
        %v3061 = vadd.f32 %v371, %v3060
        %v3062 = vand.u32 %v2969, 4294901760
        %v3063 = vsub.f32 %v2969, %v3062
        %v3064 = vand.u32 %v3063, 4294901760
        %v3065 = vsub.f32 %v3063, %v3064
        %v3066 = vand.u32 %v3065, 4294901760
        %3067 = vmatmul.f32.gmra.mxu0 %v3066
        %v3068 = vpop.f32.mrf.mxu0
        %v3069 = vand.u32 %v2972, 4294901760
        %v3070 = vsub.f32 %v2972, %v3069
        %v3071 = vand.u32 %v3070, 4294901760
        %v3072 = vsub.f32 %v3070, %v3071
        %v3073 = vand.u32 %v3072, 4294901760
        %3074 = vmatmul.f32.gmra.mxu0 %v3073
        %v3075 = vpop.f32.mrf.mxu0
        %v3076 = vadd.f32 %v371, %v3075
        %v3077 = vand.u32 %v2975, 4294901760
        %v3078 = vsub.f32 %v2975, %v3077
        %v3079 = vand.u32 %v3078, 4294901760
        %v3080 = vsub.f32 %v3078, %v3079
        %v3081 = vand.u32 %v3080, 4294901760
        %3082 = vmatmul.f32.gmra.mxu0 %v3081
        %v3083 = vpop.f32.mrf.mxu0
        %v3084 = vand.u32 %v2978, 4294901760
        %v3085 = vsub.f32 %v2978, %v3084
        %v3086 = vand.u32 %v3085, 4294901760
        %v3087 = vsub.f32 %v3085, %v3086
        %v3088 = vand.u32 %v3087, 4294901760
        %3089 = vmatmul.f32.gmra.mxu0 %v3088
        %v3090 = vpop.f32.mrf.mxu0
        %v3091 = vadd.f32 %v371, %v3090
        %v3092 = vand.u32 %v2981, 4294901760
        %v3093 = vsub.f32 %v2981, %v3092
        %v3094 = vand.u32 %v3093, 4294901760
        %v3095 = vsub.f32 %v3093, %v3094
        %v3096 = vand.u32 %v3095, 4294901760
        %3097 = vmatmul.f32.gmra.mxu0 %v3096
        %v3098 = vpop.f32.mrf.mxu0
        %v3099 = vand.u32 %v2984, 4294901760
        %v3100 = vsub.f32 %v2984, %v3099
        %v3101 = vand.u32 %v3100, 4294901760
        %v3102 = vsub.f32 %v3100, %v3101
        %v3103 = vand.u32 %v3102, 4294901760
        %3104 = vmatmul.f32.gmra.mxu0 %v3103
        %v3105 = vpop.f32.mrf.mxu0
        %v3106 = vadd.f32 %v371, %v3105
        %v3107 = vand.u32 %v2987, 4294901760
        %v3108 = vsub.f32 %v2987, %v3107
        %v3109 = vand.u32 %v3108, 4294901760
        %v3110 = vsub.f32 %v3108, %v3109
        %v3111 = vand.u32 %v3110, 4294901760
        %3112 = vmatmul.f32.gmra.mxu0 %v3111
        %v3113 = vpop.f32.mrf.mxu0
        %v3114 = vand.u32 %v2990, 4294901760
        %v3115 = vsub.f32 %v2990, %v3114
        %v3116 = vand.u32 %v3115, 4294901760
        %v3117 = vsub.f32 %v3115, %v3116
        %v3118 = vand.u32 %v3117, 4294901760
        %3119 = vmatmul.f32.gmra.mxu0 %v3118
        %v3120 = vpop.f32.mrf.mxu0
        %v3121 = vadd.f32 %v371, %v3120
        %v3122 = vand.u32 %v2993, 4294901760
        %v3123 = vsub.f32 %v2993, %v3122
        %v3124 = vand.u32 %v3123, 4294901760
        %v3125 = vsub.f32 %v3123, %v3124
        %v3126 = vand.u32 %v3125, 4294901760
        %3127 = vmatmul.f32.gmra.mxu0 %v3126
        %v3128 = vpop.f32.mrf.mxu0
        %v3129 = vand.u32 %v2996, 4294901760
        %v3130 = vsub.f32 %v2996, %v3129
        %v3131 = vand.u32 %v3130, 4294901760
        %v3132 = vsub.f32 %v3130, %v3131
        %v3133 = vand.u32 %v3132, 4294901760
        %3134 = vmatmul.f32.gmra.mxu0 %v3133
        %v3135 = vpop.f32.mrf.mxu0
        %v3136 = vadd.f32 %v371, %v3135
        %v3137 = vand.u32 %v2999, 4294901760
        %v3138 = vsub.f32 %v2999, %v3137
        %v3139 = vand.u32 %v3138, 4294901760
        %v3140 = vsub.f32 %v3138, %v3139
        %v3141 = vand.u32 %v3140, 4294901760
        %3142 = vmatmul.f32.gmra.mxu0 %v3141
        %v3143 = vpop.f32.mrf.mxu0
        %v3144 = vand.u32 %v3002, 4294901760
        %v3145 = vsub.f32 %v3002, %v3144
        %v3146 = vand.u32 %v3145, 4294901760
        %v3147 = vsub.f32 %v3145, %v3146
        %v3148 = vand.u32 %v3147, 4294901760
        %3149 = vmatmul.f32.gmra.mxu0 %v3148
        %v3150 = vpop.f32.mrf.mxu0
        %v3151 = vand.u32 %v3005, 4294901760
        %v3152 = vsub.f32 %v3005, %v3151
        %v3153 = vand.u32 %v3152, 4294901760
        %v3154 = vsub.f32 %v3152, %v3153
        %v3155 = vand.u32 %v3154, 4294901760
        %3156 = vmatmul.f32.gmra.mxu0 %v3155
        %v3157 = vpop.f32.mrf.mxu0
        %3158 = vdwg.mxu0
        %3159 = vmatpush.msra.mxu0 0.0
        %3160 = vmatpush.msra.mxu0 0.0
        %3161 = vmatpush.msra.mxu0 0.0
        %3162 = vmatpush.msra.mxu0 0.0
        %3163 = vmatpush.msra.mxu0 0.0
        %3164 = vmatpush.msra.mxu0 0.0
        %3165 = vmatpush.msra.mxu0 0.0
        %3166 = vmatpush.msra.mxu0 0.0
        %3167 = vmatpush.msra.mxu0 0.0
        %3168 = vmatpush.msra.mxu0 0.0
        %3169 = vmatpush.msra.mxu0 0.0
        %3170 = vmatpush.msra.mxu0 0.0
        %3171 = vmatpush.msra.mxu0 0.0
        %3172 = vmatpush.msra.mxu0 0.0
        %3173 = vmatpush.msra.mxu0 0.0
        %v3174 = vand.u32 %v430, 4294901760
        %v3175 = vsub.f32 %v430, %v3174
        %v3176 = vand.u32 %v3175, 4294901760
        %v3177 = vsub.f32 %v3175, %v3176
        %v3178 = vand.u32 %v3177, 4294901760
        %3179 = vmatpush.msra.mxu0 %v3178
        %v3180 = vand.u32 %v2954, 4294901760
        %3181 = vmatmul.f32.gmra.mxu0 %v3180
        %v3182 = vpop.f32.mrf.mxu0
        %v3183 = vadd.f32 %v3031, %v3182
        %v3184 = vand.u32 %v2957, 4294901760
        %3185 = vmatmul.f32.gmra.mxu0 %v3184
        %v3186 = vpop.f32.mrf.mxu0
        %v3187 = vand.u32 %v2960, 4294901760
        %3188 = vmatmul.f32.gmra.mxu0 %v3187
        %v3189 = vpop.f32.mrf.mxu0
        %v3190 = vadd.f32 %v3046, %v3189
        %v3191 = vand.u32 %v2963, 4294901760
        %3192 = vmatmul.f32.gmra.mxu0 %v3191
        %v3193 = vpop.f32.mrf.mxu0
        %v3194 = vand.u32 %v2966, 4294901760
        %3195 = vmatmul.f32.gmra.mxu0 %v3194
        %v3196 = vpop.f32.mrf.mxu0
        %v3197 = vadd.f32 %v3061, %v3196
        %v3198 = vand.u32 %v2969, 4294901760
        %3199 = vmatmul.f32.gmra.mxu0 %v3198
        %v3200 = vpop.f32.mrf.mxu0
        %v3201 = vand.u32 %v2972, 4294901760
        %3202 = vmatmul.f32.gmra.mxu0 %v3201
        %v3203 = vpop.f32.mrf.mxu0
        %v3204 = vadd.f32 %v3076, %v3203
        %v3205 = vand.u32 %v2975, 4294901760
        %3206 = vmatmul.f32.gmra.mxu0 %v3205
        %v3207 = vpop.f32.mrf.mxu0
        %v3208 = vand.u32 %v2978, 4294901760
        %3209 = vmatmul.f32.gmra.mxu0 %v3208
        %v3210 = vpop.f32.mrf.mxu0
        %v3211 = vadd.f32 %v3091, %v3210
        %v3212 = vand.u32 %v2981, 4294901760
        %3213 = vmatmul.f32.gmra.mxu0 %v3212
        %v3214 = vpop.f32.mrf.mxu0
        %v3215 = vand.u32 %v2984, 4294901760
        %3216 = vmatmul.f32.gmra.mxu0 %v3215
        %v3217 = vpop.f32.mrf.mxu0
        %v3218 = vadd.f32 %v3106, %v3217
        %v3219 = vand.u32 %v2987, 4294901760
        %3220 = vmatmul.f32.gmra.mxu0 %v3219
        %v3221 = vpop.f32.mrf.mxu0
        %v3222 = vand.u32 %v2990, 4294901760
        %3223 = vmatmul.f32.gmra.mxu0 %v3222
        %v3224 = vpop.f32.mrf.mxu0
        %v3225 = vadd.f32 %v3121, %v3224
        %v3226 = vand.u32 %v2993, 4294901760
        %3227 = vmatmul.f32.gmra.mxu0 %v3226
        %v3228 = vpop.f32.mrf.mxu0
        %v3229 = vand.u32 %v2996, 4294901760
        %3230 = vmatmul.f32.gmra.mxu0 %v3229
        %v3231 = vpop.f32.mrf.mxu0
        %v3232 = vadd.f32 %v3136, %v3231
        %v3233 = vand.u32 %v2999, 4294901760
        %3234 = vmatmul.f32.gmra.mxu0 %v3233
        %v3235 = vpop.f32.mrf.mxu0
        %v3236 = vand.u32 %v3002, 4294901760
        %3237 = vmatmul.f32.gmra.mxu0 %v3236
        %v3238 = vpop.f32.mrf.mxu0
        %v3239 = vand.u32 %v3005, 4294901760
        %3240 = vmatmul.f32.gmra.mxu0 %v3239
        %v3241 = vpop.f32.mrf.mxu0
        %3242 = vdwg.mxu0
        %3243 = vmatpush.msra.mxu0 0.0
        %3244 = vmatpush.msra.mxu0 0.0
        %3245 = vmatpush.msra.mxu0 0.0
        %3246 = vmatpush.msra.mxu0 0.0
        %3247 = vmatpush.msra.mxu0 0.0
        %3248 = vmatpush.msra.mxu0 0.0
        %3249 = vmatpush.msra.mxu0 0.0
        %3250 = vmatpush.msra.mxu0 0.0
        %3251 = vmatpush.msra.mxu0 0.0
        %3252 = vmatpush.msra.mxu0 0.0
        %3253 = vmatpush.msra.mxu0 0.0
        %3254 = vmatpush.msra.mxu0 0.0
        %3255 = vmatpush.msra.mxu0 0.0
        %3256 = vmatpush.msra.mxu0 0.0
        %3257 = vmatpush.msra.mxu0 0.0
        %v3258 = vand.u32 %v430, 4294901760
        %v3259 = vsub.f32 %v430, %v3258
        %3260 = vmatpush.msra.mxu0 %v3259
        %v3261 = vand.u32 %v2954, 4294901760
        %v3262 = vsub.f32 %v2954, %v3261
        %3263 = vmatmul.f32.gmra.mxu0 %v3262
        %v3264 = vpop.f32.mrf.mxu0
        %v3265 = vadd.f32 %v3183, %v3264
        %v3266 = vand.u32 %v2957, 4294901760
        %v3267 = vsub.f32 %v2957, %v3266
        %3268 = vmatmul.f32.gmra.mxu0 %v3267
        %v3269 = vpop.f32.mrf.mxu0
        %v3270 = vand.u32 %v2960, 4294901760
        %v3271 = vsub.f32 %v2960, %v3270
        %3272 = vmatmul.f32.gmra.mxu0 %v3271
        %v3273 = vpop.f32.mrf.mxu0
        %v3274 = vadd.f32 %v3190, %v3273
        %v3275 = vand.u32 %v2963, 4294901760
        %v3276 = vsub.f32 %v2963, %v3275
        %3277 = vmatmul.f32.gmra.mxu0 %v3276
        %v3278 = vpop.f32.mrf.mxu0
        %v3279 = vand.u32 %v2966, 4294901760
        %v3280 = vsub.f32 %v2966, %v3279
        %3281 = vmatmul.f32.gmra.mxu0 %v3280
        %v3282 = vpop.f32.mrf.mxu0
        %v3283 = vadd.f32 %v3197, %v3282
        %v3284 = vand.u32 %v2969, 4294901760
        %v3285 = vsub.f32 %v2969, %v3284
        %3286 = vmatmul.f32.gmra.mxu0 %v3285
        %v3287 = vpop.f32.mrf.mxu0
        %v3288 = vand.u32 %v2972, 4294901760
        %v3289 = vsub.f32 %v2972, %v3288
        %3290 = vmatmul.f32.gmra.mxu0 %v3289
        %v3291 = vpop.f32.mrf.mxu0
        %v3292 = vadd.f32 %v3204, %v3291
        %v3293 = vand.u32 %v2975, 4294901760
        %v3294 = vsub.f32 %v2975, %v3293
        %3295 = vmatmul.f32.gmra.mxu0 %v3294
        %v3296 = vpop.f32.mrf.mxu0
        %v3297 = vand.u32 %v2978, 4294901760
        %v3298 = vsub.f32 %v2978, %v3297
        %3299 = vmatmul.f32.gmra.mxu0 %v3298
        %v3300 = vpop.f32.mrf.mxu0
        %v3301 = vadd.f32 %v3211, %v3300
        %v3302 = vand.u32 %v2981, 4294901760
        %v3303 = vsub.f32 %v2981, %v3302
        %3304 = vmatmul.f32.gmra.mxu0 %v3303
        %v3305 = vpop.f32.mrf.mxu0
        %v3306 = vand.u32 %v2984, 4294901760
        %v3307 = vsub.f32 %v2984, %v3306
        %3308 = vmatmul.f32.gmra.mxu0 %v3307
        %v3309 = vpop.f32.mrf.mxu0
        %v3310 = vadd.f32 %v3218, %v3309
        %v3311 = vand.u32 %v2987, 4294901760
        %v3312 = vsub.f32 %v2987, %v3311
        %3313 = vmatmul.f32.gmra.mxu0 %v3312
        %v3314 = vpop.f32.mrf.mxu0
        %v3315 = vand.u32 %v2990, 4294901760
        %v3316 = vsub.f32 %v2990, %v3315
        %3317 = vmatmul.f32.gmra.mxu0 %v3316
        %v3318 = vpop.f32.mrf.mxu0
        %v3319 = vadd.f32 %v3225, %v3318
        %v3320 = vand.u32 %v2993, 4294901760
        %v3321 = vsub.f32 %v2993, %v3320
        %3322 = vmatmul.f32.gmra.mxu0 %v3321
        %v3323 = vpop.f32.mrf.mxu0
        %v3324 = vand.u32 %v2996, 4294901760
        %v3325 = vsub.f32 %v2996, %v3324
        %3326 = vmatmul.f32.gmra.mxu0 %v3325
        %v3327 = vpop.f32.mrf.mxu0
        %v3328 = vadd.f32 %v3232, %v3327
        %v3329 = vand.u32 %v2999, 4294901760
        %v3330 = vsub.f32 %v2999, %v3329
        %3331 = vmatmul.f32.gmra.mxu0 %v3330
        %v3332 = vpop.f32.mrf.mxu0
        %v3333 = vand.u32 %v3002, 4294901760
        %v3334 = vsub.f32 %v3002, %v3333
        %3335 = vmatmul.f32.gmra.mxu0 %v3334
        %v3336 = vpop.f32.mrf.mxu0
        %v3337 = vand.u32 %v3005, 4294901760
        %v3338 = vsub.f32 %v3005, %v3337
        %3339 = vmatmul.f32.gmra.mxu0 %v3338
        %v3340 = vpop.f32.mrf.mxu0
        %3341 = vdwg.mxu0
        %3342 = vmatpush.msra.mxu0 0.0
        %3343 = vmatpush.msra.mxu0 0.0
        %3344 = vmatpush.msra.mxu0 0.0
        %3345 = vmatpush.msra.mxu0 0.0
        %3346 = vmatpush.msra.mxu0 0.0
        %3347 = vmatpush.msra.mxu0 0.0
        %3348 = vmatpush.msra.mxu0 0.0
        %3349 = vmatpush.msra.mxu0 0.0
        %3350 = vmatpush.msra.mxu0 0.0
        %3351 = vmatpush.msra.mxu0 0.0
        %3352 = vmatpush.msra.mxu0 0.0
        %3353 = vmatpush.msra.mxu0 0.0
        %3354 = vmatpush.msra.mxu0 0.0
        %3355 = vmatpush.msra.mxu0 0.0
        %3356 = vmatpush.msra.mxu0 0.0
        %v3357 = vand.u32 %v430, 4294901760
        %3358 = vmatpush.msra.mxu0 %v3357
        %v3359 = vand.u32 %v2954, 4294901760
        %v3360 = vsub.f32 %v2954, %v3359
        %v3361 = vand.u32 %v3360, 4294901760
        %3362 = vmatmul.f32.gmra.mxu0 %v3361
        %v3363 = vpop.f32.mrf.mxu0
        %v3364 = vadd.f32 %v3265, %v3363
        %v3365 = vand.u32 %v2957, 4294901760
        %v3366 = vsub.f32 %v2957, %v3365
        %v3367 = vand.u32 %v3366, 4294901760
        %3368 = vmatmul.f32.gmra.mxu0 %v3367
        %v3369 = vpop.f32.mrf.mxu0
        %v3370 = vand.u32 %v2960, 4294901760
        %v3371 = vsub.f32 %v2960, %v3370
        %v3372 = vand.u32 %v3371, 4294901760
        %3373 = vmatmul.f32.gmra.mxu0 %v3372
        %v3374 = vpop.f32.mrf.mxu0
        %v3375 = vadd.f32 %v3274, %v3374
        %v3376 = vand.u32 %v2963, 4294901760
        %v3377 = vsub.f32 %v2963, %v3376
        %v3378 = vand.u32 %v3377, 4294901760
        %3379 = vmatmul.f32.gmra.mxu0 %v3378
        %v3380 = vpop.f32.mrf.mxu0
        %v3381 = vand.u32 %v2966, 4294901760
        %v3382 = vsub.f32 %v2966, %v3381
        %v3383 = vand.u32 %v3382, 4294901760
        %3384 = vmatmul.f32.gmra.mxu0 %v3383
        %v3385 = vpop.f32.mrf.mxu0
        %v3386 = vadd.f32 %v3283, %v3385
        %v3387 = vand.u32 %v2969, 4294901760
        %v3388 = vsub.f32 %v2969, %v3387
        %v3389 = vand.u32 %v3388, 4294901760
        %3390 = vmatmul.f32.gmra.mxu0 %v3389
        %v3391 = vpop.f32.mrf.mxu0
        %v3392 = vand.u32 %v2972, 4294901760
        %v3393 = vsub.f32 %v2972, %v3392
        %v3394 = vand.u32 %v3393, 4294901760
        %3395 = vmatmul.f32.gmra.mxu0 %v3394
        %v3396 = vpop.f32.mrf.mxu0
        %v3397 = vadd.f32 %v3292, %v3396
        %v3398 = vand.u32 %v2975, 4294901760
        %v3399 = vsub.f32 %v2975, %v3398
        %v3400 = vand.u32 %v3399, 4294901760
        %3401 = vmatmul.f32.gmra.mxu0 %v3400
        %v3402 = vpop.f32.mrf.mxu0
        %v3403 = vand.u32 %v2978, 4294901760
        %v3404 = vsub.f32 %v2978, %v3403
        %v3405 = vand.u32 %v3404, 4294901760
        %3406 = vmatmul.f32.gmra.mxu0 %v3405
        %v3407 = vpop.f32.mrf.mxu0
        %v3408 = vadd.f32 %v3301, %v3407
        %v3409 = vand.u32 %v2981, 4294901760
        %v3410 = vsub.f32 %v2981, %v3409
        %v3411 = vand.u32 %v3410, 4294901760
        %3412 = vmatmul.f32.gmra.mxu0 %v3411
        %v3413 = vpop.f32.mrf.mxu0
        %v3414 = vand.u32 %v2984, 4294901760
        %v3415 = vsub.f32 %v2984, %v3414
        %v3416 = vand.u32 %v3415, 4294901760
        %3417 = vmatmul.f32.gmra.mxu0 %v3416
        %v3418 = vpop.f32.mrf.mxu0
        %v3419 = vadd.f32 %v3310, %v3418
        %v3420 = vand.u32 %v2987, 4294901760
        %v3421 = vsub.f32 %v2987, %v3420
        %v3422 = vand.u32 %v3421, 4294901760
        %3423 = vmatmul.f32.gmra.mxu0 %v3422
        %v3424 = vpop.f32.mrf.mxu0
        %v3425 = vand.u32 %v2990, 4294901760
        %v3426 = vsub.f32 %v2990, %v3425
        %v3427 = vand.u32 %v3426, 4294901760
        %3428 = vmatmul.f32.gmra.mxu0 %v3427
        %v3429 = vpop.f32.mrf.mxu0
        %v3430 = vadd.f32 %v3319, %v3429
        %v3431 = vand.u32 %v2993, 4294901760
        %v3432 = vsub.f32 %v2993, %v3431
        %v3433 = vand.u32 %v3432, 4294901760
        %3434 = vmatmul.f32.gmra.mxu0 %v3433
        %v3435 = vpop.f32.mrf.mxu0
        %v3436 = vand.u32 %v2996, 4294901760
        %v3437 = vsub.f32 %v2996, %v3436
        %v3438 = vand.u32 %v3437, 4294901760
        %3439 = vmatmul.f32.gmra.mxu0 %v3438
        %v3440 = vpop.f32.mrf.mxu0
        %v3441 = vadd.f32 %v3328, %v3440
        %v3442 = vand.u32 %v2999, 4294901760
        %v3443 = vsub.f32 %v2999, %v3442
        %v3444 = vand.u32 %v3443, 4294901760
        %3445 = vmatmul.f32.gmra.mxu0 %v3444
        %v3446 = vpop.f32.mrf.mxu0
        %v3447 = vand.u32 %v3002, 4294901760
        %v3448 = vsub.f32 %v3002, %v3447
        %v3449 = vand.u32 %v3448, 4294901760
        %3450 = vmatmul.f32.gmra.mxu0 %v3449
        %v3451 = vpop.f32.mrf.mxu0
        %v3452 = vand.u32 %v3005, 4294901760
        %v3453 = vsub.f32 %v3005, %v3452
        %v3454 = vand.u32 %v3453, 4294901760
        %3455 = vmatmul.f32.gmra.mxu0 %v3454
        %v3456 = vpop.f32.mrf.mxu0
        %3457 = vdwg.mxu0
        %3458 = vmatpush.msra.mxu0 0.0
        %3459 = vmatpush.msra.mxu0 0.0
        %3460 = vmatpush.msra.mxu0 0.0
        %3461 = vmatpush.msra.mxu0 0.0
        %3462 = vmatpush.msra.mxu0 0.0
        %3463 = vmatpush.msra.mxu0 0.0
        %3464 = vmatpush.msra.mxu0 0.0
        %3465 = vmatpush.msra.mxu0 0.0
        %3466 = vmatpush.msra.mxu0 0.0
        %3467 = vmatpush.msra.mxu0 0.0
        %3468 = vmatpush.msra.mxu0 0.0
        %3469 = vmatpush.msra.mxu0 0.0
        %3470 = vmatpush.msra.mxu0 0.0
        %3471 = vmatpush.msra.mxu0 0.0
        %3472 = vmatpush.msra.mxu0 0.0
        %v3473 = vand.u32 %v430, 4294901760
        %v3474 = vsub.f32 %v430, %v3473
        %v3475 = vand.u32 %v3474, 4294901760
        %3476 = vmatpush.msra.mxu0 %v3475
        %v3477 = vand.u32 %v2954, 4294901760
        %3478 = vmatmul.f32.gmra.mxu0 %v3477
        %v3479 = vpop.f32.mrf.mxu0
        %v3480 = vadd.f32 %v3364, %v3479
        %v3481 = vand.u32 %v2957, 4294901760
        %3482 = vmatmul.f32.gmra.mxu0 %v3481
        %v3483 = vpop.f32.mrf.mxu0
        %v3484 = vand.u32 %v2960, 4294901760
        %3485 = vmatmul.f32.gmra.mxu0 %v3484
        %v3486 = vpop.f32.mrf.mxu0
        %v3487 = vadd.f32 %v3375, %v3486
        %v3488 = vand.u32 %v2963, 4294901760
        %3489 = vmatmul.f32.gmra.mxu0 %v3488
        %v3490 = vpop.f32.mrf.mxu0
        %v3491 = vand.u32 %v2966, 4294901760
        %3492 = vmatmul.f32.gmra.mxu0 %v3491
        %v3493 = vpop.f32.mrf.mxu0
        %v3494 = vadd.f32 %v3386, %v3493
        %v3495 = vand.u32 %v2969, 4294901760
        %3496 = vmatmul.f32.gmra.mxu0 %v3495
        %v3497 = vpop.f32.mrf.mxu0
        %v3498 = vand.u32 %v2972, 4294901760
        %3499 = vmatmul.f32.gmra.mxu0 %v3498
        %v3500 = vpop.f32.mrf.mxu0
        %v3501 = vadd.f32 %v3397, %v3500
        %v3502 = vand.u32 %v2975, 4294901760
        %3503 = vmatmul.f32.gmra.mxu0 %v3502
        %v3504 = vpop.f32.mrf.mxu0
        %v3505 = vand.u32 %v2978, 4294901760
        %3506 = vmatmul.f32.gmra.mxu0 %v3505
        %v3507 = vpop.f32.mrf.mxu0
        %v3508 = vadd.f32 %v3408, %v3507
        %v3509 = vand.u32 %v2981, 4294901760
        %3510 = vmatmul.f32.gmra.mxu0 %v3509
        %v3511 = vpop.f32.mrf.mxu0
        %v3512 = vand.u32 %v2984, 4294901760
        %3513 = vmatmul.f32.gmra.mxu0 %v3512
        %v3514 = vpop.f32.mrf.mxu0
        %v3515 = vadd.f32 %v3419, %v3514
        %v3516 = vand.u32 %v2987, 4294901760
        %3517 = vmatmul.f32.gmra.mxu0 %v3516
        %v3518 = vpop.f32.mrf.mxu0
        %v3519 = vand.u32 %v2990, 4294901760
        %3520 = vmatmul.f32.gmra.mxu0 %v3519
        %v3521 = vpop.f32.mrf.mxu0
        %v3522 = vadd.f32 %v3430, %v3521
        %v3523 = vand.u32 %v2993, 4294901760
        %3524 = vmatmul.f32.gmra.mxu0 %v3523
        %v3525 = vpop.f32.mrf.mxu0
        %v3526 = vand.u32 %v2996, 4294901760
        %3527 = vmatmul.f32.gmra.mxu0 %v3526
        %v3528 = vpop.f32.mrf.mxu0
        %v3529 = vadd.f32 %v3441, %v3528
        %v3530 = vand.u32 %v2999, 4294901760
        %3531 = vmatmul.f32.gmra.mxu0 %v3530
        %v3532 = vpop.f32.mrf.mxu0
        %v3533 = vand.u32 %v3002, 4294901760
        %3534 = vmatmul.f32.gmra.mxu0 %v3533
        %v3535 = vpop.f32.mrf.mxu0
        %v3536 = vand.u32 %v3005, 4294901760
        %3537 = vmatmul.f32.gmra.mxu0 %v3536
        %v3538 = vpop.f32.mrf.mxu0
        %3539 = vdwg.mxu0
        %3540 = vmatpush.msra.mxu0 0.0
        %3541 = vmatpush.msra.mxu0 0.0
        %3542 = vmatpush.msra.mxu0 0.0
        %3543 = vmatpush.msra.mxu0 0.0
        %3544 = vmatpush.msra.mxu0 0.0
        %3545 = vmatpush.msra.mxu0 0.0
        %3546 = vmatpush.msra.mxu0 0.0
        %3547 = vmatpush.msra.mxu0 0.0
        %3548 = vmatpush.msra.mxu0 0.0
        %3549 = vmatpush.msra.mxu0 0.0
        %3550 = vmatpush.msra.mxu0 0.0
        %3551 = vmatpush.msra.mxu0 0.0
        %3552 = vmatpush.msra.mxu0 0.0
        %3553 = vmatpush.msra.mxu0 0.0
        %3554 = vmatpush.msra.mxu0 0.0
        %v3555 = vand.u32 %v430, 4294901760
        %3556 = vmatpush.msra.mxu0 %v3555
        %v3557 = vand.u32 %v2954, 4294901760
        %3558 = vmatmul.f32.gmra.mxu0 %v3557
        %v3559 = vpop.f32.mrf.mxu0
        %v3560 = vadd.f32 %v3480, %v3559
        %v3561 = vand.u32 %v2957, 4294901760
        %3562 = vmatmul.f32.gmra.mxu0 %v3561
        %v3563 = vpop.f32.mrf.mxu0
        %v3564 = vand.u32 %v2960, 4294901760
        %3565 = vmatmul.f32.gmra.mxu0 %v3564
        %v3566 = vpop.f32.mrf.mxu0
        %v3567 = vadd.f32 %v3487, %v3566
        %v3568 = vand.u32 %v2963, 4294901760
        %3569 = vmatmul.f32.gmra.mxu0 %v3568
        %v3570 = vpop.f32.mrf.mxu0
        %v3571 = vand.u32 %v2966, 4294901760
        %3572 = vmatmul.f32.gmra.mxu0 %v3571
        %v3573 = vpop.f32.mrf.mxu0
        %v3574 = vadd.f32 %v3494, %v3573
        %v3575 = vand.u32 %v2969, 4294901760
        %3576 = vmatmul.f32.gmra.mxu0 %v3575
        %v3577 = vpop.f32.mrf.mxu0
        %v3578 = vand.u32 %v2972, 4294901760
        %3579 = vmatmul.f32.gmra.mxu0 %v3578
        %v3580 = vpop.f32.mrf.mxu0
        %v3581 = vadd.f32 %v3501, %v3580
        %v3582 = vand.u32 %v2975, 4294901760
        %3583 = vmatmul.f32.gmra.mxu0 %v3582
        %v3584 = vpop.f32.mrf.mxu0
        %v3585 = vand.u32 %v2978, 4294901760
        %3586 = vmatmul.f32.gmra.mxu0 %v3585
        %v3587 = vpop.f32.mrf.mxu0
        %v3588 = vadd.f32 %v3508, %v3587
        %v3589 = vand.u32 %v2981, 4294901760
        %3590 = vmatmul.f32.gmra.mxu0 %v3589
        %v3591 = vpop.f32.mrf.mxu0
        %v3592 = vand.u32 %v2984, 4294901760
        %3593 = vmatmul.f32.gmra.mxu0 %v3592
        %v3594 = vpop.f32.mrf.mxu0
        %v3595 = vadd.f32 %v3515, %v3594
        %v3596 = vand.u32 %v2987, 4294901760
        %3597 = vmatmul.f32.gmra.mxu0 %v3596
        %v3598 = vpop.f32.mrf.mxu0
        %v3599 = vand.u32 %v2990, 4294901760
        %3600 = vmatmul.f32.gmra.mxu0 %v3599
        %v3601 = vpop.f32.mrf.mxu0
        %v3602 = vadd.f32 %v3522, %v3601
        %v3603 = vand.u32 %v2993, 4294901760
        %3604 = vmatmul.f32.gmra.mxu0 %v3603
        %v3605 = vpop.f32.mrf.mxu0
        %v3606 = vand.u32 %v2996, 4294901760
        %3607 = vmatmul.f32.gmra.mxu0 %v3606
        %v3608 = vpop.f32.mrf.mxu0
        %v3609 = vadd.f32 %v3529, %v3608
        %v3610 = vand.u32 %v2999, 4294901760
        %3611 = vmatmul.f32.gmra.mxu0 %v3610
        %v3612 = vpop.f32.mrf.mxu0
        %v3613 = vand.u32 %v3002, 4294901760
        %3614 = vmatmul.f32.gmra.mxu0 %v3613
        %v3615 = vpop.f32.mrf.mxu0
        %v3616 = vand.u32 %v3005, 4294901760
        %3617 = vmatmul.f32.gmra.mxu0 %v3616
        %v3618 = vpop.f32.mrf.mxu0
        %3619 = vdwg.mxu0
        %v3620 = vmax.f32 %v3560, 0.0
        %v3621 = vmax.f32 %v3567, 0.0
        %v3622 = vmax.f32 %v3574, 0.0
        %v3623 = vmax.f32 %v3581, 0.0
        %v3624 = vmax.f32 %v3588, 0.0
        %v3625 = vmax.f32 %v3595, 0.0
        %v3626 = vmax.f32 %v3602, 0.0
        %v3627 = vmax.f32 %v3609, 0.0
        %v3628 = vperm.slane %v340, 4
        %v3629 = vmul.f32 %v3620, %v3628
        %v3630 = vmul.f32 %v3621, %v3628
        %v3631 = vmul.f32 %v3622, %v3628
        %v3632 = vmul.f32 %v3623, %v3628
        %v3633 = vmul.f32 %v3624, %v3628
        %v3634 = vmul.f32 %v3625, %v3628
        %v3635 = vmul.f32 %v3626, %v3628
        %v3636 = vmul.f32 %v3627, %v3628
        %v3637 = vadd.f32 %v2926, %v3629
        %v3638 = vadd.f32 %v2927, %v3630
        %v3639 = vadd.f32 %v2928, %v3631
        %v3640 = vadd.f32 %v2929, %v3632
        %v3641 = vadd.f32 %v2930, %v3633
        %v3642 = vadd.f32 %v2931, %v3634
        %v3643 = vadd.f32 %v2932, %v3635
        %v3644 = vadd.f32 %v2933, %v3636
        %v3646 = vperm.slane %v342, 0
        %v3648 = vadd.f32 %v3637, %v3646
        %v3649 = vadd.f32 %v3638, %v3646
        %v3650 = vadd.f32 %v3639, %v3646
        %v3651 = vadd.f32 %v3640, %v3646
        %v3652 = vadd.f32 %v3641, %v3646
        %v3653 = vadd.f32 %v3642, %v3646
        %v3654 = vadd.f32 %v3643, %v3646
        %v3655 = vadd.f32 %v3644, %v3646
        %v3656 = vmax.f32 %v3648, 0.0
        %v3657 = vmax.f32 %v3649, 0.0
        %v3658 = vmax.f32 %v3650, 0.0
        %v3659 = vmax.f32 %v3651, 0.0
        %v3660 = vmax.f32 %v3652, 0.0
        %v3661 = vmax.f32 %v3653, 0.0
        %v3662 = vmax.f32 %v3654, 0.0
        %v3663 = vmax.f32 %v3655, 0.0
        %vm3664 = vcmask 130048
        %3665 = vst.msk [vmem:[%s312] sm:$0xff] %vm3664, %v3656
        %3666 = vst.msk [vmem:[%s312 + $0x8] sm:$0xff] %vm3664, %v3657
        %3667 = vst.msk [vmem:[%s312 + $0x10] sm:$0xff] %vm3664, %v3658
        %3668 = vst.msk [vmem:[%s312 + $0x18] sm:$0xff] %vm3664, %v3659
        %3669 = vst.msk [vmem:[%s312 + $0x20] sm:$0xff] %vm3664, %v3660
        %3670 = vst.msk [vmem:[%s312 + $0x28] sm:$0xff] %vm3664, %v3661
        %3671 = vst.msk [vmem:[%s312 + $0x30] sm:$0xff] %vm3664, %v3662
        %3672 = vst.msk [vmem:[%s312 + $0x38] sm:$0xff] %vm3664, %v3663
        %v3673 = vsel %vm3664, %v3656, 0.0
        %v3674 = vsel %vm3664, %v3657, 0.0
        %v3675 = vadd.f32 %v3673, %v3674
        %v3676 = vsel %vm3664, %v3658, 0.0
        %v3677 = vadd.f32 %v3675, %v3676
        %v3678 = vsel %vm3664, %v3659, 0.0
        %v3679 = vadd.f32 %v3677, %v3678
        %v3680 = vsel %vm3664, %v3660, 0.0
        %v3681 = vadd.f32 %v3679, %v3680
        %v3682 = vsel %vm3664, %v3661, 0.0
        %v3683 = vadd.f32 %v3681, %v3682
        %v3684 = vsel %vm3664, %v3662, 0.0
        %v3685 = vadd.f32 %v3683, %v3684
        %v3686 = vsel %vm3664, %v3663, 0.0
        %v3687 = vadd.f32 %v3685, %v3686
        %v3688 = vrot.slane %v3687, 4
        %v3689 = vadd.f32 %v3687, %v3688
        %v3690 = vrot.slane %v3689, 2
        %v3691 = vadd.f32 %v3689, %v3690
        %v3692 = vrot.slane %v3691, 1
        %v3693 = vadd.f32 %v3691, %v3692
        %vm3694 = vcmask 122880
        %3695 = vst.msk [vmem:[%s318] sm:$0x1] %vm3694, %v3693
        %s3696 = sand.u32 %s176, 1
        %s3697 = scalar_lea.sflag [#allocation3], %s3696
        %s3698 = sand.u32 %s176, 1
        %s3699 = smul.addr %s3698, 64
        %s3700 = scalar_lea.vmem [#allocation2], %s3699
        %s3701 = sand.u32 %s204, 1
        %s3702 = scalar_lea.sflag [#allocation5], %s3701
        %s3703 = sand.u32 %s204, 1
        %s3704 = scalar_lea.vmem [#allocation4], %s3703
        // Predicated region
        $region41: #{tpu_custom_call.1} parent=39 // pred_check
          %p3705 = pneg %p186
        $region42: #{tpu_custom_call.1} parent=39 // pred_check_branch
          %3707 = sbr.rel (%p3705) target = $region44
        $region43: #{tpu_custom_call.1} parent=39 // pred_region
          %3709 = vsyncadd %s3697, 0
          %s3710 = smul.addr %s28, 8
          %s3711 = sadd.s32 %s29, %s3710
          %s3712 = smul.addr %s3711, 8
          %s3713 = scalar_lea.hbm %s5, %s3712
          %s3714 = sshll.u32 %s3700, 4
          %s3715 = int_to_ptr.vmem [resolvable:$true] %s3714
          %s3716 = sshll.u32 %s3713, 4
          %s3717 = int_to_ptr.hbm [resolvable:$true] %s3716
          %3722 = dma.vmem_to_hbm [thread:$0]  %s3715, 1024, %s3717, %s3697, 128, 128, 8
        $region44: #{tpu_custom_call.1} parent=39 // pred_fallthru
          _
        // Predicated region
        $region45: #{tpu_custom_call.1} parent=39 // pred_check
          %p3723 = pneg %p214
        $region46: #{tpu_custom_call.1} parent=39 // pred_check_branch
          %3725 = sbr.rel (%p3723) target = $region48
        $region47: #{tpu_custom_call.1} parent=39 // pred_region
          %3727 = vsyncadd %s3702, 0
          %s3728 = sadd.s32 %s29, %s28
          %s3729 = scalar_lea.hbm %s6, %s3728
          %s3731 = sshll.u32 %s3704, 4
          %s3732 = int_to_ptr.vmem [resolvable:$true] %s3731
          %s3733 = sshll.u32 %s3729, 4
          %s3734 = int_to_ptr.hbm [resolvable:$true] %s3733
          %3736 = dma.vmem_to_hbm [thread:$0]  %s3732, 16, %s3734, %s3702
        $region48: #{tpu_custom_call.1} parent=39 // pred_fallthru
          _
      $region40: #{tpu_custom_call.1} parent=5 // pred_fallthru
        _
      %p3737 = scmp.le.s32.totalorder 2, %s19
      // Predicated region
      $region49: #{tpu_custom_call.1} parent=5 // pred_check
        %p3738 = pneg %p3737
      $region50: #{tpu_custom_call.1} parent=5 // pred_check_branch
        %3740 = sbr.rel (%p3738) target = $region52
      $region51: #{tpu_custom_call.1} parent=5 // pred_region
        %s3741 = ssub.s32 %s19, 2
        // Predicated region
        $region53: #{tpu_custom_call.1} parent=51 // pred_check
          %p3742 = pneg %p192
        $region54: #{tpu_custom_call.1} parent=51 // pred_check_branch
          %3744 = sbr.rel (%p3742) target = $region56
        $region55: #{tpu_custom_call.1} parent=51 // pred_region
          %s3745 = sand.u32 %s177, 1
          %s3746 = scalar_lea.sflag [#allocation3], %s3745
          %s3747 = sand.u32 %s177, 1
          %s3748 = smul.addr %s3747, 64
          %s3749 = scalar_lea.vmem [#allocation2], %s3748
          %3751 = dma.done %s3746, 1024
        $region56: #{tpu_custom_call.1} parent=51 // pred_fallthru
          _
        // Predicated region
        $region57: #{tpu_custom_call.1} parent=51 // pred_check
          %p3752 = pneg %p220
        $region58: #{tpu_custom_call.1} parent=51 // pred_check_branch
          %3754 = sbr.rel (%p3752) target = $region60
        $region59: #{tpu_custom_call.1} parent=51 // pred_region
          %s3755 = sand.u32 %s205, 1
          %s3756 = scalar_lea.sflag [#allocation5], %s3755
          %s3757 = sand.u32 %s205, 1
          %s3758 = scalar_lea.vmem [#allocation4], %s3757
          %3760 = dma.done %s3756, 16
        $region60: #{tpu_custom_call.1} parent=51 // pred_fallthru
          _
      $region52: #{tpu_custom_call.1} parent=5 // pred_fallthru
        _
    $region6: #{tpu_custom_call.1} parent=1 // loop_footer
      %s23 = sadd.s32 1, %s19
    $region7: #{tpu_custom_call.1} parent=1 // loop_footer_branch
      %18 = sbr.rel target = $region3
    $region8: #{tpu_custom_call.1} parent=1 // loop_exit
      _
    %3761 = vsyncpa [#allocation3], 1
    %s3762 = scalar_lea.sflag [#allocation3], 1
    %3763 = vsyncpa %s3762, 1
    %3764 = vsyncpa [#allocation5], 1
    %s3765 = scalar_lea.sflag [#allocation5], 1
    %3766 = vsyncpa %s3765, 1

</llo_original>
